<compile_context>
chip_gen: v7x
topology: tpu7x:2x2x1
jax: 0.10.0
libtpu: 0.0.40
codegen_flags: <defaults>
</compile_context>

<pallas_src>
import functools

import jax
import jax.numpy as jnp
from jax.experimental import pallas as pl
from jax.experimental.pallas import tpu as pltpu


# ------------------------------------------------------------------------------------
# Pallas kernel: one batch tile per grid step
# ------------------------------------------------------------------------------------
def attention_kernel(
    feats_ref,   # (TB, N, E)  compute dtype (f32 or bf16)
    h_ref,       # (TB, D)     compute dtype
    u_w_ref,     # (E, A)      compute dtype
    u_b_ref,     # (1, A)      f32
    w_w_ref,     # (D, A)      compute dtype
    w_b_ref,     # (1, A)      f32
    a_w_ref,     # (1, A)      f32
    a_b_ref,     # (1, 1)      f32, SMEM scalar
    alpha_ref,   # (TB, N)     f32 out
    ctx_ref,     # (TB, E)     f32 out
):
    feats = feats_ref[...]                                   # (TB, N, E)
    h = h_ref[...]                                           # (TB, D)
    TB, N, E = feats.shape
    A = u_w_ref.shape[1]

    # ---- u_hs = U(features): (TB*N, E) @ (E, A) on the MXU, f32 accumulation ----
    u_hs = (
        jnp.dot(feats.reshape(TB * N, E), u_w_ref[...],
                preferred_element_type=jnp.float32).reshape(TB, N, A)
        + u_b_ref[...][None, :, :]
    )                                                        # (TB, N, A) f32

    # ---- w_ah = W(hidden): (TB, D) @ (D, A) ----
    w_ah = (jnp.dot(h, w_w_ref[...], preferred_element_type=jnp.float32)
            + w_b_ref[...])                                  # (TB, A) f32

    # ---- combined = tanh(u_hs + w_ah[:, None, :])  (f32 transcendental path) ----
    combined = jnp.tanh(u_hs + w_ah[:, None, :])             # (TB, N, A) f32

    # ---- scores = A(combined).squeeze(2): lane-reduce against the single weight row ----
    a_w = a_w_ref[...]                                       # (1, A) f32
    scores = jnp.sum(combined * a_w[None, :, :], axis=-1) + a_b_ref[0, 0]   # (TB, N)

    # ---- softmax over N (numerically stable, f32); divide -> approx reciprocal (EUP) ----
    scores_max = jnp.max(scores, axis=-1, keepdims=True)
    exp_s = jnp.exp(scores - scores_max)
    denom = jnp.sum(exp_s, axis=-1, keepdims=True)
    alpha = exp_s * pl.reciprocal(denom, approx=True)        # (TB, N) f32

    # ---- context = sum_n alpha_n * features_n ----
    context = jnp.sum(feats * alpha[:, :, None], axis=1)     # (TB, E) f32 (promoted)

    alpha_ref[...] = alpha.astype(alpha_ref.dtype)
    ctx_ref[...] = context.astype(ctx_ref.dtype)


# ------------------------------------------------------------------------------------
# Wrapper
# ------------------------------------------------------------------------------------
@functools.partial(jax.jit, static_argnames=("block_b", "compute_dtype"))
def attention_forward(features, hidden_state, params, *, block_b=None,
                      compute_dtype=jnp.float32):
    B, N, E = features.shape
    D = hidden_state.shape[1]
    A = params["U_w"].shape[1]

    if block_b is None:
        block_b = 8 if (B % 8 == 0) else B
    assert B % block_b == 0
    nb = B // block_b

    # storage dtype for the big operands (bf16 on v6e halves VMEM / doubles MXU rate);
    # biases, attention row A_w and all softmax math stay f32.
    feats = features.astype(compute_dtype)
    hid = hidden_state.astype(compute_dtype)
    u_w = params["U_w"].astype(compute_dtype)
    w_w = params["W_w"].astype(compute_dtype)
    u_b = params["U_b"].astype(jnp.float32)
    w_b = params["W_b"].astype(jnp.float32)
    a_w = params["A_w"].astype(jnp.float32)
    a_b = params["A_b"].astype(jnp.float32)          # (1, 1) scalar -> SMEM

    in_specs = [
        pl.BlockSpec((block_b, N, E), lambda i: (i, 0, 0)),   # features, per batch tile
        pl.BlockSpec((block_b, D), lambda i: (i, 0)),         # hidden,   per batch tile
        pl.BlockSpec((E, A), lambda i: (0, 0)),               # U_w (grid-invariant)
        pl.BlockSpec((1, A), lambda i: (0, 0)),               # U_b
        pl.BlockSpec((D, A), lambda i: (0, 0)),               # W_w
        pl.BlockSpec((1, A), lambda i: (0, 0)),               # W_b
        pl.BlockSpec((1, A), lambda i: (0, 0)),               # A_w
        pl.BlockSpec(memory_space=pltpu.MemorySpace.SMEM),    # A_b scalar in SMEM
    ]
    out_specs = [
        pl.BlockSpec((block_b, N), lambda i: (i, 0)),         # alpha   (lane-dense: N)
        pl.BlockSpec((block_b, E), lambda i: (i, 0)),         # context (lane-dense: E)
    ]

    alpha, context = pl.pallas_call(
        attention_kernel,
        out_shape=(
            jax.ShapeDtypeStruct((B, N), jnp.float32),
            jax.ShapeDtypeStruct((B, E), jnp.float32),
        ),
        grid_spec=pltpu.PrefetchScalarGridSpec(
            num_scalar_prefetch=0,
            grid=(nb,),
            in_specs=in_specs,
            out_specs=out_specs,
        ),
        compiler_params=pltpu.CompilerParams(
            # batch tiles are independent -> megacore / dual-TC sharding on v7x
            dimension_semantics=("parallel",),
        ),
    )(feats, hid, u_w, u_b, w_w, w_b, a_w, a_b)
    return alpha, context


# ------------------------------------------------------------------------------------
# Pure-JAX reference (mirrors the PyTorch Attention.forward exactly)
# ------------------------------------------------------------------------------------
def attention_reference(features, hidden_state, p):
    u_hs = features @ p["U_w"] + p["U_b"][0]                       # (B, N, A)
    w_ah = hidden_state @ p["W_w"] + p["W_b"][0]                   # (B, A)
    combined = jnp.tanh(u_hs + w_ah[:, None, :])                   # (B, N, A)
    scores = jnp.sum(combined * p["A_w"][0][None, None, :], axis=-1) + p["A_b"][0, 0]
    alpha = jax.nn.softmax(scores, axis=1)                         # (B, N)
    context = jnp.sum(features * alpha[:, :, None], axis=1)        # (B, E)
    return alpha, context


# ------------------------------------------------------------------------------------
# Deterministic parameter construction (Linear weights stored as (in, out))
# ------------------------------------------------------------------------------------
def make_params(key, encoder_dim, decoder_dim, attention_dim):
    ks = jax.random.split(key, 6)
    g = lambda k, shape: jax.random.normal(k, shape, jnp.float32) * 0.1
    return {
        "U_w": g(ks[0], (encoder_dim, attention_dim)), "U_b": g(ks[1], (1, attention_dim)),
        "W_w": g(ks[2], (decoder_dim, attention_dim)), "W_b": g(ks[3], (1, attention_dim)),
        "A_w": g(ks[4], (1, attention_dim)),           "A_b": g(ks[5], (1, 1)),
    }


if __name__ == "__main__":
    # Lane/sublane-aligned small shapes: B multiple of 8, N/E/D/A multiples of 128
    # so every load/store in the kernel is full-lane (no masked vst / relayouts).
    B, N = 16, 128
    encoder_dim = 128
    decoder_dim = 128
    attention_dim = 128

    key = jax.random.PRNGKey(0)
    k_feat, k_hid, k_par = jax.random.split(key, 3)
    features = jax.random.normal(k_feat, (B, N, encoder_dim), jnp.float32)
    hidden = jax.random.normal(k_hid, (B, decoder_dim), jnp.float32)
    params = make_params(k_par, encoder_dim, decoder_dim, attention_dim)

    # f32 path
    alpha, context = attention_forward(features, hidden, params)
    jax.block_until_ready((alpha, context))

    alpha_ref, context_ref = attention_reference(features, hidden, params)
    assert alpha.shape == (B, N)
    assert context.shape == (B, encoder_dim)
    assert jnp.allclose(alpha, alpha_ref, atol=1e-2, rtol=1e-2)
    assert jnp.allclose(context, context_ref, atol=1e-2, rtol=1e-2)

    # bf16 storage / MXU path (v6e feedback) -- f32 accumulation, f32 softmax
    alpha_bf, context_bf = attention_forward(features, hidden, params,
                                             compute_dtype=jnp.bfloat16)
    jax.block_until_ready((alpha_bf, context_bf))
    assert jnp.allclose(alpha_bf, alpha_ref, atol=3e-2, rtol=3e-2)
    assert jnp.allclose(context_bf, context_ref, atol=3e-2, rtol=3e-2)

    print("KERNEL_OK")
</pallas_src>

<mosaic_0001>
module attributes {stable_mosaic.version = 11 : i64} {
  func.func @attention_kernel(%arg0: i32, %arg1: memref<8x128x128xf32, #tpu.memory_space<vmem>>, %arg2: memref<8x128xf32, #tpu.memory_space<vmem>>, %arg3: memref<128x128xf32, #tpu.memory_space<vmem>>, %arg4: memref<1x128xf32, #tpu.memory_space<vmem>>, %arg5: memref<128x128xf32, #tpu.memory_space<vmem>>, %arg6: memref<1x128xf32, #tpu.memory_space<vmem>>, %arg7: memref<1x128xf32, #tpu.memory_space<vmem>>, %arg8: memref<1x1xf32, #tpu.memory_space<smem>>, %arg9: memref<8x128xf32, #tpu.memory_space<vmem>>, %arg10: memref<8x128xf32, #tpu.memory_space<vmem>>) attributes {dimension_semantics = [#tpu.dimension_semantics<parallel>], iteration_bounds = array<i64: 2>, scalar_prefetch = 0 : i64, scratch_operands = 0 : i64, tpu.core_type = #tpu.core_type<tc>, window_params = [{transform_indices = @transform_0, window_bounds = array<i64: 8, 128, 128>}, {transform_indices = @transform_1, window_bounds = array<i64: 8, 128>}, {pipeline_mode = #tpu.pipeline_mode<synchronous>, transform_indices = @transform_2, window_bounds = array<i64: 128, 128>}, {pipeline_mode = #tpu.pipeline_mode<synchronous>, transform_indices = @transform_3, window_bounds = array<i64: 1, 128>}, {pipeline_mode = #tpu.pipeline_mode<synchronous>, transform_indices = @transform_4, window_bounds = array<i64: 128, 128>}, {pipeline_mode = #tpu.pipeline_mode<synchronous>, transform_indices = @transform_5, window_bounds = array<i64: 1, 128>}, {pipeline_mode = #tpu.pipeline_mode<synchronous>, transform_indices = @transform_6, window_bounds = array<i64: 1, 128>}, {transform_indices = @transform_7, window_bounds = array<i64: 1, 1>}, {transform_indices = @transform_8, window_bounds = array<i64: 8, 128>}, {transform_indices = @transform_9, window_bounds = array<i64: 8, 128>}]} {
    %c0 = arith.constant 0 : index
    %c0_0 = arith.constant 0 : index
    %c0_1 = arith.constant 0 : index
    %0 = vector.load %arg1[%c0, %c0_0, %c0_1] : memref<8x128x128xf32, #tpu.memory_space<vmem>>, vector<8x128x128xf32>
    %c0_2 = arith.constant 0 : index
    %c0_3 = arith.constant 0 : index
    %1 = vector.load %arg2[%c0_2, %c0_3] : memref<8x128xf32, #tpu.memory_space<vmem>>, vector<8x128xf32>
    %2 = vector.shape_cast %0 : vector<8x128x128xf32> to vector<1024x128xf32>
    %c0_4 = arith.constant 0 : index
    %c0_5 = arith.constant 0 : index
    %3 = vector.load %arg3[%c0_4, %c0_5] : memref<128x128xf32, #tpu.memory_space<vmem>>, vector<128x128xf32>
    %cst = arith.constant dense<0.000000e+00> : vector<1024x128xf32>
    %4 = tpu.matmul %2, %3, %cst {dimension_numbers = #tpu.dot_dimension_numbers<[1], [0], [0], [1], [0, 0, 1, 1], [], []>} : vector<1024x128xf32>, vector<128x128xf32>, vector<1024x128xf32> -> vector<1024x128xf32>
    %5 = vector.shape_cast %4 : vector<1024x128xf32> to vector<8x128x128xf32>
    %c0_6 = arith.constant 0 : index
    %c0_7 = arith.constant 0 : index
    %6 = vector.load %arg4[%c0_6, %c0_7] : memref<1x128xf32, #tpu.memory_space<vmem>>, vector<1x128xf32>
    %7 = vector.shape_cast %6 : vector<1x128xf32> to vector<1x1x128xf32>
    %8 = vector.broadcast %7 : vector<1x1x128xf32> to vector<8x128x128xf32>
    %9 = arith.addf %5, %8 : vector<8x128x128xf32>
    %c0_8 = arith.constant 0 : index
    %c0_9 = arith.constant 0 : index
    %10 = vector.load %arg5[%c0_8, %c0_9] : memref<128x128xf32, #tpu.memory_space<vmem>>, vector<128x128xf32>
    %cst_10 = arith.constant dense<0.000000e+00> : vector<8x128xf32>
    %11 = tpu.matmul %1, %10, %cst_10 {dimension_numbers = #tpu.dot_dimension_numbers<[1], [0], [0], [1], [0, 0, 1, 1], [], []>} : vector<8x128xf32>, vector<128x128xf32>, vector<8x128xf32> -> vector<8x128xf32>
    %c0_11 = arith.constant 0 : index
    %c0_12 = arith.constant 0 : index
    %12 = vector.load %arg6[%c0_11, %c0_12] : memref<1x128xf32, #tpu.memory_space<vmem>>, vector<1x128xf32>
    %13 = vector.broadcast %12 : vector<1x128xf32> to vector<8x128xf32>
    %14 = arith.addf %11, %13 : vector<8x128xf32>
    %15 = vector.shape_cast %14 : vector<8x128xf32> to vector<8x1x128xf32>
    %16 = vector.broadcast %15 : vector<8x1x128xf32> to vector<8x128x128xf32>
    %17 = arith.addf %9, %16 : vector<8x128x128xf32>
    %18 = math.tanh %17 : vector<8x128x128xf32>
    %c0_13 = arith.constant 0 : index
    %c0_14 = arith.constant 0 : index
    %19 = vector.load %arg7[%c0_13, %c0_14] : memref<1x128xf32, #tpu.memory_space<vmem>>, vector<1x128xf32>
    %20 = vector.shape_cast %19 : vector<1x128xf32> to vector<1x1x128xf32>
    %21 = vector.broadcast %20 : vector<1x1x128xf32> to vector<8x128x128xf32>
    %22 = arith.mulf %18, %21 : vector<8x128x128xf32>
    %cst_15 = arith.constant dense<0.000000e+00> : vector<8x128xf32>
    %23 = vector.multi_reduction <add>, %22, %cst_15 [2] : vector<8x128x128xf32> to vector<8x128xf32>
    %c0_16 = arith.constant 0 : index
    %c0_17 = arith.constant 0 : index
    %24 = memref.load %arg8[%c0_16, %c0_17] : memref<1x1xf32, #tpu.memory_space<smem>>
    %25 = vector.broadcast %24 : f32 to vector<8x128xf32>
    %26 = arith.addf %23, %25 : vector<8x128xf32>
    %cst_18 = arith.constant dense<0xFF800000> : vector<8xf32>
    %27 = vector.multi_reduction <maximumf>, %26, %cst_18 [1] : vector<8x128xf32> to vector<8xf32>
    %28 = vector.shape_cast %27 : vector<8xf32> to vector<8x1xf32>
    %29 = vector.broadcast %28 : vector<8x1xf32> to vector<8x128xf32>
    %30 = arith.subf %26, %29 : vector<8x128xf32>
    %31 = math.exp %30 : vector<8x128xf32>
    %cst_19 = arith.constant dense<0.000000e+00> : vector<8xf32>
    %32 = vector.multi_reduction <add>, %31, %cst_19 [1] : vector<8x128xf32> to vector<8xf32>
    %33 = vector.shape_cast %32 : vector<8xf32> to vector<8x1xf32>
    %34 = tpu.reciprocal %33 {approx = true} : vector<8x1xf32> -> vector<8x1xf32>
    %35 = vector.broadcast %34 : vector<8x1xf32> to vector<8x128xf32>
    %36 = arith.mulf %31, %35 : vector<8x128xf32>
    %37 = vector.shape_cast %36 : vector<8x128xf32> to vector<8x128x1xf32>
    %38 = vector.broadcast %37 : vector<8x128x1xf32> to vector<8x128x128xf32>
    %39 = arith.mulf %0, %38 : vector<8x128x128xf32>
    %cst_20 = arith.constant dense<0.000000e+00> : vector<8x128xf32>
    %40 = vector.multi_reduction <add>, %39, %cst_20 [1] : vector<8x128x128xf32> to vector<8x128xf32>
    %c0_21 = arith.constant 0 : index
    %c0_22 = arith.constant 0 : index
    %41 = vector.load %arg9[%c0_21, %c0_22] : memref<8x128xf32, #tpu.memory_space<vmem>>, vector<8x128xf32>
    tpu.vector_store %arg9[%c0_21, %c0_22], %36 {strides = array<i32>} : memref<8x128xf32, #tpu.memory_space<vmem>>, vector<8x128xf32>,
    %c0_23 = arith.constant 0 : index
    %c0_24 = arith.constant 0 : index
    %42 = vector.load %arg10[%c0_23, %c0_24] : memref<8x128xf32, #tpu.memory_space<vmem>>, vector<8x128xf32>
    tpu.vector_store %arg10[%c0_23, %c0_24], %40 {strides = array<i32>} : memref<8x128xf32, #tpu.memory_space<vmem>>, vector<8x128xf32>,
    return
  }
  func.func @transform_0(%arg0: i32) -> (i32, i32, i32) {
    %c0_i32 = arith.constant 0 : i32
    %c0_i32_0 = arith.constant 0 : i32
    %c0_i32_1 = arith.constant 0 : i32
    return %arg0, %c0_i32, %c0_i32_0 : i32, i32, i32
  }
  func.func @transform_1(%arg0: i32) -> (i32, i32) {
    %c0_i32 = arith.constant 0 : i32
    %c0_i32_0 = arith.constant 0 : i32
    return %arg0, %c0_i32 : i32, i32
  }
  func.func @transform_2(%arg0: i32) -> (i32, i32) {
    %c0_i32 = arith.constant 0 : i32
    %c0_i32_0 = arith.constant 0 : i32
    %c0_i32_1 = arith.constant 0 : i32
    return %c0_i32, %c0_i32_0 : i32, i32
  }
  func.func @transform_3(%arg0: i32) -> (i32, i32) {
    %c0_i32 = arith.constant 0 : i32
    %c0_i32_0 = arith.constant 0 : i32
    %c0_i32_1 = arith.constant 0 : i32
    return %c0_i32, %c0_i32_0 : i32, i32
  }
  func.func @transform_4(%arg0: i32) -> (i32, i32) {
    %c0_i32 = arith.constant 0 : i32
    %c0_i32_0 = arith.constant 0 : i32
    %c0_i32_1 = arith.constant 0 : i32
    return %c0_i32, %c0_i32_0 : i32, i32
  }
  func.func @transform_5(%arg0: i32) -> (i32, i32) {
    %c0_i32 = arith.constant 0 : i32
    %c0_i32_0 = arith.constant 0 : i32
    %c0_i32_1 = arith.constant 0 : i32
    return %c0_i32, %c0_i32_0 : i32, i32
  }
  func.func @transform_6(%arg0: i32) -> (i32, i32) {
    %c0_i32 = arith.constant 0 : i32
    %c0_i32_0 = arith.constant 0 : i32
    %c0_i32_1 = arith.constant 0 : i32
    return %c0_i32, %c0_i32_0 : i32, i32
  }
  func.func @transform_7(%arg0: i32) -> (i32, i32) {
    %c0_i32 = arith.constant 0 : i32
    %c0_i32_0 = arith.constant 0 : i32
    %c0_i32_1 = arith.constant 0 : i32
    return %c0_i32, %c0_i32_0 : i32, i32
  }
  func.func @transform_8(%arg0: i32) -> (i32, i32) {
    %c0_i32 = arith.constant 0 : i32
    %c0_i32_0 = arith.constant 0 : i32
    return %arg0, %c0_i32 : i32, i32
  }
  func.func @transform_9(%arg0: i32) -> (i32, i32) {
    %c0_i32 = arith.constant 0 : i32
    %c0_i32_0 = arith.constant 0 : i32
    return %arg0, %c0_i32 : i32, i32
  }
}

</mosaic_0001>

<llo_original>
// kernel: attention_forward.1
$region0: #{attention_forward.1}
  #allocation0 [shape = 'u32[]', space=smem, size = 0x4, offset = 0x4, fixed_abs, tag = 'smem constant byte address 0x4 - core index']
  #allocation1 [shape = 'u32[144,128]{1,0:T(1,128)}', space=vmem, size = 0x12000, scoped, tag = 'internal scratch']
  #allocation2 [shape = 'f32[1,1]{1,0:T(1,128)S(6)}', space=smem, size = 0x200, scoped, tag = 'scoped memory for attention_forward.1']
  %s0 = inlined_call_operand.hbm [shape: f32[16,128,128], index: 0, kind: input, shape index: {}]
  %s1 = inlined_call_operand.hbm [shape: f32[16,128], index: 1, kind: input, shape index: {}]
  %s2 = inlined_call_operand.hbm [shape: f32[128,128], index: 2, kind: input, shape index: {}]
  %s3 = inlined_call_operand.vmem [shape: f32[1,128], index: 3, kind: input, shape index: {}]
  %s4 = inlined_call_operand.hbm [shape: f32[128,128], index: 4, kind: input, shape index: {}]
  %s5 = inlined_call_operand.vmem [shape: f32[1,128], index: 5, kind: input, shape index: {}]
  %s6 = inlined_call_operand.vmem [shape: f32[1,128], index: 6, kind: input, shape index: {}]
  %s7 = inlined_call_operand.<no memory space> [shape: f32[1,1], index: 7, kind: input, shape index: {}]
  %s8 = inlined_call_operand.hbm [shape: f32[16,128], index: 8, kind: output, shape index: {0}]
  %s9 = inlined_call_operand.hbm [shape: f32[16,128], index: 9, kind: output, shape index: {1}]
  %10 = xla_tuple %s8, %s9
  %s11 = sld [smem:[#allocation0]]
  $region89: #{attention_forward.1} parent=0
    _
  %s13 = ssub.s32 1, %s11
  %s14 = scalar_select 0, %s13, %s11
  %15 = sst [smem:[#allocation2]] %s7
  $region1: #{attention_forward.1} parent=0
    #allocation3 [shape = 'u8[1048576]{0}', space=vmem, size = 0x100000, scoped, tag = 'input window, operand 0']
    #allocation4 [shape = 's32[2]{0}', space=sflag, size = 0x8, scoped, tag = 'scoped memory for attention_forward.1']
    #allocation5 [shape = 's32[2]{0}', space=sflag, size = 0x8, scoped, tag = 'scoped memory for attention_forward.1']
    #allocation6 [shape = 'u8[8192]{0}', space=vmem, size = 0x2000, scoped, tag = 'input window, operand 1']
    #allocation7 [shape = 's32[2]{0}', space=sflag, size = 0x8, scoped, tag = 'scoped memory for attention_forward.1']
    #allocation8 [shape = 'u8[65536]{0}', space=vmem, size = 0x10000, scoped, tag = 'input window, operand 2, single buffered']
    #allocation9 [shape = 'u8[65536]{0}', space=vmem, size = 0x10000, scoped, tag = 'input window, operand 4, single buffered']
    #allocation10 [shape = 's32[1]{0}', space=sflag, size = 0x4, scoped, tag = 'scoped memory for attention_forward.1']
    #allocation11 [shape = 'u8[8192]{0}', space=vmem, size = 0x2000, scoped, tag = 'output window, operand 0']
    #allocation12 [shape = 'u8[8192]{0}', space=vmem, size = 0x2000, scoped, tag = 'output window, operand 1']
    #allocation13 [shape = 's32[2]{0}', space=sflag, size = 0x8, scoped, tag = 'scoped memory for attention_forward.1']
    %16 = vsyncpa [#allocation4], 0
    %s17 = scalar_lea.sflag [#allocation4], 1
    %18 = vsyncpa %s17, 0
    %19 = vsyncpa [#allocation7], 0
    %s20 = scalar_lea.sflag [#allocation7], 1
    %21 = vsyncpa %s20, 0
    %22 = vsyncpa [#allocation10], 0
    %23 = vsyncpa [#allocation5], 0
    %s24 = scalar_lea.sflag [#allocation5], 1
    %25 = vsyncpa %s24, 0
    %26 = vsyncpa [#allocation13], 0
    %s27 = scalar_lea.sflag [#allocation13], 1
    %28 = vsyncpa %s27, 0
    loop: start=0, step=1, limit=4
    $region2: #{attention_forward.1} parent=1 // loop_pre_header
      _
    $region3: #{attention_forward.1} parent=1 // loop_header
      %s30 = sphi 0, %s34
      %p31 = scmp.ge.s32.totalorder %s30, 4
      %s40 = sphi 0, %s42
      %s43 = sphi 0, %s40
      %s44 = sphi 0, %s43
      %s60 = sphi 0, %s44
      %s66 = sphi 0, %s68
      %s69 = sphi 0, %s66
      %s70 = sphi 0, %s69
      %s86 = sphi 0, %s70
      %s90 = sphi 0, %s90
      %s92 = sphi 0, %s90
      %s93 = sphi 0, %s92
      %s107 = sphi 0, %s93
      %s111 = sphi 0, %s111
      %s113 = sphi 0, %s111
      %s114 = sphi 0, %s113
      %s128 = sphi 0, %s114
      %s132 = sphi 0, %s132
      %s134 = sphi 0, %s132
      %s135 = sphi 0, %s134
      %s149 = sphi 0, %s135
      %s153 = sphi 0, %s153
      %s155 = sphi 0, %s153
      %s156 = sphi 0, %s155
      %s170 = sphi 0, %s156
      %s174 = sphi 0, %s174
      %s176 = sphi 0, %s174
      %s177 = sphi 0, %s176
      %s191 = sphi 0, %s177
      %s195 = sphi 0, %s195
      %s197 = sphi 0, %s195
      %s198 = sphi 0, %s197
      %s212 = sphi 0, %s198
      %s218 = sphi 0, %s220
      %s221 = sphi 0, %s218
      %s222 = sphi 0, %s221
      %s238 = sphi 0, %s222
      %s244 = sphi 0, %s246
      %s247 = sphi 0, %s244
      %s248 = sphi 0, %s247
      %s264 = sphi 0, %s248
    $region4: #{attention_forward.1} parent=1 // loop_header_branch
      %33 = sbr.rel (%p31) target = $region8
    $region5: #{attention_forward.1} parent=1 // loop_body
      %s35 = ssub.s32 %s30, 1
      %s36 = ssub.s32 %s30, 2
      %s37 = sadd.s32 %s30, 1
      %s38 = ssub.s32 %s30, %s37
      %p39 = scmp.eq.s32.totalorder %s38, 0
      %s41 = sadd.s32 %s40, 1
      %s42 = scalar_select %p39, %s40, %s41
      %p45 = pneg %p39
      %p46 = scmp.eq.s32.totalorder %s30, 1
      %p47 = por %p45, %p46
      %p48 = scmp.ne.s32.totalorder %s40, %s43
      %p49 = scmp.eq.s32.totalorder %s30, 0
      %p50 = por %p48, %p49
      %p51 = scmp.ne.s32.totalorder %s40, %s43
      %p52 = scmp.eq.s32.totalorder %s35, 1
      %p53 = por %p51, %p52
      %p54 = scmp.ne.s32.totalorder %s43, %s44
      %p55 = scmp.eq.s32.totalorder %s35, 0
      %p56 = por %p54, %p55
      %p57 = scmp.ne.s32.totalorder %s43, %s44
      %p58 = scmp.eq.s32.totalorder %s36, 1
      %p59 = por %p57, %p58
      %p61 = scmp.ne.s32.totalorder %s44, %s60
      %p62 = scmp.eq.s32.totalorder %s36, 0
      %p63 = por %p61, %p62
      %s64 = ssub.s32 %s30, %s37
      %p65 = scmp.eq.s32.totalorder %s64, 0
      %s67 = sadd.s32 %s66, 1
      %s68 = scalar_select %p65, %s66, %s67
      %p71 = pneg %p65
      %p72 = scmp.eq.s32.totalorder %s30, 1
      %p73 = por %p71, %p72
      %p74 = scmp.ne.s32.totalorder %s66, %s69
      %p75 = scmp.eq.s32.totalorder %s30, 0
      %p76 = por %p74, %p75
      %p77 = scmp.ne.s32.totalorder %s66, %s69
      %p78 = scmp.eq.s32.totalorder %s35, 1
      %p79 = por %p77, %p78
      %p80 = scmp.ne.s32.totalorder %s69, %s70
      %p81 = scmp.eq.s32.totalorder %s35, 0
      %p82 = por %p80, %p81
      %p83 = scmp.ne.s32.totalorder %s69, %s70
      %p84 = scmp.eq.s32.totalorder %s36, 1
      %p85 = por %p83, %p84
      %p87 = scmp.ne.s32.totalorder %s70, %s86
      %p88 = scmp.eq.s32.totalorder %s36, 0
      %p89 = por %p87, %p88
      %s91 = sadd.s32 %s90, 1
      %p94 = scmp.eq.s32.totalorder %s30, 1
      %p95 = scmp.ne.s32.totalorder %s90, %s92
      %p96 = scmp.eq.s32.totalorder %s30, 0
      %p97 = por %p95, %p96
      %p98 = scmp.ne.s32.totalorder %s90, %s92
      %p99 = scmp.eq.s32.totalorder %s35, 1
      %p100 = por %p98, %p99
      %p101 = scmp.ne.s32.totalorder %s92, %s93
      %p102 = scmp.eq.s32.totalorder %s35, 0
      %p103 = por %p101, %p102
      %p104 = scmp.ne.s32.totalorder %s92, %s93
      %p105 = scmp.eq.s32.totalorder %s36, 1
      %p106 = por %p104, %p105
      %p108 = scmp.ne.s32.totalorder %s93, %s107
      %p109 = scmp.eq.s32.totalorder %s36, 0
      %p110 = por %p108, %p109
      %s112 = sadd.s32 %s111, 1
      %p115 = scmp.eq.s32.totalorder %s30, 1
      %p116 = scmp.ne.s32.totalorder %s111, %s113
      %p117 = scmp.eq.s32.totalorder %s30, 0
      %p118 = por %p116, %p117
      %p119 = scmp.ne.s32.totalorder %s111, %s113
      %p120 = scmp.eq.s32.totalorder %s35, 1
      %p121 = por %p119, %p120
      %p122 = scmp.ne.s32.totalorder %s113, %s114
      %p123 = scmp.eq.s32.totalorder %s35, 0
      %p124 = por %p122, %p123
      %p125 = scmp.ne.s32.totalorder %s113, %s114
      %p126 = scmp.eq.s32.totalorder %s36, 1
      %p127 = por %p125, %p126
      %p129 = scmp.ne.s32.totalorder %s114, %s128
      %p130 = scmp.eq.s32.totalorder %s36, 0
      %p131 = por %p129, %p130
      %s133 = sadd.s32 %s132, 1
      %p136 = scmp.eq.s32.totalorder %s30, 1
      %p137 = scmp.ne.s32.totalorder %s132, %s134
      %p138 = scmp.eq.s32.totalorder %s30, 0
      %p139 = por %p137, %p138
      %p140 = scmp.ne.s32.totalorder %s132, %s134
      %p141 = scmp.eq.s32.totalorder %s35, 1
      %p142 = por %p140, %p141
      %p143 = scmp.ne.s32.totalorder %s134, %s135
      %p144 = scmp.eq.s32.totalorder %s35, 0
      %p145 = por %p143, %p144
      %p146 = scmp.ne.s32.totalorder %s134, %s135
      %p147 = scmp.eq.s32.totalorder %s36, 1
      %p148 = por %p146, %p147
      %p150 = scmp.ne.s32.totalorder %s135, %s149
      %p151 = scmp.eq.s32.totalorder %s36, 0
      %p152 = por %p150, %p151
      %s154 = sadd.s32 %s153, 1
      %p157 = scmp.eq.s32.totalorder %s30, 1
      %p158 = scmp.ne.s32.totalorder %s153, %s155
      %p159 = scmp.eq.s32.totalorder %s30, 0
      %p160 = por %p158, %p159
      %p161 = scmp.ne.s32.totalorder %s153, %s155
      %p162 = scmp.eq.s32.totalorder %s35, 1
      %p163 = por %p161, %p162
      %p164 = scmp.ne.s32.totalorder %s155, %s156
      %p165 = scmp.eq.s32.totalorder %s35, 0
      %p166 = por %p164, %p165
      %p167 = scmp.ne.s32.totalorder %s155, %s156
      %p168 = scmp.eq.s32.totalorder %s36, 1
      %p169 = por %p167, %p168
      %p171 = scmp.ne.s32.totalorder %s156, %s170
      %p172 = scmp.eq.s32.totalorder %s36, 0
      %p173 = por %p171, %p172
      %s175 = sadd.s32 %s174, 1
      %p178 = scmp.eq.s32.totalorder %s30, 1
      %p179 = scmp.ne.s32.totalorder %s174, %s176
      %p180 = scmp.eq.s32.totalorder %s30, 0
      %p181 = por %p179, %p180
      %p182 = scmp.ne.s32.totalorder %s174, %s176
      %p183 = scmp.eq.s32.totalorder %s35, 1
      %p184 = por %p182, %p183
      %p185 = scmp.ne.s32.totalorder %s176, %s177
      %p186 = scmp.eq.s32.totalorder %s35, 0
      %p187 = por %p185, %p186
      %p188 = scmp.ne.s32.totalorder %s176, %s177
      %p189 = scmp.eq.s32.totalorder %s36, 1
      %p190 = por %p188, %p189
      %p192 = scmp.ne.s32.totalorder %s177, %s191
      %p193 = scmp.eq.s32.totalorder %s36, 0
      %p194 = por %p192, %p193
      %s196 = sadd.s32 %s195, 1
      %p199 = scmp.eq.s32.totalorder %s30, 1
      %p200 = scmp.ne.s32.totalorder %s195, %s197
      %p201 = scmp.eq.s32.totalorder %s30, 0
      %p202 = por %p200, %p201
      %p203 = scmp.ne.s32.totalorder %s195, %s197
      %p204 = scmp.eq.s32.totalorder %s35, 1
      %p205 = por %p203, %p204
      %p206 = scmp.ne.s32.totalorder %s197, %s198
      %p207 = scmp.eq.s32.totalorder %s35, 0
      %p208 = por %p206, %p207
      %p209 = scmp.ne.s32.totalorder %s197, %s198
      %p210 = scmp.eq.s32.totalorder %s36, 1
      %p211 = por %p209, %p210
      %p213 = scmp.ne.s32.totalorder %s198, %s212
      %p214 = scmp.eq.s32.totalorder %s36, 0
      %p215 = por %p213, %p214
      %s216 = ssub.s32 %s30, %s37
      %p217 = scmp.eq.s32.totalorder %s216, 0
      %s219 = sadd.s32 %s218, 1
      %s220 = scalar_select %p217, %s218, %s219
      %p223 = pneg %p217
      %p224 = scmp.eq.s32.totalorder %s30, 1
      %p225 = por %p223, %p224
      %p226 = scmp.ne.s32.totalorder %s218, %s221
      %p227 = scmp.eq.s32.totalorder %s30, 0
      %p228 = por %p226, %p227
      %p229 = scmp.ne.s32.totalorder %s218, %s221
      %p230 = scmp.eq.s32.totalorder %s35, 1
      %p231 = por %p229, %p230
      %p232 = scmp.ne.s32.totalorder %s221, %s222
      %p233 = scmp.eq.s32.totalorder %s35, 0
      %p234 = por %p232, %p233
      %p235 = scmp.ne.s32.totalorder %s221, %s222
      %p236 = scmp.eq.s32.totalorder %s36, 1
      %p237 = por %p235, %p236
      %p239 = scmp.ne.s32.totalorder %s222, %s238
      %p240 = scmp.eq.s32.totalorder %s36, 0
      %p241 = por %p239, %p240
      %s242 = ssub.s32 %s30, %s37
      %p243 = scmp.eq.s32.totalorder %s242, 0
      %s245 = sadd.s32 %s244, 1
      %s246 = scalar_select %p243, %s244, %s245
      %p249 = pneg %p243
      %p250 = scmp.eq.s32.totalorder %s30, 1
      %p251 = por %p249, %p250
      %p252 = scmp.ne.s32.totalorder %s244, %s247
      %p253 = scmp.eq.s32.totalorder %s30, 0
      %p254 = por %p252, %p253
      %p255 = scmp.ne.s32.totalorder %s244, %s247
      %p256 = scmp.eq.s32.totalorder %s35, 1
      %p257 = por %p255, %p256
      %p258 = scmp.ne.s32.totalorder %s247, %s248
      %p259 = scmp.eq.s32.totalorder %s35, 0
      %p260 = por %p258, %p259
      %p261 = scmp.ne.s32.totalorder %s247, %s248
      %p262 = scmp.eq.s32.totalorder %s36, 1
      %p263 = por %p261, %p262
      %p265 = scmp.ne.s32.totalorder %s248, %s264
      %p266 = scmp.eq.s32.totalorder %s36, 0
      %p267 = por %p265, %p266
      %p268 = scmp.le.s32.totalorder 1, %s30
      %p269 = scmp.lt.s32.totalorder %s30, 3
      %p270 = pnand %p268, %p269
      %p271 = pneg %p270
      // Predicated region
      $region9: #{attention_forward.1} parent=5 // pred_check
        _
      $region10: #{attention_forward.1} parent=5 // pred_check_branch
        %273 = sbr.rel (%p270) target = $region12
      $region11: #{attention_forward.1} parent=5 // pred_region
        %s274 = ssub.s32 %s30, 1
        // Predicated region
        $region13: #{attention_forward.1} parent=11 // pred_check
          %p275 = pneg %p103
        $region14: #{attention_forward.1} parent=11 // pred_check_branch
          %277 = sbr.rel (%p275) target = $region16
        $region15: #{attention_forward.1} parent=11 // pred_region
          %s279 = ssub.s32 2048, 2048
          %280 = vsyncadd [#allocation7], %s279
          %s281 = sshll.u32 [#allocation8], 4
          %s282 = int_to_ptr.vmem [resolvable:$true] %s281
          %287 = dma.hbm_to_vmem [thread:$0]  %s2, 2048, %s282, [#allocation7], 128, 128, 8
        $region16: #{attention_forward.1} parent=11 // pred_fallthru
          _
        // Predicated region
        $region17: #{attention_forward.1} parent=11 // pred_check
          %p288 = pneg %p124
        $region18: #{attention_forward.1} parent=11 // pred_check_branch
          %290 = sbr.rel (%p288) target = $region20
        $region19: #{attention_forward.1} parent=11 // pred_region
          _
        $region20: #{attention_forward.1} parent=11 // pred_fallthru
          _
        // Predicated region
        $region21: #{attention_forward.1} parent=11 // pred_check
          %p291 = pneg %p145
        $region22: #{attention_forward.1} parent=11 // pred_check_branch
          %293 = sbr.rel (%p291) target = $region24
        $region23: #{attention_forward.1} parent=11 // pred_region
          %s295 = ssub.s32 2048, 2048
          %296 = vsyncadd [#allocation10], %s295
          %s297 = sshll.u32 [#allocation9], 4
          %s298 = int_to_ptr.vmem [resolvable:$true] %s297
          %303 = dma.hbm_to_vmem [thread:$0]  %s4, 2048, %s298, [#allocation10], 128, 128, 8
        $region24: #{attention_forward.1} parent=11 // pred_fallthru
          _
        // Predicated region
        $region25: #{attention_forward.1} parent=11 // pred_check
          %p304 = pneg %p166
        $region26: #{attention_forward.1} parent=11 // pred_check_branch
          %306 = sbr.rel (%p304) target = $region28
        $region27: #{attention_forward.1} parent=11 // pred_region
          _
        $region28: #{attention_forward.1} parent=11 // pred_fallthru
          _
        // Predicated region
        $region29: #{attention_forward.1} parent=11 // pred_check
          %p307 = pneg %p187
        $region30: #{attention_forward.1} parent=11 // pred_check_branch
          %309 = sbr.rel (%p307) target = $region32
        $region31: #{attention_forward.1} parent=11 // pred_region
          _
        $region32: #{attention_forward.1} parent=11 // pred_fallthru
          _
        // Predicated region
        $region33: #{attention_forward.1} parent=11 // pred_check
          %p310 = pneg %p208
        $region34: #{attention_forward.1} parent=11 // pred_check_branch
          %312 = sbr.rel (%p310) target = $region36
        $region35: #{attention_forward.1} parent=11 // pred_region
          _
        $region36: #{attention_forward.1} parent=11 // pred_fallthru
          _
      $region12: #{attention_forward.1} parent=5 // pred_fallthru
        _
      %p313 = scmp.lt.s32.totalorder %s30, 2
      // Predicated region
      $region37: #{attention_forward.1} parent=5 // pred_check
        %p314 = pneg %p313
      $region38: #{attention_forward.1} parent=5 // pred_check_branch
        %316 = sbr.rel (%p314) target = $region40
      $region39: #{attention_forward.1} parent=5 // pred_region
        // Predicated region
        $region41: #{attention_forward.1} parent=39 // pred_check
          %p317 = pneg %p50
        $region42: #{attention_forward.1} parent=39 // pred_check_branch
          %319 = sbr.rel (%p317) target = $region44
        $region43: #{attention_forward.1} parent=39 // pred_region
          %s320 = sand.u32 %s40, 1
          %s321 = scalar_lea.sflag [#allocation4], %s320
          %s322 = sand.u32 %s40, 1
          %s323 = smul.addr %s322, 1024
          %s324 = scalar_lea.vmem [#allocation3], %s323
          %s325 = smul.u32 8, %s30
          %s327 = ssub.s32 16384, 16384
          %328 = vsyncadd %s321, %s327
          %s329 = smul.addr %s325, 16
          %s330 = smul.addr %s329, 128
          %s331 = scalar_lea.hbm %s0, %s330
          %s332 = sshll.u32 %s324, 4
          %s333 = int_to_ptr.vmem [resolvable:$true] %s332
          %338 = dma.hbm_to_vmem [thread:$0]  %s331, 16384, %s333, %s321, 128, 128, 8
        $region44: #{attention_forward.1} parent=39 // pred_fallthru
          _
        // Predicated region
        $region45: #{attention_forward.1} parent=39 // pred_check
          %p339 = pneg %p76
        $region46: #{attention_forward.1} parent=39 // pred_check_branch
          %341 = sbr.rel (%p339) target = $region48
        $region47: #{attention_forward.1} parent=39 // pred_region
          %s342 = sand.u32 %s30, 1
          %s343 = scalar_lea.sflag [#allocation7], %s342
          %s344 = sand.u32 %s66, 1
          %s345 = smul.addr %s344, 8
          %s346 = scalar_lea.vmem [#allocation6], %s345
          %s348 = ssub.s32 128, 128
          %349 = vsyncadd %s343, %s348
          %s350 = smul.addr %s30, 128
          %s351 = scalar_lea.hbm %s1, %s350
          %s353 = sshll.u32 %s346, 4
          %s354 = int_to_ptr.vmem [resolvable:$true] %s353
          %356 = dma.hbm_to_vmem [thread:$0]  %s351, 128, %s354, %s343
        $region48: #{attention_forward.1} parent=39 // pred_fallthru
          _
      $region40: #{attention_forward.1} parent=5 // pred_fallthru
        _
      %p357 = scmp.le.s32.totalorder 1, %s30
      %p358 = scmp.lt.s32.totalorder %s30, 3
      %p359 = pnand %p357, %p358
      %p360 = pneg %p359
      // Predicated region
      $region49: #{attention_forward.1} parent=5 // pred_check
        _
      $region50: #{attention_forward.1} parent=5 // pred_check_branch
        %362 = sbr.rel (%p359) target = $region52
      $region51: #{attention_forward.1} parent=5 // pred_region
        %s363 = ssub.s32 %s30, 1
        %s364 = sand.u32 %s43, 1
        %s365 = scalar_lea.sflag [#allocation4], %s364
        %s366 = sand.u32 %s43, 1
        %s367 = smul.addr %s366, 1024
        %s368 = scalar_lea.vmem [#allocation3], %s367
        // Predicated region
        $region53: #{attention_forward.1} parent=51 // pred_check
          %p369 = pneg %p56
        $region54: #{attention_forward.1} parent=51 // pred_check_branch
          %371 = sbr.rel (%p369) target = $region56
        $region55: #{attention_forward.1} parent=51 // pred_region
          %372 = dma.done %s365, 16384
        $region56: #{attention_forward.1} parent=51 // pred_fallthru
          _
        %s373 = sand.u32 %s35, 1
        %s374 = scalar_lea.sflag [#allocation7], %s373
        %s375 = sand.u32 %s69, 1
        %s376 = smul.addr %s375, 8
        %s377 = scalar_lea.vmem [#allocation6], %s376
        // Predicated region
        $region57: #{attention_forward.1} parent=51 // pred_check
          %p378 = pneg %p82
        $region58: #{attention_forward.1} parent=51 // pred_check_branch
          %380 = sbr.rel (%p378) target = $region60
        $region59: #{attention_forward.1} parent=51 // pred_region
          %381 = dma.done %s374, 128
        $region60: #{attention_forward.1} parent=51 // pred_fallthru
          _
        // Predicated region
        $region61: #{attention_forward.1} parent=51 // pred_check
          %p382 = pneg %p103
        $region62: #{attention_forward.1} parent=51 // pred_check_branch
          %384 = sbr.rel (%p382) target = $region64
        $region63: #{attention_forward.1} parent=51 // pred_region
          %385 = dma.done [#allocation7], 2048
        $region64: #{attention_forward.1} parent=51 // pred_fallthru
          _
        // Predicated region
        $region65: #{attention_forward.1} parent=51 // pred_check
          %p386 = pneg %p145
        $region66: #{attention_forward.1} parent=51 // pred_check_branch
          %388 = sbr.rel (%p386) target = $region68
        $region67: #{attention_forward.1} parent=51 // pred_region
          %389 = dma.done [#allocation10], 2048
        $region68: #{attention_forward.1} parent=51 // pred_fallthru
          _
        %s390 = sand.u32 %s43, 1
        %s391 = scalar_lea.sflag [#allocation4], %s390
        %s392 = sand.u32 %s43, 1
        %s393 = smul.addr %s392, 1024
        %s394 = scalar_lea.vmem [#allocation3], %s393
        %p395 = pneg %p56
        %p396 = pneg %p53
        %s397 = sand.u32 %s35, 1
        %s398 = scalar_lea.sflag [#allocation7], %s397
        %s399 = sand.u32 %s69, 1
        %s400 = smul.addr %s399, 8
        %s401 = scalar_lea.vmem [#allocation6], %s400
        %p402 = pneg %p82
        %p403 = pneg %p79
        %p404 = pneg %p103
        %p405 = pneg %p100
        %p406 = pneg %p124
        %p407 = pneg %p121
        %p408 = pneg %p145
        %p409 = pneg %p142
        %p410 = pneg %p166
        %p411 = pneg %p163
        %p412 = pneg %p187
        %p413 = pneg %p184
        %p414 = pneg %p208
        %p415 = pneg %p205
        %p416 = pneg %p234
        %p417 = pneg %p231
        %s418 = sand.u32 %s221, 1
        %s419 = scalar_lea.sflag [#allocation5], %s418
        %s420 = sand.u32 %s221, 1
        %s421 = smul.addr %s420, 8
        %s422 = scalar_lea.vmem [#allocation11], %s421
        %p423 = pneg %p260
        %p424 = pneg %p257
        %s425 = sand.u32 %s247, 1
        %s426 = scalar_lea.sflag [#allocation13], %s425
        %s427 = sand.u32 %s247, 1
        %s428 = smul.addr %s427, 8
        %s429 = scalar_lea.vmem [#allocation12], %s428
        %s430 = smul.u32 8, %s35
        %v431 = vld [vmem:[%s368] sm:$0xff]
        %v432 = vld [vmem:[%s368 + $0x8] sm:$0xff]
        %v433 = vld [vmem:[%s368 + $0x10] sm:$0xff]
        %v434 = vld [vmem:[%s368 + $0x18] sm:$0xff]
        %v435 = vld [vmem:[%s368 + $0x20] sm:$0xff]
        %v436 = vld [vmem:[%s368 + $0x28] sm:$0xff]
        %v437 = vld [vmem:[%s368 + $0x30] sm:$0xff]
        %v438 = vld [vmem:[%s368 + $0x38] sm:$0xff]
        %v439 = vld [vmem:[%s368 + $0x40] sm:$0xff]
        %v440 = vld [vmem:[%s368 + $0x48] sm:$0xff]
        %v441 = vld [vmem:[%s368 + $0x50] sm:$0xff]
        %v442 = vld [vmem:[%s368 + $0x58] sm:$0xff]
        %v443 = vld [vmem:[%s368 + $0x60] sm:$0xff]
        %v444 = vld [vmem:[%s368 + $0x68] sm:$0xff]
        %v445 = vld [vmem:[%s368 + $0x70] sm:$0xff]
        %v446 = vld [vmem:[%s368 + $0x78] sm:$0xff]
        %v447 = vld [vmem:[%s368 + $0x80] sm:$0xff]
        %v448 = vld [vmem:[%s368 + $0x88] sm:$0xff]
        %v449 = vld [vmem:[%s368 + $0x90] sm:$0xff]
        %v450 = vld [vmem:[%s368 + $0x98] sm:$0xff]
        %v451 = vld [vmem:[%s368 + $0xa0] sm:$0xff]
        %v452 = vld [vmem:[%s368 + $0xa8] sm:$0xff]
        %v453 = vld [vmem:[%s368 + $0xb0] sm:$0xff]
        %v454 = vld [vmem:[%s368 + $0xb8] sm:$0xff]
        %v455 = vld [vmem:[%s368 + $0xc0] sm:$0xff]
        %v456 = vld [vmem:[%s368 + $0xc8] sm:$0xff]
        %v457 = vld [vmem:[%s368 + $0xd0] sm:$0xff]
        %v458 = vld [vmem:[%s368 + $0xd8] sm:$0xff]
        %v459 = vld [vmem:[%s368 + $0xe0] sm:$0xff]
        %v460 = vld [vmem:[%s368 + $0xe8] sm:$0xff]
        %v461 = vld [vmem:[%s368 + $0xf0] sm:$0xff]
        %v462 = vld [vmem:[%s368 + $0xf8] sm:$0xff]
        %v463 = vld [vmem:[%s368 + $0x100] sm:$0xff]
        %v464 = vld [vmem:[%s368 + $0x108] sm:$0xff]
        %v465 = vld [vmem:[%s368 + $0x110] sm:$0xff]
        %v466 = vld [vmem:[%s368 + $0x118] sm:$0xff]
        %v467 = vld [vmem:[%s368 + $0x120] sm:$0xff]
        %v468 = vld [vmem:[%s368 + $0x128] sm:$0xff]
        %v469 = vld [vmem:[%s368 + $0x130] sm:$0xff]
        %v470 = vld [vmem:[%s368 + $0x138] sm:$0xff]
        %v471 = vld [vmem:[%s368 + $0x140] sm:$0xff]
        %v472 = vld [vmem:[%s368 + $0x148] sm:$0xff]
        %v473 = vld [vmem:[%s368 + $0x150] sm:$0xff]
        %v474 = vld [vmem:[%s368 + $0x158] sm:$0xff]
        %v475 = vld [vmem:[%s368 + $0x160] sm:$0xff]
        %v476 = vld [vmem:[%s368 + $0x168] sm:$0xff]
        %v477 = vld [vmem:[%s368 + $0x170] sm:$0xff]
        %v478 = vld [vmem:[%s368 + $0x178] sm:$0xff]
        %v479 = vld [vmem:[%s368 + $0x180] sm:$0xff]
        %v480 = vld [vmem:[%s368 + $0x188] sm:$0xff]
        %v481 = vld [vmem:[%s368 + $0x190] sm:$0xff]
        %v482 = vld [vmem:[%s368 + $0x198] sm:$0xff]
        %v483 = vld [vmem:[%s368 + $0x1a0] sm:$0xff]
        %v484 = vld [vmem:[%s368 + $0x1a8] sm:$0xff]
        %v485 = vld [vmem:[%s368 + $0x1b0] sm:$0xff]
        %v486 = vld [vmem:[%s368 + $0x1b8] sm:$0xff]
        %v487 = vld [vmem:[%s368 + $0x1c0] sm:$0xff]
        %v488 = vld [vmem:[%s368 + $0x1c8] sm:$0xff]
        %v489 = vld [vmem:[%s368 + $0x1d0] sm:$0xff]
        %v490 = vld [vmem:[%s368 + $0x1d8] sm:$0xff]
        %v491 = vld [vmem:[%s368 + $0x1e0] sm:$0xff]
        %v492 = vld [vmem:[%s368 + $0x1e8] sm:$0xff]
        %v493 = vld [vmem:[%s368 + $0x1f0] sm:$0xff]
        %v494 = vld [vmem:[%s368 + $0x1f8] sm:$0xff]
        %v495 = vld [vmem:[%s368 + $0x200] sm:$0xff]
        %v496 = vld [vmem:[%s368 + $0x208] sm:$0xff]
        %v497 = vld [vmem:[%s368 + $0x210] sm:$0xff]
        %v498 = vld [vmem:[%s368 + $0x218] sm:$0xff]
        %v499 = vld [vmem:[%s368 + $0x220] sm:$0xff]
        %v500 = vld [vmem:[%s368 + $0x228] sm:$0xff]
        %v501 = vld [vmem:[%s368 + $0x230] sm:$0xff]
        %v502 = vld [vmem:[%s368 + $0x238] sm:$0xff]
        %v503 = vld [vmem:[%s368 + $0x240] sm:$0xff]
        %v504 = vld [vmem:[%s368 + $0x248] sm:$0xff]
        %v505 = vld [vmem:[%s368 + $0x250] sm:$0xff]
        %v506 = vld [vmem:[%s368 + $0x258] sm:$0xff]
        %v507 = vld [vmem:[%s368 + $0x260] sm:$0xff]
        %v508 = vld [vmem:[%s368 + $0x268] sm:$0xff]
        %v509 = vld [vmem:[%s368 + $0x270] sm:$0xff]
        %v510 = vld [vmem:[%s368 + $0x278] sm:$0xff]
        %v511 = vld [vmem:[%s368 + $0x280] sm:$0xff]
        %v512 = vld [vmem:[%s368 + $0x288] sm:$0xff]
        %v513 = vld [vmem:[%s368 + $0x290] sm:$0xff]
        %v514 = vld [vmem:[%s368 + $0x298] sm:$0xff]
        %v515 = vld [vmem:[%s368 + $0x2a0] sm:$0xff]
        %v516 = vld [vmem:[%s368 + $0x2a8] sm:$0xff]
        %v517 = vld [vmem:[%s368 + $0x2b0] sm:$0xff]
        %v518 = vld [vmem:[%s368 + $0x2b8] sm:$0xff]
        %v519 = vld [vmem:[%s368 + $0x2c0] sm:$0xff]
        %v520 = vld [vmem:[%s368 + $0x2c8] sm:$0xff]
        %v521 = vld [vmem:[%s368 + $0x2d0] sm:$0xff]
        %v522 = vld [vmem:[%s368 + $0x2d8] sm:$0xff]
        %v523 = vld [vmem:[%s368 + $0x2e0] sm:$0xff]
        %v524 = vld [vmem:[%s368 + $0x2e8] sm:$0xff]
        %v525 = vld [vmem:[%s368 + $0x2f0] sm:$0xff]
        %v526 = vld [vmem:[%s368 + $0x2f8] sm:$0xff]
        %v527 = vld [vmem:[%s368 + $0x300] sm:$0xff]
        %v528 = vld [vmem:[%s368 + $0x308] sm:$0xff]
        %v529 = vld [vmem:[%s368 + $0x310] sm:$0xff]
        %v530 = vld [vmem:[%s368 + $0x318] sm:$0xff]
        %v531 = vld [vmem:[%s368 + $0x320] sm:$0xff]
        %v532 = vld [vmem:[%s368 + $0x328] sm:$0xff]
        %v533 = vld [vmem:[%s368 + $0x330] sm:$0xff]
        %v534 = vld [vmem:[%s368 + $0x338] sm:$0xff]
        %v535 = vld [vmem:[%s368 + $0x340] sm:$0xff]
        %v536 = vld [vmem:[%s368 + $0x348] sm:$0xff]
        %v537 = vld [vmem:[%s368 + $0x350] sm:$0xff]
        %v538 = vld [vmem:[%s368 + $0x358] sm:$0xff]
        %v539 = vld [vmem:[%s368 + $0x360] sm:$0xff]
        %v540 = vld [vmem:[%s368 + $0x368] sm:$0xff]
        %v541 = vld [vmem:[%s368 + $0x370] sm:$0xff]
        %v542 = vld [vmem:[%s368 + $0x378] sm:$0xff]
        %v543 = vld [vmem:[%s368 + $0x380] sm:$0xff]
        %v544 = vld [vmem:[%s368 + $0x388] sm:$0xff]
        %v545 = vld [vmem:[%s368 + $0x390] sm:$0xff]
        %v546 = vld [vmem:[%s368 + $0x398] sm:$0xff]
        %v547 = vld [vmem:[%s368 + $0x3a0] sm:$0xff]
        %v548 = vld [vmem:[%s368 + $0x3a8] sm:$0xff]
        %v549 = vld [vmem:[%s368 + $0x3b0] sm:$0xff]
        %v550 = vld [vmem:[%s368 + $0x3b8] sm:$0xff]
        %v551 = vld [vmem:[%s368 + $0x3c0] sm:$0xff]
        %v552 = vld [vmem:[%s368 + $0x3c8] sm:$0xff]
        %v553 = vld [vmem:[%s368 + $0x3d0] sm:$0xff]
        %v554 = vld [vmem:[%s368 + $0x3d8] sm:$0xff]
        %v555 = vld [vmem:[%s368 + $0x3e0] sm:$0xff]
        %v556 = vld [vmem:[%s368 + $0x3e8] sm:$0xff]
        %v557 = vld [vmem:[%s368 + $0x3f0] sm:$0xff]
        %v558 = vld [vmem:[%s368 + $0x3f8] sm:$0xff]
        %v559 = vld [vmem:[%s377] sm:$0xff]
        %v560 = vld [vmem:[#allocation8] sm:$0xff]
        %v561 = vld [vmem:[#allocation8 + $0x8] sm:$0xff]
        %v562 = vld [vmem:[#allocation8 + $0x10] sm:$0xff]
        %v563 = vld [vmem:[#allocation8 + $0x18] sm:$0xff]
        %v564 = vld [vmem:[#allocation8 + $0x20] sm:$0xff]
        %v565 = vld [vmem:[#allocation8 + $0x28] sm:$0xff]
        %v566 = vld [vmem:[#allocation8 + $0x30] sm:$0xff]
        %v567 = vld [vmem:[#allocation8 + $0x38] sm:$0xff]
        %v568 = vld [vmem:[#allocation8 + $0x40] sm:$0xff]
        %v569 = vld [vmem:[#allocation8 + $0x48] sm:$0xff]
        %v570 = vld [vmem:[#allocation8 + $0x50] sm:$0xff]
        %v571 = vld [vmem:[#allocation8 + $0x58] sm:$0xff]
        %v572 = vld [vmem:[#allocation8 + $0x60] sm:$0xff]
        %v573 = vld [vmem:[#allocation8 + $0x68] sm:$0xff]
        %v574 = vld [vmem:[#allocation8 + $0x70] sm:$0xff]
        %v575 = vld [vmem:[#allocation8 + $0x78] sm:$0xff]
        %576 = vmatprep.subr.mxu0 0.0
        %577 = vmatpush1.msra.mxu0 %v560
        %578 = vmatprep.subr.mxu0 0.0
        %579 = vmatpush1.msra.mxu0 %v561
        %580 = vmatprep.subr.mxu0 0.0
        %581 = vmatpush1.msra.mxu0 %v562
        %582 = vmatprep.subr.mxu0 0.0
        %583 = vmatpush1.msra.mxu0 %v563
        %584 = vmatprep.subr.mxu0 0.0
        %585 = vmatpush1.msra.mxu0 %v564
        %586 = vmatprep.subr.mxu0 0.0
        %587 = vmatpush1.msra.mxu0 %v565
        %588 = vmatprep.subr.mxu0 0.0
        %589 = vmatpush1.msra.mxu0 %v566
        %590 = vmatprep.subr.mxu0 0.0
        %591 = vmatpush1.msra.mxu0 %v567
        %592 = vmatprep.subr.mxu0 0.0
        %593 = vmatpush1.msra.mxu0 %v568
        %594 = vmatprep.subr.mxu0 0.0
        %595 = vmatpush1.msra.mxu0 %v569
        %596 = vmatprep.subr.mxu0 0.0
        %597 = vmatpush1.msra.mxu0 %v570
        %598 = vmatprep.subr.mxu0 0.0
        %599 = vmatpush1.msra.mxu0 %v571
        %600 = vmatprep.subr.mxu0 0.0
        %601 = vmatpush1.msra.mxu0 %v572
        %602 = vmatprep.subr.mxu0 0.0
        %603 = vmatpush1.msra.mxu0 %v573
        %604 = vmatprep.subr.mxu0 0.0
        %605 = vmatpush1.msra.mxu0 %v574
        %606 = vmatprep.subr.mxu0 0.0
        %607 = vmatpush1.msra.mxu0 %v575
        %608 = vmatprep.subr.mxu0 0.0
        %609 = vmatpush1.msra.mxu0 0.0
        %610 = vmatprep.subr.mxu0 0.0
        %611 = vmatpush1.msra.mxu0 0.0
        %612 = vmatprep.subr.mxu0 0.0
        %613 = vmatpush1.msra.mxu0 0.0
        %614 = vmatprep.subr.mxu0 0.0
        %615 = vmatpush1.msra.mxu0 0.0
        %616 = vmatprep.subr.mxu0 0.0
        %617 = vmatpush1.msra.mxu0 0.0
        %618 = vmatprep.subr.mxu0 0.0
        %619 = vmatpush1.msra.mxu0 0.0
        %620 = vmatprep.subr.mxu0 0.0
        %621 = vmatpush1.msra.mxu0 0.0
        %622 = vmatprep.subr.mxu0 0.0
        %623 = vmatpush1.msra.mxu0 0.0
        %624 = vmatprep.subr.mxu0 0.0
        %625 = vmatpush1.msra.mxu0 0.0
        %626 = vmatprep.subr.mxu0 0.0
        %627 = vmatpush1.msra.mxu0 0.0
        %628 = vmatprep.subr.mxu0 0.0
        %629 = vmatpush1.msra.mxu0 0.0
        %630 = vmatprep.subr.mxu0 0.0
        %631 = vmatpush1.msra.mxu0 0.0
        %632 = vmatprep.subr.mxu0 0.0
        %633 = vmatpush1.msra.mxu0 0.0
        %634 = vmatprep.subr.mxu0 0.0
        %635 = vmatpush1.msra.mxu0 0.0
        %636 = vmatprep.subr.mxu0 0.0
        %637 = vmatpush1.msra.mxu0 0.0
        %638 = vmatprep.subr.mxu0 0.0
        %639 = vmatpush1.msra.mxu0 0.0
        %640 = vmatprep.mubr.f32.mxu0 0.0
        %641 = vmatmul.mubr.f32.gmra.mrb[0].mxu0 %v431
        %v642 = vpop.f32.mrb[0].mxu0
        %v643 = vadd.f32 0.0, %v642
        %v644 = vpop.f32.mrb[0].mxu0
        %645 = vmatprep.mubr.f32.mxu0 0.0
        %646 = vmatmul.mubr.f32.gmra.mrb[0].mxu0 %v432
        %v647 = vpop.f32.mrb[0].mxu0
        %v648 = vadd.f32 0.0, %v647
        %v649 = vpop.f32.mrb[0].mxu0
        %650 = vmatprep.mubr.f32.mxu0 0.0
        %651 = vmatmul.mubr.f32.gmra.mrb[0].mxu0 %v433
        %v652 = vpop.f32.mrb[0].mxu0
        %v653 = vadd.f32 0.0, %v652
        %v654 = vpop.f32.mrb[0].mxu0
        %655 = vmatprep.mubr.f32.mxu0 0.0
        %656 = vmatmul.mubr.f32.gmra.mrb[0].mxu0 %v434
        %v657 = vpop.f32.mrb[0].mxu0
        %v658 = vadd.f32 0.0, %v657
        %v659 = vpop.f32.mrb[0].mxu0
        %660 = vmatprep.mubr.f32.mxu0 0.0
        %661 = vmatmul.mubr.f32.gmra.mrb[0].mxu0 %v435
        %v662 = vpop.f32.mrb[0].mxu0
        %v663 = vadd.f32 0.0, %v662
        %v664 = vpop.f32.mrb[0].mxu0
        %665 = vmatprep.mubr.f32.mxu0 0.0
        %666 = vmatmul.mubr.f32.gmra.mrb[0].mxu0 %v436
        %v667 = vpop.f32.mrb[0].mxu0
        %v668 = vadd.f32 0.0, %v667
        %v669 = vpop.f32.mrb[0].mxu0
        %670 = vmatprep.mubr.f32.mxu0 0.0
        %671 = vmatmul.mubr.f32.gmra.mrb[0].mxu0 %v437
        %v672 = vpop.f32.mrb[0].mxu0
        %v673 = vadd.f32 0.0, %v672
        %v674 = vpop.f32.mrb[0].mxu0
        %675 = vmatprep.mubr.f32.mxu0 0.0
        %676 = vmatmul.mubr.f32.gmra.mrb[0].mxu0 %v438
        %v677 = vpop.f32.mrb[0].mxu0
        %v678 = vadd.f32 0.0, %v677
        %v679 = vpop.f32.mrb[0].mxu0
        %680 = vmatprep.mubr.f32.mxu0 0.0
        %681 = vmatmul.mubr.f32.gmra.mrb[0].mxu0 %v439
        %v682 = vpop.f32.mrb[0].mxu0
        %v683 = vadd.f32 0.0, %v682
        %v684 = vpop.f32.mrb[0].mxu0
        %685 = vmatprep.mubr.f32.mxu0 0.0
        %686 = vmatmul.mubr.f32.gmra.mrb[0].mxu0 %v440
        %v687 = vpop.f32.mrb[0].mxu0
        %v688 = vadd.f32 0.0, %v687
        %v689 = vpop.f32.mrb[0].mxu0
        %690 = vmatprep.mubr.f32.mxu0 0.0
        %691 = vmatmul.mubr.f32.gmra.mrb[0].mxu0 %v441
        %v692 = vpop.f32.mrb[0].mxu0
        %v693 = vadd.f32 0.0, %v692
        %v694 = vpop.f32.mrb[0].mxu0
        %695 = vmatprep.mubr.f32.mxu0 0.0
        %696 = vmatmul.mubr.f32.gmra.mrb[0].mxu0 %v442
        %v697 = vpop.f32.mrb[0].mxu0
        %v698 = vadd.f32 0.0, %v697
        %v699 = vpop.f32.mrb[0].mxu0
        %700 = vmatprep.mubr.f32.mxu0 0.0
        %701 = vmatmul.mubr.f32.gmra.mrb[0].mxu0 %v443
        %v702 = vpop.f32.mrb[0].mxu0
        %v703 = vadd.f32 0.0, %v702
        %v704 = vpop.f32.mrb[0].mxu0
        %705 = vmatprep.mubr.f32.mxu0 0.0
        %706 = vmatmul.mubr.f32.gmra.mrb[0].mxu0 %v444
        %v707 = vpop.f32.mrb[0].mxu0
        %v708 = vadd.f32 0.0, %v707
        %v709 = vpop.f32.mrb[0].mxu0
        %710 = vmatprep.mubr.f32.mxu0 0.0
        %711 = vmatmul.mubr.f32.gmra.mrb[0].mxu0 %v445
        %v712 = vpop.f32.mrb[0].mxu0
        %v713 = vadd.f32 0.0, %v712
        %v714 = vpop.f32.mrb[0].mxu0
        %715 = vmatprep.mubr.f32.mxu0 0.0
        %716 = vmatmul.mubr.f32.gmra.mrb[0].mxu0 %v446
        %v717 = vpop.f32.mrb[0].mxu0
        %v718 = vadd.f32 0.0, %v717
        %v719 = vpop.f32.mrb[0].mxu0
        %720 = vmatprep.mubr.f32.mxu0 0.0
        %721 = vmatmul.mubr.f32.gmra.mrb[0].mxu0 %v447
        %v722 = vpop.f32.mrb[0].mxu0
        %v723 = vadd.f32 0.0, %v722
        %v724 = vpop.f32.mrb[0].mxu0
        %725 = vmatprep.mubr.f32.mxu0 0.0
        %726 = vmatmul.mubr.f32.gmra.mrb[0].mxu0 %v448
        %v727 = vpop.f32.mrb[0].mxu0
        %v728 = vadd.f32 0.0, %v727
        %v729 = vpop.f32.mrb[0].mxu0
        %730 = vmatprep.mubr.f32.mxu0 0.0
        %731 = vmatmul.mubr.f32.gmra.mrb[0].mxu0 %v449
        %v732 = vpop.f32.mrb[0].mxu0
        %v733 = vadd.f32 0.0, %v732
        %v734 = vpop.f32.mrb[0].mxu0
        %735 = vmatprep.mubr.f32.mxu0 0.0
        %736 = vmatmul.mubr.f32.gmra.mrb[0].mxu0 %v450
        %v737 = vpop.f32.mrb[0].mxu0
        %v738 = vadd.f32 0.0, %v737
        %v739 = vpop.f32.mrb[0].mxu0
        %740 = vmatprep.mubr.f32.mxu0 0.0
        %741 = vmatmul.mubr.f32.gmra.mrb[0].mxu0 %v451
        %v742 = vpop.f32.mrb[0].mxu0
        %v743 = vadd.f32 0.0, %v742
        %v744 = vpop.f32.mrb[0].mxu0
        %745 = vmatprep.mubr.f32.mxu0 0.0
        %746 = vmatmul.mubr.f32.gmra.mrb[0].mxu0 %v452
        %v747 = vpop.f32.mrb[0].mxu0
        %v748 = vadd.f32 0.0, %v747
        %v749 = vpop.f32.mrb[0].mxu0
        %750 = vmatprep.mubr.f32.mxu0 0.0
        %751 = vmatmul.mubr.f32.gmra.mrb[0].mxu0 %v453
        %v752 = vpop.f32.mrb[0].mxu0
        %v753 = vadd.f32 0.0, %v752
        %v754 = vpop.f32.mrb[0].mxu0
        %755 = vmatprep.mubr.f32.mxu0 0.0
        %756 = vmatmul.mubr.f32.gmra.mrb[0].mxu0 %v454
        %v757 = vpop.f32.mrb[0].mxu0
        %v758 = vadd.f32 0.0, %v757
        %v759 = vpop.f32.mrb[0].mxu0
        %760 = vmatprep.mubr.f32.mxu0 0.0
        %761 = vmatmul.mubr.f32.gmra.mrb[0].mxu0 %v455
        %v762 = vpop.f32.mrb[0].mxu0
        %v763 = vadd.f32 0.0, %v762
        %v764 = vpop.f32.mrb[0].mxu0
        %765 = vmatprep.mubr.f32.mxu0 0.0
        %766 = vmatmul.mubr.f32.gmra.mrb[0].mxu0 %v456
        %v767 = vpop.f32.mrb[0].mxu0
        %v768 = vadd.f32 0.0, %v767
        %v769 = vpop.f32.mrb[0].mxu0
        %770 = vmatprep.mubr.f32.mxu0 0.0
        %771 = vmatmul.mubr.f32.gmra.mrb[0].mxu0 %v457
        %v772 = vpop.f32.mrb[0].mxu0
        %v773 = vadd.f32 0.0, %v772
        %v774 = vpop.f32.mrb[0].mxu0
        %775 = vmatprep.mubr.f32.mxu0 0.0
        %776 = vmatmul.mubr.f32.gmra.mrb[0].mxu0 %v458
        %v777 = vpop.f32.mrb[0].mxu0
        %v778 = vadd.f32 0.0, %v777
        %v779 = vpop.f32.mrb[0].mxu0
        %780 = vmatprep.mubr.f32.mxu0 0.0
        %781 = vmatmul.mubr.f32.gmra.mrb[0].mxu0 %v459
        %v782 = vpop.f32.mrb[0].mxu0
        %v783 = vadd.f32 0.0, %v782
        %v784 = vpop.f32.mrb[0].mxu0
        %785 = vmatprep.mubr.f32.mxu0 0.0
        %786 = vmatmul.mubr.f32.gmra.mrb[0].mxu0 %v460
        %v787 = vpop.f32.mrb[0].mxu0
        %v788 = vadd.f32 0.0, %v787
        %v789 = vpop.f32.mrb[0].mxu0
        %790 = vmatprep.mubr.f32.mxu0 0.0
        %791 = vmatmul.mubr.f32.gmra.mrb[0].mxu0 %v461
        %v792 = vpop.f32.mrb[0].mxu0
        %v793 = vadd.f32 0.0, %v792
        %v794 = vpop.f32.mrb[0].mxu0
        %795 = vmatprep.mubr.f32.mxu0 0.0
        %796 = vmatmul.mubr.f32.gmra.mrb[0].mxu0 %v462
        %v797 = vpop.f32.mrb[0].mxu0
        %v798 = vadd.f32 0.0, %v797
        %v799 = vpop.f32.mrb[0].mxu0
        %800 = vmatprep.mubr.f32.mxu0 0.0
        %801 = vmatmul.mubr.f32.gmra.mrb[0].mxu0 %v463
        %v802 = vpop.f32.mrb[0].mxu0
        %v803 = vadd.f32 0.0, %v802
        %v804 = vpop.f32.mrb[0].mxu0
        %805 = vmatprep.mubr.f32.mxu0 0.0
        %806 = vmatmul.mubr.f32.gmra.mrb[0].mxu0 %v464
        %v807 = vpop.f32.mrb[0].mxu0
        %v808 = vadd.f32 0.0, %v807
        %v809 = vpop.f32.mrb[0].mxu0
        %810 = vmatprep.mubr.f32.mxu0 0.0
        %811 = vmatmul.mubr.f32.gmra.mrb[0].mxu0 %v465
        %v812 = vpop.f32.mrb[0].mxu0
        %v813 = vadd.f32 0.0, %v812
        %v814 = vpop.f32.mrb[0].mxu0
        %815 = vmatprep.mubr.f32.mxu0 0.0
        %816 = vmatmul.mubr.f32.gmra.mrb[0].mxu0 %v466
        %v817 = vpop.f32.mrb[0].mxu0
        %v818 = vadd.f32 0.0, %v817
        %v819 = vpop.f32.mrb[0].mxu0
        %820 = vmatprep.mubr.f32.mxu0 0.0
        %821 = vmatmul.mubr.f32.gmra.mrb[0].mxu0 %v467
        %v822 = vpop.f32.mrb[0].mxu0
        %v823 = vadd.f32 0.0, %v822
        %v824 = vpop.f32.mrb[0].mxu0
        %825 = vmatprep.mubr.f32.mxu0 0.0
        %826 = vmatmul.mubr.f32.gmra.mrb[0].mxu0 %v468
        %v827 = vpop.f32.mrb[0].mxu0
        %v828 = vadd.f32 0.0, %v827
        %v829 = vpop.f32.mrb[0].mxu0
        %830 = vmatprep.mubr.f32.mxu0 0.0
        %831 = vmatmul.mubr.f32.gmra.mrb[0].mxu0 %v469
        %v832 = vpop.f32.mrb[0].mxu0
        %v833 = vadd.f32 0.0, %v832
        %v834 = vpop.f32.mrb[0].mxu0
        %835 = vmatprep.mubr.f32.mxu0 0.0
        %836 = vmatmul.mubr.f32.gmra.mrb[0].mxu0 %v470
        %v837 = vpop.f32.mrb[0].mxu0
        %v838 = vadd.f32 0.0, %v837
        %v839 = vpop.f32.mrb[0].mxu0
        %840 = vmatprep.mubr.f32.mxu0 0.0
        %841 = vmatmul.mubr.f32.gmra.mrb[0].mxu0 %v471
        %v842 = vpop.f32.mrb[0].mxu0
        %v843 = vadd.f32 0.0, %v842
        %v844 = vpop.f32.mrb[0].mxu0
        %845 = vmatprep.mubr.f32.mxu0 0.0
        %846 = vmatmul.mubr.f32.gmra.mrb[0].mxu0 %v472
        %v847 = vpop.f32.mrb[0].mxu0
        %v848 = vadd.f32 0.0, %v847
        %v849 = vpop.f32.mrb[0].mxu0
        %850 = vmatprep.mubr.f32.mxu0 0.0
        %851 = vmatmul.mubr.f32.gmra.mrb[0].mxu0 %v473
        %v852 = vpop.f32.mrb[0].mxu0
        %v853 = vadd.f32 0.0, %v852
        %v854 = vpop.f32.mrb[0].mxu0
        %855 = vmatprep.mubr.f32.mxu0 0.0
        %856 = vmatmul.mubr.f32.gmra.mrb[0].mxu0 %v474
        %v857 = vpop.f32.mrb[0].mxu0
        %v858 = vadd.f32 0.0, %v857
        %v859 = vpop.f32.mrb[0].mxu0
        %860 = vmatprep.mubr.f32.mxu0 0.0
        %861 = vmatmul.mubr.f32.gmra.mrb[0].mxu0 %v475
        %v862 = vpop.f32.mrb[0].mxu0
        %v863 = vadd.f32 0.0, %v862
        %v864 = vpop.f32.mrb[0].mxu0
        %865 = vmatprep.mubr.f32.mxu0 0.0
        %866 = vmatmul.mubr.f32.gmra.mrb[0].mxu0 %v476
        %v867 = vpop.f32.mrb[0].mxu0
        %v868 = vadd.f32 0.0, %v867
        %v869 = vpop.f32.mrb[0].mxu0
        %870 = vmatprep.mubr.f32.mxu0 0.0
        %871 = vmatmul.mubr.f32.gmra.mrb[0].mxu0 %v477
        %v872 = vpop.f32.mrb[0].mxu0
        %v873 = vadd.f32 0.0, %v872
        %v874 = vpop.f32.mrb[0].mxu0
        %875 = vmatprep.mubr.f32.mxu0 0.0
        %876 = vmatmul.mubr.f32.gmra.mrb[0].mxu0 %v478
        %v877 = vpop.f32.mrb[0].mxu0
        %v878 = vadd.f32 0.0, %v877
        %v879 = vpop.f32.mrb[0].mxu0
        %880 = vmatprep.mubr.f32.mxu0 0.0
        %881 = vmatmul.mubr.f32.gmra.mrb[0].mxu0 %v479
        %v882 = vpop.f32.mrb[0].mxu0
        %v883 = vadd.f32 0.0, %v882
        %v884 = vpop.f32.mrb[0].mxu0
        %885 = vmatprep.mubr.f32.mxu0 0.0
        %886 = vmatmul.mubr.f32.gmra.mrb[0].mxu0 %v480
        %v887 = vpop.f32.mrb[0].mxu0
        %v888 = vadd.f32 0.0, %v887
        %v889 = vpop.f32.mrb[0].mxu0
        %890 = vmatprep.mubr.f32.mxu0 0.0
        %891 = vmatmul.mubr.f32.gmra.mrb[0].mxu0 %v481
        %v892 = vpop.f32.mrb[0].mxu0
        %v893 = vadd.f32 0.0, %v892
        %v894 = vpop.f32.mrb[0].mxu0
        %895 = vmatprep.mubr.f32.mxu0 0.0
        %896 = vmatmul.mubr.f32.gmra.mrb[0].mxu0 %v482
        %v897 = vpop.f32.mrb[0].mxu0
        %v898 = vadd.f32 0.0, %v897
        %v899 = vpop.f32.mrb[0].mxu0
        %900 = vmatprep.mubr.f32.mxu0 0.0
        %901 = vmatmul.mubr.f32.gmra.mrb[0].mxu0 %v483
        %v902 = vpop.f32.mrb[0].mxu0
        %v903 = vadd.f32 0.0, %v902
        %v904 = vpop.f32.mrb[0].mxu0
        %905 = vmatprep.mubr.f32.mxu0 0.0
        %906 = vmatmul.mubr.f32.gmra.mrb[0].mxu0 %v484
        %v907 = vpop.f32.mrb[0].mxu0
        %v908 = vadd.f32 0.0, %v907
        %v909 = vpop.f32.mrb[0].mxu0
        %910 = vmatprep.mubr.f32.mxu0 0.0
        %911 = vmatmul.mubr.f32.gmra.mrb[0].mxu0 %v485
        %v912 = vpop.f32.mrb[0].mxu0
        %v913 = vadd.f32 0.0, %v912
        %v914 = vpop.f32.mrb[0].mxu0
        %915 = vmatprep.mubr.f32.mxu0 0.0
        %916 = vmatmul.mubr.f32.gmra.mrb[0].mxu0 %v486
        %v917 = vpop.f32.mrb[0].mxu0
        %v918 = vadd.f32 0.0, %v917
        %v919 = vpop.f32.mrb[0].mxu0
        %920 = vmatprep.mubr.f32.mxu0 0.0
        %921 = vmatmul.mubr.f32.gmra.mrb[0].mxu0 %v487
        %v922 = vpop.f32.mrb[0].mxu0
        %v923 = vadd.f32 0.0, %v922
        %v924 = vpop.f32.mrb[0].mxu0
        %925 = vmatprep.mubr.f32.mxu0 0.0
        %926 = vmatmul.mubr.f32.gmra.mrb[0].mxu0 %v488
        %v927 = vpop.f32.mrb[0].mxu0
        %v928 = vadd.f32 0.0, %v927
        %v929 = vpop.f32.mrb[0].mxu0
        %930 = vmatprep.mubr.f32.mxu0 0.0
        %931 = vmatmul.mubr.f32.gmra.mrb[0].mxu0 %v489
        %v932 = vpop.f32.mrb[0].mxu0
        %v933 = vadd.f32 0.0, %v932
        %v934 = vpop.f32.mrb[0].mxu0
        %935 = vmatprep.mubr.f32.mxu0 0.0
        %936 = vmatmul.mubr.f32.gmra.mrb[0].mxu0 %v490
        %v937 = vpop.f32.mrb[0].mxu0
        %v938 = vadd.f32 0.0, %v937
        %v939 = vpop.f32.mrb[0].mxu0
        %940 = vmatprep.mubr.f32.mxu0 0.0
        %941 = vmatmul.mubr.f32.gmra.mrb[0].mxu0 %v491
        %v942 = vpop.f32.mrb[0].mxu0
        %v943 = vadd.f32 0.0, %v942
        %v944 = vpop.f32.mrb[0].mxu0
        %945 = vmatprep.mubr.f32.mxu0 0.0
        %946 = vmatmul.mubr.f32.gmra.mrb[0].mxu0 %v492
        %v947 = vpop.f32.mrb[0].mxu0
        %v948 = vadd.f32 0.0, %v947
        %v949 = vpop.f32.mrb[0].mxu0
        %950 = vmatprep.mubr.f32.mxu0 0.0
        %951 = vmatmul.mubr.f32.gmra.mrb[0].mxu0 %v493
        %v952 = vpop.f32.mrb[0].mxu0
        %v953 = vadd.f32 0.0, %v952
        %v954 = vpop.f32.mrb[0].mxu0
        %955 = vmatprep.mubr.f32.mxu0 0.0
        %956 = vmatmul.mubr.f32.gmra.mrb[0].mxu0 %v494
        %v957 = vpop.f32.mrb[0].mxu0
        %v958 = vadd.f32 0.0, %v957
        %v959 = vpop.f32.mrb[0].mxu0
        %960 = vmatprep.mubr.f32.mxu0 0.0
        %961 = vmatmul.mubr.f32.gmra.mrb[0].mxu0 %v495
        %v962 = vpop.f32.mrb[0].mxu0
        %v963 = vadd.f32 0.0, %v962
        %v964 = vpop.f32.mrb[0].mxu0
        %965 = vmatprep.mubr.f32.mxu0 0.0
        %966 = vmatmul.mubr.f32.gmra.mrb[0].mxu0 %v496
        %v967 = vpop.f32.mrb[0].mxu0
        %v968 = vadd.f32 0.0, %v967
        %v969 = vpop.f32.mrb[0].mxu0
        %970 = vmatprep.mubr.f32.mxu0 0.0
        %971 = vmatmul.mubr.f32.gmra.mrb[0].mxu0 %v497
        %v972 = vpop.f32.mrb[0].mxu0
        %v973 = vadd.f32 0.0, %v972
        %v974 = vpop.f32.mrb[0].mxu0
        %975 = vmatprep.mubr.f32.mxu0 0.0
        %976 = vmatmul.mubr.f32.gmra.mrb[0].mxu0 %v498
        %v977 = vpop.f32.mrb[0].mxu0
        %v978 = vadd.f32 0.0, %v977
        %v979 = vpop.f32.mrb[0].mxu0
        %980 = vmatprep.mubr.f32.mxu0 0.0
        %981 = vmatmul.mubr.f32.gmra.mrb[0].mxu0 %v499
        %v982 = vpop.f32.mrb[0].mxu0
        %v983 = vadd.f32 0.0, %v982
        %v984 = vpop.f32.mrb[0].mxu0
        %985 = vmatprep.mubr.f32.mxu0 0.0
        %986 = vmatmul.mubr.f32.gmra.mrb[0].mxu0 %v500
        %v987 = vpop.f32.mrb[0].mxu0
        %v988 = vadd.f32 0.0, %v987
        %v989 = vpop.f32.mrb[0].mxu0
        %990 = vmatprep.mubr.f32.mxu0 0.0
        %991 = vmatmul.mubr.f32.gmra.mrb[0].mxu0 %v501
        %v992 = vpop.f32.mrb[0].mxu0
        %v993 = vadd.f32 0.0, %v992
        %v994 = vpop.f32.mrb[0].mxu0
        %995 = vmatprep.mubr.f32.mxu0 0.0
        %996 = vmatmul.mubr.f32.gmra.mrb[0].mxu0 %v502
        %v997 = vpop.f32.mrb[0].mxu0
        %v998 = vadd.f32 0.0, %v997
        %v999 = vpop.f32.mrb[0].mxu0
        %1000 = vmatprep.mubr.f32.mxu0 0.0
        %1001 = vmatmul.mubr.f32.gmra.mrb[0].mxu0 %v503
        %v1002 = vpop.f32.mrb[0].mxu0
        %v1003 = vadd.f32 0.0, %v1002
        %v1004 = vpop.f32.mrb[0].mxu0
        %1005 = vmatprep.mubr.f32.mxu0 0.0
        %1006 = vmatmul.mubr.f32.gmra.mrb[0].mxu0 %v504
        %v1007 = vpop.f32.mrb[0].mxu0
        %v1008 = vadd.f32 0.0, %v1007
        %v1009 = vpop.f32.mrb[0].mxu0
        %1010 = vmatprep.mubr.f32.mxu0 0.0
        %1011 = vmatmul.mubr.f32.gmra.mrb[0].mxu0 %v505
        %v1012 = vpop.f32.mrb[0].mxu0
        %v1013 = vadd.f32 0.0, %v1012
        %v1014 = vpop.f32.mrb[0].mxu0
        %1015 = vmatprep.mubr.f32.mxu0 0.0
        %1016 = vmatmul.mubr.f32.gmra.mrb[0].mxu0 %v506
        %v1017 = vpop.f32.mrb[0].mxu0
        %v1018 = vadd.f32 0.0, %v1017
        %v1019 = vpop.f32.mrb[0].mxu0
        %1020 = vmatprep.mubr.f32.mxu0 0.0
        %1021 = vmatmul.mubr.f32.gmra.mrb[0].mxu0 %v507
        %v1022 = vpop.f32.mrb[0].mxu0
        %v1023 = vadd.f32 0.0, %v1022
        %v1024 = vpop.f32.mrb[0].mxu0
        %1025 = vmatprep.mubr.f32.mxu0 0.0
        %1026 = vmatmul.mubr.f32.gmra.mrb[0].mxu0 %v508
        %v1027 = vpop.f32.mrb[0].mxu0
        %v1028 = vadd.f32 0.0, %v1027
        %v1029 = vpop.f32.mrb[0].mxu0
        %1030 = vmatprep.mubr.f32.mxu0 0.0
        %1031 = vmatmul.mubr.f32.gmra.mrb[0].mxu0 %v509
        %v1032 = vpop.f32.mrb[0].mxu0
        %v1033 = vadd.f32 0.0, %v1032
        %v1034 = vpop.f32.mrb[0].mxu0
        %1035 = vmatprep.mubr.f32.mxu0 0.0
        %1036 = vmatmul.mubr.f32.gmra.mrb[0].mxu0 %v510
        %v1037 = vpop.f32.mrb[0].mxu0
        %v1038 = vadd.f32 0.0, %v1037
        %v1039 = vpop.f32.mrb[0].mxu0
        %1040 = vmatprep.mubr.f32.mxu0 0.0
        %1041 = vmatmul.mubr.f32.gmra.mrb[0].mxu0 %v511
        %v1042 = vpop.f32.mrb[0].mxu0
        %v1043 = vadd.f32 0.0, %v1042
        %v1044 = vpop.f32.mrb[0].mxu0
        %1045 = vmatprep.mubr.f32.mxu0 0.0
        %1046 = vmatmul.mubr.f32.gmra.mrb[0].mxu0 %v512
        %v1047 = vpop.f32.mrb[0].mxu0
        %v1048 = vadd.f32 0.0, %v1047
        %v1049 = vpop.f32.mrb[0].mxu0
        %1050 = vmatprep.mubr.f32.mxu0 0.0
        %1051 = vmatmul.mubr.f32.gmra.mrb[0].mxu0 %v513
        %v1052 = vpop.f32.mrb[0].mxu0
        %v1053 = vadd.f32 0.0, %v1052
        %v1054 = vpop.f32.mrb[0].mxu0
        %1055 = vmatprep.mubr.f32.mxu0 0.0
        %1056 = vmatmul.mubr.f32.gmra.mrb[0].mxu0 %v514
        %v1057 = vpop.f32.mrb[0].mxu0
        %v1058 = vadd.f32 0.0, %v1057
        %v1059 = vpop.f32.mrb[0].mxu0
        %1060 = vmatprep.mubr.f32.mxu0 0.0
        %1061 = vmatmul.mubr.f32.gmra.mrb[0].mxu0 %v515
        %v1062 = vpop.f32.mrb[0].mxu0
        %v1063 = vadd.f32 0.0, %v1062
        %v1064 = vpop.f32.mrb[0].mxu0
        %1065 = vmatprep.mubr.f32.mxu0 0.0
        %1066 = vmatmul.mubr.f32.gmra.mrb[0].mxu0 %v516
        %v1067 = vpop.f32.mrb[0].mxu0
        %v1068 = vadd.f32 0.0, %v1067
        %v1069 = vpop.f32.mrb[0].mxu0
        %1070 = vmatprep.mubr.f32.mxu0 0.0
        %1071 = vmatmul.mubr.f32.gmra.mrb[0].mxu0 %v517
        %v1072 = vpop.f32.mrb[0].mxu0
        %v1073 = vadd.f32 0.0, %v1072
        %v1074 = vpop.f32.mrb[0].mxu0
        %1075 = vmatprep.mubr.f32.mxu0 0.0
        %1076 = vmatmul.mubr.f32.gmra.mrb[0].mxu0 %v518
        %v1077 = vpop.f32.mrb[0].mxu0
        %v1078 = vadd.f32 0.0, %v1077
        %v1079 = vpop.f32.mrb[0].mxu0
        %1080 = vmatprep.mubr.f32.mxu0 0.0
        %1081 = vmatmul.mubr.f32.gmra.mrb[0].mxu0 %v519
        %v1082 = vpop.f32.mrb[0].mxu0
        %v1083 = vadd.f32 0.0, %v1082
        %v1084 = vpop.f32.mrb[0].mxu0
        %1085 = vmatprep.mubr.f32.mxu0 0.0
        %1086 = vmatmul.mubr.f32.gmra.mrb[0].mxu0 %v520
        %v1087 = vpop.f32.mrb[0].mxu0
        %v1088 = vadd.f32 0.0, %v1087
        %v1089 = vpop.f32.mrb[0].mxu0
        %1090 = vmatprep.mubr.f32.mxu0 0.0
        %1091 = vmatmul.mubr.f32.gmra.mrb[0].mxu0 %v521
        %v1092 = vpop.f32.mrb[0].mxu0
        %v1093 = vadd.f32 0.0, %v1092
        %v1094 = vpop.f32.mrb[0].mxu0
        %1095 = vmatprep.mubr.f32.mxu0 0.0
        %1096 = vmatmul.mubr.f32.gmra.mrb[0].mxu0 %v522
        %v1097 = vpop.f32.mrb[0].mxu0
        %v1098 = vadd.f32 0.0, %v1097
        %v1099 = vpop.f32.mrb[0].mxu0
        %1100 = vmatprep.mubr.f32.mxu0 0.0
        %1101 = vmatmul.mubr.f32.gmra.mrb[0].mxu0 %v523
        %v1102 = vpop.f32.mrb[0].mxu0
        %v1103 = vadd.f32 0.0, %v1102
        %v1104 = vpop.f32.mrb[0].mxu0
        %1105 = vmatprep.mubr.f32.mxu0 0.0
        %1106 = vmatmul.mubr.f32.gmra.mrb[0].mxu0 %v524
        %v1107 = vpop.f32.mrb[0].mxu0
        %v1108 = vadd.f32 0.0, %v1107
        %v1109 = vpop.f32.mrb[0].mxu0
        %1110 = vmatprep.mubr.f32.mxu0 0.0
        %1111 = vmatmul.mubr.f32.gmra.mrb[0].mxu0 %v525
        %v1112 = vpop.f32.mrb[0].mxu0
        %v1113 = vadd.f32 0.0, %v1112
        %v1114 = vpop.f32.mrb[0].mxu0
        %1115 = vmatprep.mubr.f32.mxu0 0.0
        %1116 = vmatmul.mubr.f32.gmra.mrb[0].mxu0 %v526
        %v1117 = vpop.f32.mrb[0].mxu0
        %v1118 = vadd.f32 0.0, %v1117
        %v1119 = vpop.f32.mrb[0].mxu0
        %1120 = vmatprep.mubr.f32.mxu0 0.0
        %1121 = vmatmul.mubr.f32.gmra.mrb[0].mxu0 %v527
        %v1122 = vpop.f32.mrb[0].mxu0
        %v1123 = vadd.f32 0.0, %v1122
        %v1124 = vpop.f32.mrb[0].mxu0
        %1125 = vmatprep.mubr.f32.mxu0 0.0
        %1126 = vmatmul.mubr.f32.gmra.mrb[0].mxu0 %v528
        %v1127 = vpop.f32.mrb[0].mxu0
        %v1128 = vadd.f32 0.0, %v1127
        %v1129 = vpop.f32.mrb[0].mxu0
        %1130 = vmatprep.mubr.f32.mxu0 0.0
        %1131 = vmatmul.mubr.f32.gmra.mrb[0].mxu0 %v529
        %v1132 = vpop.f32.mrb[0].mxu0
        %v1133 = vadd.f32 0.0, %v1132
        %v1134 = vpop.f32.mrb[0].mxu0
        %1135 = vmatprep.mubr.f32.mxu0 0.0
        %1136 = vmatmul.mubr.f32.gmra.mrb[0].mxu0 %v530
        %v1137 = vpop.f32.mrb[0].mxu0
        %v1138 = vadd.f32 0.0, %v1137
        %v1139 = vpop.f32.mrb[0].mxu0
        %1140 = vmatprep.mubr.f32.mxu0 0.0
        %1141 = vmatmul.mubr.f32.gmra.mrb[0].mxu0 %v531
        %v1142 = vpop.f32.mrb[0].mxu0
        %v1143 = vadd.f32 0.0, %v1142
        %v1144 = vpop.f32.mrb[0].mxu0
        %1145 = vmatprep.mubr.f32.mxu0 0.0
        %1146 = vmatmul.mubr.f32.gmra.mrb[0].mxu0 %v532
        %v1147 = vpop.f32.mrb[0].mxu0
        %v1148 = vadd.f32 0.0, %v1147
        %v1149 = vpop.f32.mrb[0].mxu0
        %1150 = vmatprep.mubr.f32.mxu0 0.0
        %1151 = vmatmul.mubr.f32.gmra.mrb[0].mxu0 %v533
        %v1152 = vpop.f32.mrb[0].mxu0
        %v1153 = vadd.f32 0.0, %v1152
        %v1154 = vpop.f32.mrb[0].mxu0
        %1155 = vmatprep.mubr.f32.mxu0 0.0
        %1156 = vmatmul.mubr.f32.gmra.mrb[0].mxu0 %v534
        %v1157 = vpop.f32.mrb[0].mxu0
        %v1158 = vadd.f32 0.0, %v1157
        %v1159 = vpop.f32.mrb[0].mxu0
        %1160 = vmatprep.mubr.f32.mxu0 0.0
        %1161 = vmatmul.mubr.f32.gmra.mrb[0].mxu0 %v535
        %v1162 = vpop.f32.mrb[0].mxu0
        %v1163 = vadd.f32 0.0, %v1162
        %v1164 = vpop.f32.mrb[0].mxu0
        %1165 = vmatprep.mubr.f32.mxu0 0.0
        %1166 = vmatmul.mubr.f32.gmra.mrb[0].mxu0 %v536
        %v1167 = vpop.f32.mrb[0].mxu0
        %v1168 = vadd.f32 0.0, %v1167
        %v1169 = vpop.f32.mrb[0].mxu0
        %1170 = vmatprep.mubr.f32.mxu0 0.0
        %1171 = vmatmul.mubr.f32.gmra.mrb[0].mxu0 %v537
        %v1172 = vpop.f32.mrb[0].mxu0
        %v1173 = vadd.f32 0.0, %v1172
        %v1174 = vpop.f32.mrb[0].mxu0
        %1175 = vmatprep.mubr.f32.mxu0 0.0
        %1176 = vmatmul.mubr.f32.gmra.mrb[0].mxu0 %v538
        %v1177 = vpop.f32.mrb[0].mxu0
        %v1178 = vadd.f32 0.0, %v1177
        %v1179 = vpop.f32.mrb[0].mxu0
        %1180 = vmatprep.mubr.f32.mxu0 0.0
        %1181 = vmatmul.mubr.f32.gmra.mrb[0].mxu0 %v539
        %v1182 = vpop.f32.mrb[0].mxu0
        %v1183 = vadd.f32 0.0, %v1182
        %v1184 = vpop.f32.mrb[0].mxu0
        %1185 = vmatprep.mubr.f32.mxu0 0.0
        %1186 = vmatmul.mubr.f32.gmra.mrb[0].mxu0 %v540
        %v1187 = vpop.f32.mrb[0].mxu0
        %v1188 = vadd.f32 0.0, %v1187
        %v1189 = vpop.f32.mrb[0].mxu0
        %1190 = vmatprep.mubr.f32.mxu0 0.0
        %1191 = vmatmul.mubr.f32.gmra.mrb[0].mxu0 %v541
        %v1192 = vpop.f32.mrb[0].mxu0
        %v1193 = vadd.f32 0.0, %v1192
        %v1194 = vpop.f32.mrb[0].mxu0
        %1195 = vmatprep.mubr.f32.mxu0 0.0
        %1196 = vmatmul.mubr.f32.gmra.mrb[0].mxu0 %v542
        %v1197 = vpop.f32.mrb[0].mxu0
        %v1198 = vadd.f32 0.0, %v1197
        %v1199 = vpop.f32.mrb[0].mxu0
        %1200 = vmatprep.mubr.f32.mxu0 0.0
        %1201 = vmatmul.mubr.f32.gmra.mrb[0].mxu0 %v543
        %v1202 = vpop.f32.mrb[0].mxu0
        %v1203 = vadd.f32 0.0, %v1202
        %v1204 = vpop.f32.mrb[0].mxu0
        %1205 = vmatprep.mubr.f32.mxu0 0.0
        %1206 = vmatmul.mubr.f32.gmra.mrb[0].mxu0 %v544
        %v1207 = vpop.f32.mrb[0].mxu0
        %v1208 = vadd.f32 0.0, %v1207
        %v1209 = vpop.f32.mrb[0].mxu0
        %1210 = vmatprep.mubr.f32.mxu0 0.0
        %1211 = vmatmul.mubr.f32.gmra.mrb[0].mxu0 %v545
        %v1212 = vpop.f32.mrb[0].mxu0
        %v1213 = vadd.f32 0.0, %v1212
        %v1214 = vpop.f32.mrb[0].mxu0
        %1215 = vmatprep.mubr.f32.mxu0 0.0
        %1216 = vmatmul.mubr.f32.gmra.mrb[0].mxu0 %v546
        %v1217 = vpop.f32.mrb[0].mxu0
        %v1218 = vadd.f32 0.0, %v1217
        %v1219 = vpop.f32.mrb[0].mxu0
        %1220 = vmatprep.mubr.f32.mxu0 0.0
        %1221 = vmatmul.mubr.f32.gmra.mrb[0].mxu0 %v547
        %v1222 = vpop.f32.mrb[0].mxu0
        %v1223 = vadd.f32 0.0, %v1222
        %v1224 = vpop.f32.mrb[0].mxu0
        %1225 = vmatprep.mubr.f32.mxu0 0.0
        %1226 = vmatmul.mubr.f32.gmra.mrb[0].mxu0 %v548
        %v1227 = vpop.f32.mrb[0].mxu0
        %v1228 = vadd.f32 0.0, %v1227
        %v1229 = vpop.f32.mrb[0].mxu0
        %1230 = vmatprep.mubr.f32.mxu0 0.0
        %1231 = vmatmul.mubr.f32.gmra.mrb[0].mxu0 %v549
        %v1232 = vpop.f32.mrb[0].mxu0
        %v1233 = vadd.f32 0.0, %v1232
        %v1234 = vpop.f32.mrb[0].mxu0
        %1235 = vmatprep.mubr.f32.mxu0 0.0
        %1236 = vmatmul.mubr.f32.gmra.mrb[0].mxu0 %v550
        %v1237 = vpop.f32.mrb[0].mxu0
        %v1238 = vadd.f32 0.0, %v1237
        %v1239 = vpop.f32.mrb[0].mxu0
        %1240 = vmatprep.mubr.f32.mxu0 0.0
        %1241 = vmatmul.mubr.f32.gmra.mrb[0].mxu0 %v551
        %v1242 = vpop.f32.mrb[0].mxu0
        %v1243 = vadd.f32 0.0, %v1242
        %v1244 = vpop.f32.mrb[0].mxu0
        %1245 = vmatprep.mubr.f32.mxu0 0.0
        %1246 = vmatmul.mubr.f32.gmra.mrb[0].mxu0 %v552
        %v1247 = vpop.f32.mrb[0].mxu0
        %v1248 = vadd.f32 0.0, %v1247
        %v1249 = vpop.f32.mrb[0].mxu0
        %1250 = vmatprep.mubr.f32.mxu0 0.0
        %1251 = vmatmul.mubr.f32.gmra.mrb[0].mxu0 %v553
        %v1252 = vpop.f32.mrb[0].mxu0
        %v1253 = vadd.f32 0.0, %v1252
        %v1254 = vpop.f32.mrb[0].mxu0
        %1255 = vmatprep.mubr.f32.mxu0 0.0
        %1256 = vmatmul.mubr.f32.gmra.mrb[0].mxu0 %v554
        %v1257 = vpop.f32.mrb[0].mxu0
        %v1258 = vadd.f32 0.0, %v1257
        %v1259 = vpop.f32.mrb[0].mxu0
        %1260 = vmatprep.mubr.f32.mxu0 0.0
        %1261 = vmatmul.mubr.f32.gmra.mrb[0].mxu0 %v555
        %v1262 = vpop.f32.mrb[0].mxu0
        %v1263 = vadd.f32 0.0, %v1262
        %v1264 = vpop.f32.mrb[0].mxu0
        %1265 = vmatprep.mubr.f32.mxu0 0.0
        %1266 = vmatmul.mubr.f32.gmra.mrb[0].mxu0 %v556
        %v1267 = vpop.f32.mrb[0].mxu0
        %v1268 = vadd.f32 0.0, %v1267
        %v1269 = vpop.f32.mrb[0].mxu0
        %1270 = vmatprep.mubr.f32.mxu0 0.0
        %1271 = vmatmul.mubr.f32.gmra.mrb[0].mxu0 %v557
        %v1272 = vpop.f32.mrb[0].mxu0
        %v1273 = vadd.f32 0.0, %v1272
        %v1274 = vpop.f32.mrb[0].mxu0
        %1275 = vmatprep.mubr.f32.mxu0 0.0
        %1276 = vmatmul.mubr.f32.gmra.mrb[0].mxu0 %v558
        %v1277 = vpop.f32.mrb[0].mxu0
        %v1278 = vadd.f32 0.0, %v1277
        %v1279 = vpop.f32.mrb[0].mxu0
        %1280 = vdwg.mxu0
        %v1281 = vld [vmem:[%s3] sm:$0x1]
        %v1283 = vlaneseq
        %v1284 = vshrl.u32 %v1283, 7
        %v1285 = vsub.s32 0, %v1284
        %v1286 = vrot.slane %v1281, %v1285
        %v1288 = vadd.f32 %v643, %v1286
        %v1289 = vadd.f32 %v648, %v1286
        %v1290 = vadd.f32 %v653, %v1286
        %v1291 = vadd.f32 %v658, %v1286
        %v1292 = vadd.f32 %v663, %v1286
        %v1293 = vadd.f32 %v668, %v1286
        %v1294 = vadd.f32 %v673, %v1286
        %v1295 = vadd.f32 %v678, %v1286
        %v1296 = vadd.f32 %v683, %v1286
        %v1297 = vadd.f32 %v688, %v1286
        %v1298 = vadd.f32 %v693, %v1286
        %v1299 = vadd.f32 %v698, %v1286
        %v1300 = vadd.f32 %v703, %v1286
        %v1301 = vadd.f32 %v708, %v1286
        %v1302 = vadd.f32 %v713, %v1286
        %v1303 = vadd.f32 %v718, %v1286
        %v1304 = vadd.f32 %v723, %v1286
        %v1305 = vadd.f32 %v728, %v1286
        %v1306 = vadd.f32 %v733, %v1286
        %v1307 = vadd.f32 %v738, %v1286
        %v1308 = vadd.f32 %v743, %v1286
        %v1309 = vadd.f32 %v748, %v1286
        %v1310 = vadd.f32 %v753, %v1286
        %v1311 = vadd.f32 %v758, %v1286
        %v1312 = vadd.f32 %v763, %v1286
        %v1313 = vadd.f32 %v768, %v1286
        %v1314 = vadd.f32 %v773, %v1286
        %v1315 = vadd.f32 %v778, %v1286
        %v1316 = vadd.f32 %v783, %v1286
        %v1317 = vadd.f32 %v788, %v1286
        %v1318 = vadd.f32 %v793, %v1286
        %v1319 = vadd.f32 %v798, %v1286
        %v1320 = vadd.f32 %v803, %v1286
        %v1321 = vadd.f32 %v808, %v1286
        %v1322 = vadd.f32 %v813, %v1286
        %v1323 = vadd.f32 %v818, %v1286
        %v1324 = vadd.f32 %v823, %v1286
        %v1325 = vadd.f32 %v828, %v1286
        %v1326 = vadd.f32 %v833, %v1286
        %v1327 = vadd.f32 %v838, %v1286
        %v1328 = vadd.f32 %v843, %v1286
        %v1329 = vadd.f32 %v848, %v1286
        %v1330 = vadd.f32 %v853, %v1286
        %v1331 = vadd.f32 %v858, %v1286
        %v1332 = vadd.f32 %v863, %v1286
        %v1333 = vadd.f32 %v868, %v1286
        %v1334 = vadd.f32 %v873, %v1286
        %v1335 = vadd.f32 %v878, %v1286
        %v1336 = vadd.f32 %v883, %v1286
        %v1337 = vadd.f32 %v888, %v1286
        %v1338 = vadd.f32 %v893, %v1286
        %v1339 = vadd.f32 %v898, %v1286
        %v1340 = vadd.f32 %v903, %v1286
        %v1341 = vadd.f32 %v908, %v1286
        %v1342 = vadd.f32 %v913, %v1286
        %v1343 = vadd.f32 %v918, %v1286
        %v1344 = vadd.f32 %v923, %v1286
        %v1345 = vadd.f32 %v928, %v1286
        %v1346 = vadd.f32 %v933, %v1286
        %v1347 = vadd.f32 %v938, %v1286
        %v1348 = vadd.f32 %v943, %v1286
        %v1349 = vadd.f32 %v948, %v1286
        %v1350 = vadd.f32 %v953, %v1286
        %v1351 = vadd.f32 %v958, %v1286
        %v1352 = vadd.f32 %v963, %v1286
        %v1353 = vadd.f32 %v968, %v1286
        %v1354 = vadd.f32 %v973, %v1286
        %v1355 = vadd.f32 %v978, %v1286
        %v1356 = vadd.f32 %v983, %v1286
        %v1357 = vadd.f32 %v988, %v1286
        %v1358 = vadd.f32 %v993, %v1286
        %v1359 = vadd.f32 %v998, %v1286
        %v1360 = vadd.f32 %v1003, %v1286
        %v1361 = vadd.f32 %v1008, %v1286
        %v1362 = vadd.f32 %v1013, %v1286
        %v1363 = vadd.f32 %v1018, %v1286
        %v1364 = vadd.f32 %v1023, %v1286
        %v1365 = vadd.f32 %v1028, %v1286
        %v1366 = vadd.f32 %v1033, %v1286
        %v1367 = vadd.f32 %v1038, %v1286
        %v1368 = vadd.f32 %v1043, %v1286
        %v1369 = vadd.f32 %v1048, %v1286
        %v1370 = vadd.f32 %v1053, %v1286
        %v1371 = vadd.f32 %v1058, %v1286
        %v1372 = vadd.f32 %v1063, %v1286
        %v1373 = vadd.f32 %v1068, %v1286
        %v1374 = vadd.f32 %v1073, %v1286
        %v1375 = vadd.f32 %v1078, %v1286
        %v1376 = vadd.f32 %v1083, %v1286
        %v1377 = vadd.f32 %v1088, %v1286
        %v1378 = vadd.f32 %v1093, %v1286
        %v1379 = vadd.f32 %v1098, %v1286
        %v1380 = vadd.f32 %v1103, %v1286
        %v1381 = vadd.f32 %v1108, %v1286
        %v1382 = vadd.f32 %v1113, %v1286
        %v1383 = vadd.f32 %v1118, %v1286
        %v1384 = vadd.f32 %v1123, %v1286
        %v1385 = vadd.f32 %v1128, %v1286
        %v1386 = vadd.f32 %v1133, %v1286
        %v1387 = vadd.f32 %v1138, %v1286
        %v1388 = vadd.f32 %v1143, %v1286
        %v1389 = vadd.f32 %v1148, %v1286
        %v1390 = vadd.f32 %v1153, %v1286
        %v1391 = vadd.f32 %v1158, %v1286
        %v1392 = vadd.f32 %v1163, %v1286
        %v1393 = vadd.f32 %v1168, %v1286
        %v1394 = vadd.f32 %v1173, %v1286
        %v1395 = vadd.f32 %v1178, %v1286
        %v1396 = vadd.f32 %v1183, %v1286
        %v1397 = vadd.f32 %v1188, %v1286
        %v1398 = vadd.f32 %v1193, %v1286
        %v1399 = vadd.f32 %v1198, %v1286
        %v1400 = vadd.f32 %v1203, %v1286
        %v1401 = vadd.f32 %v1208, %v1286
        %v1402 = vadd.f32 %v1213, %v1286
        %v1403 = vadd.f32 %v1218, %v1286
        %v1404 = vadd.f32 %v1223, %v1286
        %v1405 = vadd.f32 %v1228, %v1286
        %v1406 = vadd.f32 %v1233, %v1286
        %v1407 = vadd.f32 %v1238, %v1286
        %v1408 = vadd.f32 %v1243, %v1286
        %v1409 = vadd.f32 %v1248, %v1286
        %v1410 = vadd.f32 %v1253, %v1286
        %v1411 = vadd.f32 %v1258, %v1286
        %v1412 = vadd.f32 %v1263, %v1286
        %v1413 = vadd.f32 %v1268, %v1286
        %v1414 = vadd.f32 %v1273, %v1286
        %v1415 = vadd.f32 %v1278, %v1286
        %v1416 = vld [vmem:[#allocation9] sm:$0xff]
        %v1417 = vld [vmem:[#allocation9 + $0x8] sm:$0xff]
        %v1418 = vld [vmem:[#allocation9 + $0x10] sm:$0xff]
        %v1419 = vld [vmem:[#allocation9 + $0x18] sm:$0xff]
        %v1420 = vld [vmem:[#allocation9 + $0x20] sm:$0xff]
        %v1421 = vld [vmem:[#allocation9 + $0x28] sm:$0xff]
        %v1422 = vld [vmem:[#allocation9 + $0x30] sm:$0xff]
        %v1423 = vld [vmem:[#allocation9 + $0x38] sm:$0xff]
        %v1424 = vld [vmem:[#allocation9 + $0x40] sm:$0xff]
        %v1425 = vld [vmem:[#allocation9 + $0x48] sm:$0xff]
        %v1426 = vld [vmem:[#allocation9 + $0x50] sm:$0xff]
        %v1427 = vld [vmem:[#allocation9 + $0x58] sm:$0xff]
        %v1428 = vld [vmem:[#allocation9 + $0x60] sm:$0xff]
        %v1429 = vld [vmem:[#allocation9 + $0x68] sm:$0xff]
        %v1430 = vld [vmem:[#allocation9 + $0x70] sm:$0xff]
        %v1431 = vld [vmem:[#allocation9 + $0x78] sm:$0xff]
        %v1432 = vld [vmem:[%s5] sm:$0x1]
        %v1434 = vlaneseq
        %v1435 = vshrl.u32 %v1434, 7
        %v1436 = vsub.s32 0, %v1435
        %v1437 = vrot.slane %v1432, %v1436
        %1439 = vmatprep.subr.mxu0 0.0
        %1440 = vmatpush1.msra.mxu0 %v1416
        %1441 = vmatprep.subr.mxu0 0.0
        %1442 = vmatpush1.msra.mxu0 %v1417
        %1443 = vmatprep.subr.mxu0 0.0
        %1444 = vmatpush1.msra.mxu0 %v1418
        %1445 = vmatprep.subr.mxu0 0.0
        %1446 = vmatpush1.msra.mxu0 %v1419
        %1447 = vmatprep.subr.mxu0 0.0
        %1448 = vmatpush1.msra.mxu0 %v1420
        %1449 = vmatprep.subr.mxu0 0.0
        %1450 = vmatpush1.msra.mxu0 %v1421
        %1451 = vmatprep.subr.mxu0 0.0
        %1452 = vmatpush1.msra.mxu0 %v1422
        %1453 = vmatprep.subr.mxu0 0.0
        %1454 = vmatpush1.msra.mxu0 %v1423
        %1455 = vmatprep.subr.mxu0 0.0
        %1456 = vmatpush1.msra.mxu0 %v1424
        %1457 = vmatprep.subr.mxu0 0.0
        %1458 = vmatpush1.msra.mxu0 %v1425
        %1459 = vmatprep.subr.mxu0 0.0
        %1460 = vmatpush1.msra.mxu0 %v1426
        %1461 = vmatprep.subr.mxu0 0.0
        %1462 = vmatpush1.msra.mxu0 %v1427
        %1463 = vmatprep.subr.mxu0 0.0
        %1464 = vmatpush1.msra.mxu0 %v1428
        %1465 = vmatprep.subr.mxu0 0.0
        %1466 = vmatpush1.msra.mxu0 %v1429
        %1467 = vmatprep.subr.mxu0 0.0
        %1468 = vmatpush1.msra.mxu0 %v1430
        %1469 = vmatprep.subr.mxu0 0.0
        %1470 = vmatpush1.msra.mxu0 %v1431
        %1471 = vmatprep.subr.mxu0 0.0
        %1472 = vmatpush1.msra.mxu0 0.0
        %1473 = vmatprep.subr.mxu0 0.0
        %1474 = vmatpush1.msra.mxu0 0.0
        %1475 = vmatprep.subr.mxu0 0.0
        %1476 = vmatpush1.msra.mxu0 0.0
        %1477 = vmatprep.subr.mxu0 0.0
        %1478 = vmatpush1.msra.mxu0 0.0
        %1479 = vmatprep.subr.mxu0 0.0
        %1480 = vmatpush1.msra.mxu0 0.0
        %1481 = vmatprep.subr.mxu0 0.0
        %1482 = vmatpush1.msra.mxu0 0.0
        %1483 = vmatprep.subr.mxu0 0.0
        %1484 = vmatpush1.msra.mxu0 0.0
        %1485 = vmatprep.subr.mxu0 0.0
        %1486 = vmatpush1.msra.mxu0 0.0
        %1487 = vmatprep.subr.mxu0 0.0
        %1488 = vmatpush1.msra.mxu0 0.0
        %1489 = vmatprep.subr.mxu0 0.0
        %1490 = vmatpush1.msra.mxu0 0.0
        %1491 = vmatprep.subr.mxu0 0.0
        %1492 = vmatpush1.msra.mxu0 0.0
        %1493 = vmatprep.subr.mxu0 0.0
        %1494 = vmatpush1.msra.mxu0 0.0
        %1495 = vmatprep.subr.mxu0 0.0
        %1496 = vmatpush1.msra.mxu0 0.0
        %1497 = vmatprep.subr.mxu0 0.0
        %1498 = vmatpush1.msra.mxu0 0.0
        %1499 = vmatprep.subr.mxu0 0.0
        %1500 = vmatpush1.msra.mxu0 0.0
        %1501 = vmatprep.subr.mxu0 0.0
        %1502 = vmatpush1.msra.mxu0 0.0
        %1503 = vmatprep.mubr.f32.mxu0 0.0
        %1504 = vmatmul.mubr.f32.gmra.mrb[0].mxu0 %v559
        %v1505 = vpop.f32.mrb[0].mxu0
        %v1506 = vadd.f32 %v1437, %v1505
        %v1507 = vpop.f32.mrb[0].mxu0
        %1508 = vdwg.mxu0
        %v1510 = vcombine.high %v1506, %v1506
        %v1512 = vunpack.c.l.s4 1966171168
        %v1513 = vunpack.c.0.s8 %v1512
        %v1514 = vlaneseq
        %v1515 = vshrl.u32 %v1514, 7
        %v1516 = vsub.s32 %v1513, %v1515
        %v1517 = vrot.slane %v1506, %v1516
        %v1519 = vunpack.c.l.s4 1966171168
        %v1520 = vunpack.c.0.s8 %v1519
        %v1521 = vlaneseq
        %v1522 = vshrl.u32 %v1521, 7
        %v1523 = vsub.s32 %v1520, %v1522
        %v1524 = vrot.slane %v1510, %v1523
        %v1525 = vcombine.high %v1517, %v1517
        %v1526 = vcombine.high %v1524, %v1524
        %v1528 = vunpack.c.l.s4 1966171168
        %v1529 = vunpack.c.0.s8 %v1528
        %v1530 = vlaneseq
        %v1531 = vshrl.u32 %v1530, 7
        %v1532 = vsub.s32 %v1529, %v1531
        %v1533 = vrot.slane %v1517, %v1532
        %v1535 = vunpack.c.l.s4 1966171168
        %v1536 = vunpack.c.0.s8 %v1535
        %v1537 = vlaneseq
        %v1538 = vshrl.u32 %v1537, 7
        %v1539 = vsub.s32 %v1536, %v1538
        %v1540 = vrot.slane %v1524, %v1539
        %v1542 = vunpack.c.l.s4 1966171168
        %v1543 = vunpack.c.0.s8 %v1542
        %v1544 = vlaneseq
        %v1545 = vshrl.u32 %v1544, 7
        %v1546 = vsub.s32 %v1543, %v1545
        %v1547 = vrot.slane %v1525, %v1546
        %v1549 = vunpack.c.l.s4 1966171168
        %v1550 = vunpack.c.0.s8 %v1549
        %v1551 = vlaneseq
        %v1552 = vshrl.u32 %v1551, 7
        %v1553 = vsub.s32 %v1550, %v1552
        %v1554 = vrot.slane %v1526, %v1553
        %v1555 = vcombine.high %v1533, %v1533
        %v1556 = vcombine.high %v1540, %v1540
        %v1557 = vcombine.high %v1547, %v1547
        %v1558 = vcombine.high %v1554, %v1554
        %v1559 = vlaneseq
        %v1560 = vshrl.u32 %v1559, 7
        %v1561 = vsub.s32 0, %v1560
        %v1562 = vrot.slane %v1533, %v1561
        %v1563 = vlaneseq
        %v1564 = vshrl.u32 %v1563, 7
        %v1565 = vsub.s32 0, %v1564
        %v1566 = vrot.slane %v1547, %v1565
        %v1567 = vlaneseq
        %v1568 = vshrl.u32 %v1567, 7
        %v1569 = vsub.s32 0, %v1568
        %v1570 = vrot.slane %v1555, %v1569
        %v1571 = vlaneseq
        %v1572 = vshrl.u32 %v1571, 7
        %v1573 = vsub.s32 0, %v1572
        %v1574 = vrot.slane %v1557, %v1573
        %v1575 = vlaneseq
        %v1576 = vshrl.u32 %v1575, 7
        %v1577 = vsub.s32 0, %v1576
        %v1578 = vrot.slane %v1540, %v1577
        %v1579 = vlaneseq
        %v1580 = vshrl.u32 %v1579, 7
        %v1581 = vsub.s32 0, %v1580
        %v1582 = vrot.slane %v1554, %v1581
        %v1583 = vlaneseq
        %v1584 = vshrl.u32 %v1583, 7
        %v1585 = vsub.s32 0, %v1584
        %v1586 = vrot.slane %v1556, %v1585
        %v1587 = vlaneseq
        %v1588 = vshrl.u32 %v1587, 7
        %v1589 = vsub.s32 0, %v1588
        %v1590 = vrot.slane %v1558, %v1589
        %v1599 = vadd.f32 %v1288, %v1562
        %v1600 = vadd.f32 %v1289, %v1562
        %v1601 = vadd.f32 %v1290, %v1562
        %v1602 = vadd.f32 %v1291, %v1562
        %v1603 = vadd.f32 %v1292, %v1562
        %v1604 = vadd.f32 %v1293, %v1562
        %v1605 = vadd.f32 %v1294, %v1562
        %v1606 = vadd.f32 %v1295, %v1562
        %v1607 = vadd.f32 %v1296, %v1562
        %v1608 = vadd.f32 %v1297, %v1562
        %v1609 = vadd.f32 %v1298, %v1562
        %v1610 = vadd.f32 %v1299, %v1562
        %v1611 = vadd.f32 %v1300, %v1562
        %v1612 = vadd.f32 %v1301, %v1562
        %v1613 = vadd.f32 %v1302, %v1562
        %v1614 = vadd.f32 %v1303, %v1562
        %v1615 = vadd.f32 %v1304, %v1566
        %v1616 = vadd.f32 %v1305, %v1566
        %v1617 = vadd.f32 %v1306, %v1566
        %v1618 = vadd.f32 %v1307, %v1566
        %v1619 = vadd.f32 %v1308, %v1566
        %v1620 = vadd.f32 %v1309, %v1566
        %v1621 = vadd.f32 %v1310, %v1566
        %v1622 = vadd.f32 %v1311, %v1566
        %v1623 = vadd.f32 %v1312, %v1566
        %v1624 = vadd.f32 %v1313, %v1566
        %v1625 = vadd.f32 %v1314, %v1566
        %v1626 = vadd.f32 %v1315, %v1566
        %v1627 = vadd.f32 %v1316, %v1566
        %v1628 = vadd.f32 %v1317, %v1566
        %v1629 = vadd.f32 %v1318, %v1566
        %v1630 = vadd.f32 %v1319, %v1566
        %v1631 = vadd.f32 %v1320, %v1570
        %v1632 = vadd.f32 %v1321, %v1570
        %v1633 = vadd.f32 %v1322, %v1570
        %v1634 = vadd.f32 %v1323, %v1570
        %v1635 = vadd.f32 %v1324, %v1570
        %v1636 = vadd.f32 %v1325, %v1570
        %v1637 = vadd.f32 %v1326, %v1570
        %v1638 = vadd.f32 %v1327, %v1570
        %v1639 = vadd.f32 %v1328, %v1570
        %v1640 = vadd.f32 %v1329, %v1570
        %v1641 = vadd.f32 %v1330, %v1570
        %v1642 = vadd.f32 %v1331, %v1570
        %v1643 = vadd.f32 %v1332, %v1570
        %v1644 = vadd.f32 %v1333, %v1570
        %v1645 = vadd.f32 %v1334, %v1570
        %v1646 = vadd.f32 %v1335, %v1570
        %v1647 = vadd.f32 %v1336, %v1574
        %v1648 = vadd.f32 %v1337, %v1574
        %v1649 = vadd.f32 %v1338, %v1574
        %v1650 = vadd.f32 %v1339, %v1574
        %v1651 = vadd.f32 %v1340, %v1574
        %v1652 = vadd.f32 %v1341, %v1574
        %v1653 = vadd.f32 %v1342, %v1574
        %v1654 = vadd.f32 %v1343, %v1574
        %v1655 = vadd.f32 %v1344, %v1574
        %v1656 = vadd.f32 %v1345, %v1574
        %v1657 = vadd.f32 %v1346, %v1574
        %v1658 = vadd.f32 %v1347, %v1574
        %v1659 = vadd.f32 %v1348, %v1574
        %v1660 = vadd.f32 %v1349, %v1574
        %v1661 = vadd.f32 %v1350, %v1574
        %v1662 = vadd.f32 %v1351, %v1574
        %v1663 = vadd.f32 %v1352, %v1578
        %v1664 = vadd.f32 %v1353, %v1578
        %v1665 = vadd.f32 %v1354, %v1578
        %v1666 = vadd.f32 %v1355, %v1578
        %v1667 = vadd.f32 %v1356, %v1578
        %v1668 = vadd.f32 %v1357, %v1578
        %v1669 = vadd.f32 %v1358, %v1578
        %v1670 = vadd.f32 %v1359, %v1578
        %v1671 = vadd.f32 %v1360, %v1578
        %v1672 = vadd.f32 %v1361, %v1578
        %v1673 = vadd.f32 %v1362, %v1578
        %v1674 = vadd.f32 %v1363, %v1578
        %v1675 = vadd.f32 %v1364, %v1578
        %v1676 = vadd.f32 %v1365, %v1578
        %v1677 = vadd.f32 %v1366, %v1578
        %v1678 = vadd.f32 %v1367, %v1578
        %v1679 = vadd.f32 %v1368, %v1582
        %v1680 = vadd.f32 %v1369, %v1582
        %v1681 = vadd.f32 %v1370, %v1582
        %v1682 = vadd.f32 %v1371, %v1582
        %v1683 = vadd.f32 %v1372, %v1582
        %v1684 = vadd.f32 %v1373, %v1582
        %v1685 = vadd.f32 %v1374, %v1582
        %v1686 = vadd.f32 %v1375, %v1582
        %v1687 = vadd.f32 %v1376, %v1582
        %v1688 = vadd.f32 %v1377, %v1582
        %v1689 = vadd.f32 %v1378, %v1582
        %v1690 = vadd.f32 %v1379, %v1582
        %v1691 = vadd.f32 %v1380, %v1582
        %v1692 = vadd.f32 %v1381, %v1582
        %v1693 = vadd.f32 %v1382, %v1582
        %v1694 = vadd.f32 %v1383, %v1582
        %v1695 = vadd.f32 %v1384, %v1586
        %v1696 = vadd.f32 %v1385, %v1586
        %v1697 = vadd.f32 %v1386, %v1586
        %v1698 = vadd.f32 %v1387, %v1586
        %v1699 = vadd.f32 %v1388, %v1586
        %v1700 = vadd.f32 %v1389, %v1586
        %v1701 = vadd.f32 %v1390, %v1586
        %v1702 = vadd.f32 %v1391, %v1586
        %v1703 = vadd.f32 %v1392, %v1586
        %v1704 = vadd.f32 %v1393, %v1586
        %v1705 = vadd.f32 %v1394, %v1586
        %v1706 = vadd.f32 %v1395, %v1586
        %v1707 = vadd.f32 %v1396, %v1586
        %v1708 = vadd.f32 %v1397, %v1586
        %v1709 = vadd.f32 %v1398, %v1586
        %v1710 = vadd.f32 %v1399, %v1586
        %v1711 = vadd.f32 %v1400, %v1590
        %v1712 = vadd.f32 %v1401, %v1590
        %v1713 = vadd.f32 %v1402, %v1590
        %v1714 = vadd.f32 %v1403, %v1590
        %v1715 = vadd.f32 %v1404, %v1590
        %v1716 = vadd.f32 %v1405, %v1590
        %v1717 = vadd.f32 %v1406, %v1590
        %v1718 = vadd.f32 %v1407, %v1590
        %v1719 = vadd.f32 %v1408, %v1590
        %v1720 = vadd.f32 %v1409, %v1590
        %v1721 = vadd.f32 %v1410, %v1590
        %v1722 = vadd.f32 %v1411, %v1590
        %v1723 = vadd.f32 %v1412, %v1590
        %v1724 = vadd.f32 %v1413, %v1590
        %v1725 = vadd.f32 %v1414, %v1590
        %v1726 = vadd.f32 %v1415, %v1590
        %v1727 = vtanh.pop %v1599
        %v1728 = vtanh.pop %v1600
        %v1729 = vtanh.pop %v1601
        %v1730 = vtanh.pop %v1602
        %v1731 = vtanh.pop %v1603
        %v1732 = vtanh.pop %v1604
        %v1733 = vtanh.pop %v1605
        %v1734 = vtanh.pop %v1606
        %v1735 = vtanh.pop %v1607
        %v1736 = vtanh.pop %v1608
        %v1737 = vtanh.pop %v1609
        %v1738 = vtanh.pop %v1610
        %v1739 = vtanh.pop %v1611
        %v1740 = vtanh.pop %v1612
        %v1741 = vtanh.pop %v1613
        %v1742 = vtanh.pop %v1614
        %v1743 = vtanh.pop %v1615
        %v1744 = vtanh.pop %v1616
        %v1745 = vtanh.pop %v1617
        %v1746 = vtanh.pop %v1618
        %v1747 = vtanh.pop %v1619
        %v1748 = vtanh.pop %v1620
        %v1749 = vtanh.pop %v1621
        %v1750 = vtanh.pop %v1622
        %v1751 = vtanh.pop %v1623
        %v1752 = vtanh.pop %v1624
        %v1753 = vtanh.pop %v1625
        %v1754 = vtanh.pop %v1626
        %v1755 = vtanh.pop %v1627
        %v1756 = vtanh.pop %v1628
        %v1757 = vtanh.pop %v1629
        %v1758 = vtanh.pop %v1630
        %v1759 = vtanh.pop %v1631
        %v1760 = vtanh.pop %v1632
        %v1761 = vtanh.pop %v1633
        %v1762 = vtanh.pop %v1634
        %v1763 = vtanh.pop %v1635
        %v1764 = vtanh.pop %v1636
        %v1765 = vtanh.pop %v1637
        %v1766 = vtanh.pop %v1638
        %v1767 = vtanh.pop %v1639
        %v1768 = vtanh.pop %v1640
        %v1769 = vtanh.pop %v1641
        %v1770 = vtanh.pop %v1642
        %v1771 = vtanh.pop %v1643
        %v1772 = vtanh.pop %v1644
        %v1773 = vtanh.pop %v1645
        %v1774 = vtanh.pop %v1646
        %v1775 = vtanh.pop %v1647
        %v1776 = vtanh.pop %v1648
        %v1777 = vtanh.pop %v1649
        %v1778 = vtanh.pop %v1650
        %v1779 = vtanh.pop %v1651
        %v1780 = vtanh.pop %v1652
        %v1781 = vtanh.pop %v1653
        %v1782 = vtanh.pop %v1654
        %v1783 = vtanh.pop %v1655
        %v1784 = vtanh.pop %v1656
        %v1785 = vtanh.pop %v1657
        %v1786 = vtanh.pop %v1658
        %v1787 = vtanh.pop %v1659
        %v1788 = vtanh.pop %v1660
        %v1789 = vtanh.pop %v1661
        %v1790 = vtanh.pop %v1662
        %v1791 = vtanh.pop %v1663
        %v1792 = vtanh.pop %v1664
        %v1793 = vtanh.pop %v1665
        %v1794 = vtanh.pop %v1666
        %v1795 = vtanh.pop %v1667
        %v1796 = vtanh.pop %v1668
        %v1797 = vtanh.pop %v1669
        %v1798 = vtanh.pop %v1670
        %v1799 = vtanh.pop %v1671
        %v1800 = vtanh.pop %v1672
        %v1801 = vtanh.pop %v1673
        %v1802 = vtanh.pop %v1674
        %v1803 = vtanh.pop %v1675
        %v1804 = vtanh.pop %v1676
        %v1805 = vtanh.pop %v1677
        %v1806 = vtanh.pop %v1678
        %v1807 = vtanh.pop %v1679
        %v1808 = vtanh.pop %v1680
        %v1809 = vtanh.pop %v1681
        %v1810 = vtanh.pop %v1682
        %v1811 = vtanh.pop %v1683
        %v1812 = vtanh.pop %v1684
        %v1813 = vtanh.pop %v1685
        %v1814 = vtanh.pop %v1686
        %v1815 = vtanh.pop %v1687
        %v1816 = vtanh.pop %v1688
        %v1817 = vtanh.pop %v1689
        %v1818 = vtanh.pop %v1690
        %v1819 = vtanh.pop %v1691
        %v1820 = vtanh.pop %v1692
        %v1821 = vtanh.pop %v1693
        %v1822 = vtanh.pop %v1694
        %v1823 = vtanh.pop %v1695
        %v1824 = vtanh.pop %v1696
        %v1825 = vtanh.pop %v1697
        %v1826 = vtanh.pop %v1698
        %v1827 = vtanh.pop %v1699
        %v1828 = vtanh.pop %v1700
        %v1829 = vtanh.pop %v1701
        %v1830 = vtanh.pop %v1702
        %v1831 = vtanh.pop %v1703
        %v1832 = vtanh.pop %v1704
        %v1833 = vtanh.pop %v1705
        %v1834 = vtanh.pop %v1706
        %v1835 = vtanh.pop %v1707
        %v1836 = vtanh.pop %v1708
        %v1837 = vtanh.pop %v1709
        %v1838 = vtanh.pop %v1710
        %v1839 = vtanh.pop %v1711
        %v1840 = vtanh.pop %v1712
        %v1841 = vtanh.pop %v1713
        %v1842 = vtanh.pop %v1714
        %v1843 = vtanh.pop %v1715
        %v1844 = vtanh.pop %v1716
        %v1845 = vtanh.pop %v1717
        %v1846 = vtanh.pop %v1718
        %v1847 = vtanh.pop %v1719
        %v1848 = vtanh.pop %v1720
        %v1849 = vtanh.pop %v1721
        %v1850 = vtanh.pop %v1722
        %v1851 = vtanh.pop %v1723
        %v1852 = vtanh.pop %v1724
        %v1853 = vtanh.pop %v1725
        %v1854 = vtanh.pop %v1726
        %v1855 = vld [vmem:[%s6] sm:$0x1]
        %v1857 = vlaneseq
        %v1858 = vshrl.u32 %v1857, 7
        %v1859 = vsub.s32 0, %v1858
        %v1860 = vrot.slane %v1855, %v1859
        %v1862 = vmul.f32 %v1727, %v1860
        %v1863 = vmul.f32 %v1728, %v1860
        %v1864 = vmul.f32 %v1729, %v1860
        %v1865 = vmul.f32 %v1730, %v1860
        %v1866 = vmul.f32 %v1731, %v1860
        %v1867 = vmul.f32 %v1732, %v1860
        %v1868 = vmul.f32 %v1733, %v1860
        %v1869 = vmul.f32 %v1734, %v1860
        %v1870 = vmul.f32 %v1735, %v1860
        %v1871 = vmul.f32 %v1736, %v1860
        %v1872 = vmul.f32 %v1737, %v1860
        %v1873 = vmul.f32 %v1738, %v1860
        %v1874 = vmul.f32 %v1739, %v1860
        %v1875 = vmul.f32 %v1740, %v1860
        %v1876 = vmul.f32 %v1741, %v1860
        %v1877 = vmul.f32 %v1742, %v1860
        %v1878 = vmul.f32 %v1743, %v1860
        %v1879 = vmul.f32 %v1744, %v1860
        %v1880 = vmul.f32 %v1745, %v1860
        %v1881 = vmul.f32 %v1746, %v1860
        %v1882 = vmul.f32 %v1747, %v1860
        %v1883 = vmul.f32 %v1748, %v1860
        %v1884 = vmul.f32 %v1749, %v1860
        %v1885 = vmul.f32 %v1750, %v1860
        %v1886 = vmul.f32 %v1751, %v1860
        %v1887 = vmul.f32 %v1752, %v1860
        %v1888 = vmul.f32 %v1753, %v1860
        %v1889 = vmul.f32 %v1754, %v1860
        %v1890 = vmul.f32 %v1755, %v1860
        %v1891 = vmul.f32 %v1756, %v1860
        %v1892 = vmul.f32 %v1757, %v1860
        %v1893 = vmul.f32 %v1758, %v1860
        %v1894 = vmul.f32 %v1759, %v1860
        %v1895 = vmul.f32 %v1760, %v1860
        %v1896 = vmul.f32 %v1761, %v1860
        %v1897 = vmul.f32 %v1762, %v1860
        %v1898 = vmul.f32 %v1763, %v1860
        %v1899 = vmul.f32 %v1764, %v1860
        %v1900 = vmul.f32 %v1765, %v1860
        %v1901 = vmul.f32 %v1766, %v1860
        %v1902 = vmul.f32 %v1767, %v1860
        %v1903 = vmul.f32 %v1768, %v1860
        %v1904 = vmul.f32 %v1769, %v1860
        %v1905 = vmul.f32 %v1770, %v1860
        %v1906 = vmul.f32 %v1771, %v1860
        %v1907 = vmul.f32 %v1772, %v1860
        %v1908 = vmul.f32 %v1773, %v1860
        %v1909 = vmul.f32 %v1774, %v1860
        %v1910 = vmul.f32 %v1775, %v1860
        %v1911 = vmul.f32 %v1776, %v1860
        %v1912 = vmul.f32 %v1777, %v1860
        %v1913 = vmul.f32 %v1778, %v1860
        %v1914 = vmul.f32 %v1779, %v1860
        %v1915 = vmul.f32 %v1780, %v1860
        %v1916 = vmul.f32 %v1781, %v1860
        %v1917 = vmul.f32 %v1782, %v1860
        %v1918 = vmul.f32 %v1783, %v1860
        %v1919 = vmul.f32 %v1784, %v1860
        %v1920 = vmul.f32 %v1785, %v1860
        %v1921 = vmul.f32 %v1786, %v1860
        %v1922 = vmul.f32 %v1787, %v1860
        %v1923 = vmul.f32 %v1788, %v1860
        %v1924 = vmul.f32 %v1789, %v1860
        %v1925 = vmul.f32 %v1790, %v1860
        %v1926 = vmul.f32 %v1791, %v1860
        %v1927 = vmul.f32 %v1792, %v1860
        %v1928 = vmul.f32 %v1793, %v1860
        %v1929 = vmul.f32 %v1794, %v1860
        %v1930 = vmul.f32 %v1795, %v1860
        %v1931 = vmul.f32 %v1796, %v1860
        %v1932 = vmul.f32 %v1797, %v1860
        %v1933 = vmul.f32 %v1798, %v1860
        %v1934 = vmul.f32 %v1799, %v1860
        %v1935 = vmul.f32 %v1800, %v1860
        %v1936 = vmul.f32 %v1801, %v1860
        %v1937 = vmul.f32 %v1802, %v1860
        %v1938 = vmul.f32 %v1803, %v1860
        %v1939 = vmul.f32 %v1804, %v1860
        %v1940 = vmul.f32 %v1805, %v1860
        %v1941 = vmul.f32 %v1806, %v1860
        %v1942 = vmul.f32 %v1807, %v1860
        %v1943 = vmul.f32 %v1808, %v1860
        %v1944 = vmul.f32 %v1809, %v1860
        %v1945 = vmul.f32 %v1810, %v1860
        %v1946 = vmul.f32 %v1811, %v1860
        %v1947 = vmul.f32 %v1812, %v1860
        %v1948 = vmul.f32 %v1813, %v1860
        %v1949 = vmul.f32 %v1814, %v1860
        %v1950 = vmul.f32 %v1815, %v1860
        %v1951 = vmul.f32 %v1816, %v1860
        %v1952 = vmul.f32 %v1817, %v1860
        %v1953 = vmul.f32 %v1818, %v1860
        %v1954 = vmul.f32 %v1819, %v1860
        %v1955 = vmul.f32 %v1820, %v1860
        %v1956 = vmul.f32 %v1821, %v1860
        %v1957 = vmul.f32 %v1822, %v1860
        %v1958 = vmul.f32 %v1823, %v1860
        %v1959 = vmul.f32 %v1824, %v1860
        %v1960 = vmul.f32 %v1825, %v1860
        %v1961 = vmul.f32 %v1826, %v1860
        %v1962 = vmul.f32 %v1827, %v1860
        %v1963 = vmul.f32 %v1828, %v1860
        %v1964 = vmul.f32 %v1829, %v1860
        %v1965 = vmul.f32 %v1830, %v1860
        %v1966 = vmul.f32 %v1831, %v1860
        %v1967 = vmul.f32 %v1832, %v1860
        %v1968 = vmul.f32 %v1833, %v1860
        %v1969 = vmul.f32 %v1834, %v1860
        %v1970 = vmul.f32 %v1835, %v1860
        %v1971 = vmul.f32 %v1836, %v1860
        %v1972 = vmul.f32 %v1837, %v1860
        %v1973 = vmul.f32 %v1838, %v1860
        %v1974 = vmul.f32 %v1839, %v1860
        %v1975 = vmul.f32 %v1840, %v1860
        %v1976 = vmul.f32 %v1841, %v1860
        %v1977 = vmul.f32 %v1842, %v1860
        %v1978 = vmul.f32 %v1843, %v1860
        %v1979 = vmul.f32 %v1844, %v1860
        %v1980 = vmul.f32 %v1845, %v1860
        %v1981 = vmul.f32 %v1846, %v1860
        %v1982 = vmul.f32 %v1847, %v1860
        %v1983 = vmul.f32 %v1848, %v1860
        %v1984 = vmul.f32 %v1849, %v1860
        %v1985 = vmul.f32 %v1850, %v1860
        %v1986 = vmul.f32 %v1851, %v1860
        %v1987 = vmul.f32 %v1852, %v1860
        %v1988 = vmul.f32 %v1853, %v1860
        %v1989 = vmul.f32 %v1854, %v1860
        %1990 = vadd.xlane.f32.xlu0 %v1862
        %v1991 = vpop.xlane.xlu0 %1990
        %1992 = vadd.xlane.f32.xlu0 %v1863
        %v1993 = vpop.xlane.xlu0 %1992
        %1994 = vadd.xlane.f32.xlu0 %v1864
        %v1995 = vpop.xlane.xlu0 %1994
        %1996 = vadd.xlane.f32.xlu0 %v1865
        %v1997 = vpop.xlane.xlu0 %1996
        %1998 = vadd.xlane.f32.xlu0 %v1866
        %v1999 = vpop.xlane.xlu0 %1998
        %2000 = vadd.xlane.f32.xlu0 %v1867
        %v2001 = vpop.xlane.xlu0 %2000
        %2002 = vadd.xlane.f32.xlu0 %v1868
        %v2003 = vpop.xlane.xlu0 %2002
        %2004 = vadd.xlane.f32.xlu0 %v1869
        %v2005 = vpop.xlane.xlu0 %2004
        %2006 = vadd.xlane.f32.xlu0 %v1870
        %v2007 = vpop.xlane.xlu0 %2006
        %2008 = vadd.xlane.f32.xlu0 %v1871
        %v2009 = vpop.xlane.xlu0 %2008
        %2010 = vadd.xlane.f32.xlu0 %v1872
        %v2011 = vpop.xlane.xlu0 %2010
        %2012 = vadd.xlane.f32.xlu0 %v1873
        %v2013 = vpop.xlane.xlu0 %2012
        %2014 = vadd.xlane.f32.xlu0 %v1874
        %v2015 = vpop.xlane.xlu0 %2014
        %2016 = vadd.xlane.f32.xlu0 %v1875
        %v2017 = vpop.xlane.xlu0 %2016
        %2018 = vadd.xlane.f32.xlu0 %v1876
        %v2019 = vpop.xlane.xlu0 %2018
        %2020 = vadd.xlane.f32.xlu0 %v1877
        %v2021 = vpop.xlane.xlu0 %2020
        %2022 = vadd.xlane.f32.xlu0 %v1878
        %v2023 = vpop.xlane.xlu0 %2022
        %2024 = vadd.xlane.f32.xlu0 %v1879
        %v2025 = vpop.xlane.xlu0 %2024
        %2026 = vadd.xlane.f32.xlu0 %v1880
        %v2027 = vpop.xlane.xlu0 %2026
        %2028 = vadd.xlane.f32.xlu0 %v1881
        %v2029 = vpop.xlane.xlu0 %2028
        %2030 = vadd.xlane.f32.xlu0 %v1882
        %v2031 = vpop.xlane.xlu0 %2030
        %2032 = vadd.xlane.f32.xlu0 %v1883
        %v2033 = vpop.xlane.xlu0 %2032
        %2034 = vadd.xlane.f32.xlu0 %v1884
        %v2035 = vpop.xlane.xlu0 %2034
        %2036 = vadd.xlane.f32.xlu0 %v1885
        %v2037 = vpop.xlane.xlu0 %2036
        %2038 = vadd.xlane.f32.xlu0 %v1886
        %v2039 = vpop.xlane.xlu0 %2038
        %2040 = vadd.xlane.f32.xlu0 %v1887
        %v2041 = vpop.xlane.xlu0 %2040
        %2042 = vadd.xlane.f32.xlu0 %v1888
        %v2043 = vpop.xlane.xlu0 %2042
        %2044 = vadd.xlane.f32.xlu0 %v1889
        %v2045 = vpop.xlane.xlu0 %2044
        %2046 = vadd.xlane.f32.xlu0 %v1890
        %v2047 = vpop.xlane.xlu0 %2046
        %2048 = vadd.xlane.f32.xlu0 %v1891
        %v2049 = vpop.xlane.xlu0 %2048
        %2050 = vadd.xlane.f32.xlu0 %v1892
        %v2051 = vpop.xlane.xlu0 %2050
        %2052 = vadd.xlane.f32.xlu0 %v1893
        %v2053 = vpop.xlane.xlu0 %2052
        %2054 = vadd.xlane.f32.xlu0 %v1894
        %v2055 = vpop.xlane.xlu0 %2054
        %2056 = vadd.xlane.f32.xlu0 %v1895
        %v2057 = vpop.xlane.xlu0 %2056
        %2058 = vadd.xlane.f32.xlu0 %v1896
        %v2059 = vpop.xlane.xlu0 %2058
        %2060 = vadd.xlane.f32.xlu0 %v1897
        %v2061 = vpop.xlane.xlu0 %2060
        %2062 = vadd.xlane.f32.xlu0 %v1898
        %v2063 = vpop.xlane.xlu0 %2062
        %2064 = vadd.xlane.f32.xlu0 %v1899
        %v2065 = vpop.xlane.xlu0 %2064
        %2066 = vadd.xlane.f32.xlu0 %v1900
        %v2067 = vpop.xlane.xlu0 %2066
        %2068 = vadd.xlane.f32.xlu0 %v1901
        %v2069 = vpop.xlane.xlu0 %2068
        %2070 = vadd.xlane.f32.xlu0 %v1902
        %v2071 = vpop.xlane.xlu0 %2070
        %2072 = vadd.xlane.f32.xlu0 %v1903
        %v2073 = vpop.xlane.xlu0 %2072
        %2074 = vadd.xlane.f32.xlu0 %v1904
        %v2075 = vpop.xlane.xlu0 %2074
        %2076 = vadd.xlane.f32.xlu0 %v1905
        %v2077 = vpop.xlane.xlu0 %2076
        %2078 = vadd.xlane.f32.xlu0 %v1906
        %v2079 = vpop.xlane.xlu0 %2078
        %2080 = vadd.xlane.f32.xlu0 %v1907
        %v2081 = vpop.xlane.xlu0 %2080
        %2082 = vadd.xlane.f32.xlu0 %v1908
        %v2083 = vpop.xlane.xlu0 %2082
        %2084 = vadd.xlane.f32.xlu0 %v1909
        %v2085 = vpop.xlane.xlu0 %2084
        %2086 = vadd.xlane.f32.xlu0 %v1910
        %v2087 = vpop.xlane.xlu0 %2086
        %2088 = vadd.xlane.f32.xlu0 %v1911
        %v2089 = vpop.xlane.xlu0 %2088
        %2090 = vadd.xlane.f32.xlu0 %v1912
        %v2091 = vpop.xlane.xlu0 %2090
        %2092 = vadd.xlane.f32.xlu0 %v1913
        %v2093 = vpop.xlane.xlu0 %2092
        %2094 = vadd.xlane.f32.xlu0 %v1914
        %v2095 = vpop.xlane.xlu0 %2094
        %2096 = vadd.xlane.f32.xlu0 %v1915
        %v2097 = vpop.xlane.xlu0 %2096
        %2098 = vadd.xlane.f32.xlu0 %v1916
        %v2099 = vpop.xlane.xlu0 %2098
        %2100 = vadd.xlane.f32.xlu0 %v1917
        %v2101 = vpop.xlane.xlu0 %2100
        %2102 = vadd.xlane.f32.xlu0 %v1918
        %v2103 = vpop.xlane.xlu0 %2102
        %2104 = vadd.xlane.f32.xlu0 %v1919
        %v2105 = vpop.xlane.xlu0 %2104
        %2106 = vadd.xlane.f32.xlu0 %v1920
        %v2107 = vpop.xlane.xlu0 %2106
        %2108 = vadd.xlane.f32.xlu0 %v1921
        %v2109 = vpop.xlane.xlu0 %2108
        %2110 = vadd.xlane.f32.xlu0 %v1922
        %v2111 = vpop.xlane.xlu0 %2110
        %2112 = vadd.xlane.f32.xlu0 %v1923
        %v2113 = vpop.xlane.xlu0 %2112
        %2114 = vadd.xlane.f32.xlu0 %v1924
        %v2115 = vpop.xlane.xlu0 %2114
        %2116 = vadd.xlane.f32.xlu0 %v1925
        %v2117 = vpop.xlane.xlu0 %2116
        %2118 = vadd.xlane.f32.xlu0 %v1926
        %v2119 = vpop.xlane.xlu0 %2118
        %2120 = vadd.xlane.f32.xlu0 %v1927
        %v2121 = vpop.xlane.xlu0 %2120
        %2122 = vadd.xlane.f32.xlu0 %v1928
        %v2123 = vpop.xlane.xlu0 %2122
        %2124 = vadd.xlane.f32.xlu0 %v1929
        %v2125 = vpop.xlane.xlu0 %2124
        %2126 = vadd.xlane.f32.xlu0 %v1930
        %v2127 = vpop.xlane.xlu0 %2126
        %2128 = vadd.xlane.f32.xlu0 %v1931
        %v2129 = vpop.xlane.xlu0 %2128
        %2130 = vadd.xlane.f32.xlu0 %v1932
        %v2131 = vpop.xlane.xlu0 %2130
        %2132 = vadd.xlane.f32.xlu0 %v1933
        %v2133 = vpop.xlane.xlu0 %2132
        %2134 = vadd.xlane.f32.xlu0 %v1934
        %v2135 = vpop.xlane.xlu0 %2134
        %2136 = vadd.xlane.f32.xlu0 %v1935
        %v2137 = vpop.xlane.xlu0 %2136
        %2138 = vadd.xlane.f32.xlu0 %v1936
        %v2139 = vpop.xlane.xlu0 %2138
        %2140 = vadd.xlane.f32.xlu0 %v1937
        %v2141 = vpop.xlane.xlu0 %2140
        %2142 = vadd.xlane.f32.xlu0 %v1938
        %v2143 = vpop.xlane.xlu0 %2142
        %2144 = vadd.xlane.f32.xlu0 %v1939
        %v2145 = vpop.xlane.xlu0 %2144
        %2146 = vadd.xlane.f32.xlu0 %v1940
        %v2147 = vpop.xlane.xlu0 %2146
        %2148 = vadd.xlane.f32.xlu0 %v1941
        %v2149 = vpop.xlane.xlu0 %2148
        %2150 = vadd.xlane.f32.xlu0 %v1942
        %v2151 = vpop.xlane.xlu0 %2150
        %2152 = vadd.xlane.f32.xlu0 %v1943
        %v2153 = vpop.xlane.xlu0 %2152
        %2154 = vadd.xlane.f32.xlu0 %v1944
        %v2155 = vpop.xlane.xlu0 %2154
        %2156 = vadd.xlane.f32.xlu0 %v1945
        %v2157 = vpop.xlane.xlu0 %2156
        %2158 = vadd.xlane.f32.xlu0 %v1946
        %v2159 = vpop.xlane.xlu0 %2158
        %2160 = vadd.xlane.f32.xlu0 %v1947
        %v2161 = vpop.xlane.xlu0 %2160
        %2162 = vadd.xlane.f32.xlu0 %v1948
        %v2163 = vpop.xlane.xlu0 %2162
        %2164 = vadd.xlane.f32.xlu0 %v1949
        %v2165 = vpop.xlane.xlu0 %2164
        %2166 = vadd.xlane.f32.xlu0 %v1950
        %v2167 = vpop.xlane.xlu0 %2166
        %2168 = vadd.xlane.f32.xlu0 %v1951
        %v2169 = vpop.xlane.xlu0 %2168
        %2170 = vadd.xlane.f32.xlu0 %v1952
        %v2171 = vpop.xlane.xlu0 %2170
        %2172 = vadd.xlane.f32.xlu0 %v1953
        %v2173 = vpop.xlane.xlu0 %2172
        %2174 = vadd.xlane.f32.xlu0 %v1954
        %v2175 = vpop.xlane.xlu0 %2174
        %2176 = vadd.xlane.f32.xlu0 %v1955
        %v2177 = vpop.xlane.xlu0 %2176
        %2178 = vadd.xlane.f32.xlu0 %v1956
        %v2179 = vpop.xlane.xlu0 %2178
        %2180 = vadd.xlane.f32.xlu0 %v1957
        %v2181 = vpop.xlane.xlu0 %2180
        %2182 = vadd.xlane.f32.xlu0 %v1958
        %v2183 = vpop.xlane.xlu0 %2182
        %2184 = vadd.xlane.f32.xlu0 %v1959
        %v2185 = vpop.xlane.xlu0 %2184
        %2186 = vadd.xlane.f32.xlu0 %v1960
        %v2187 = vpop.xlane.xlu0 %2186
        %2188 = vadd.xlane.f32.xlu0 %v1961
        %v2189 = vpop.xlane.xlu0 %2188
        %2190 = vadd.xlane.f32.xlu0 %v1962
        %v2191 = vpop.xlane.xlu0 %2190
        %2192 = vadd.xlane.f32.xlu0 %v1963
        %v2193 = vpop.xlane.xlu0 %2192
        %2194 = vadd.xlane.f32.xlu0 %v1964
        %v2195 = vpop.xlane.xlu0 %2194
        %2196 = vadd.xlane.f32.xlu0 %v1965
        %v2197 = vpop.xlane.xlu0 %2196
        %2198 = vadd.xlane.f32.xlu0 %v1966
        %v2199 = vpop.xlane.xlu0 %2198
        %2200 = vadd.xlane.f32.xlu0 %v1967
        %v2201 = vpop.xlane.xlu0 %2200
        %2202 = vadd.xlane.f32.xlu0 %v1968
        %v2203 = vpop.xlane.xlu0 %2202
        %2204 = vadd.xlane.f32.xlu0 %v1969
        %v2205 = vpop.xlane.xlu0 %2204
        %2206 = vadd.xlane.f32.xlu0 %v1970
        %v2207 = vpop.xlane.xlu0 %2206
        %2208 = vadd.xlane.f32.xlu0 %v1971
        %v2209 = vpop.xlane.xlu0 %2208
        %2210 = vadd.xlane.f32.xlu0 %v1972
        %v2211 = vpop.xlane.xlu0 %2210
        %2212 = vadd.xlane.f32.xlu0 %v1973
        %v2213 = vpop.xlane.xlu0 %2212
        %2214 = vadd.xlane.f32.xlu0 %v1974
        %v2215 = vpop.xlane.xlu0 %2214
        %2216 = vadd.xlane.f32.xlu0 %v1975
        %v2217 = vpop.xlane.xlu0 %2216
        %2218 = vadd.xlane.f32.xlu0 %v1976
        %v2219 = vpop.xlane.xlu0 %2218
        %2220 = vadd.xlane.f32.xlu0 %v1977
        %v2221 = vpop.xlane.xlu0 %2220
        %2222 = vadd.xlane.f32.xlu0 %v1978
        %v2223 = vpop.xlane.xlu0 %2222
        %2224 = vadd.xlane.f32.xlu0 %v1979
        %v2225 = vpop.xlane.xlu0 %2224
        %2226 = vadd.xlane.f32.xlu0 %v1980
        %v2227 = vpop.xlane.xlu0 %2226
        %2228 = vadd.xlane.f32.xlu0 %v1981
        %v2229 = vpop.xlane.xlu0 %2228
        %2230 = vadd.xlane.f32.xlu0 %v1982
        %v2231 = vpop.xlane.xlu0 %2230
        %2232 = vadd.xlane.f32.xlu0 %v1983
        %v2233 = vpop.xlane.xlu0 %2232
        %2234 = vadd.xlane.f32.xlu0 %v1984
        %v2235 = vpop.xlane.xlu0 %2234
        %2236 = vadd.xlane.f32.xlu0 %v1985
        %v2237 = vpop.xlane.xlu0 %2236
        %2238 = vadd.xlane.f32.xlu0 %v1986
        %v2239 = vpop.xlane.xlu0 %2238
        %2240 = vadd.xlane.f32.xlu0 %v1987
        %v2241 = vpop.xlane.xlu0 %2240
        %2242 = vadd.xlane.f32.xlu0 %v1988
        %v2243 = vpop.xlane.xlu0 %2242
        %2244 = vadd.xlane.f32.xlu0 %v1989
        %v2245 = vpop.xlane.xlu0 %2244
        %s2246 = sld [smem:[#allocation2]]
        %v2247 = vstv %s2246
        %v2248 = vadd.f32 %v1991, %v2247
        %v2249 = vadd.f32 %v1993, %v2247
        %v2250 = vadd.f32 %v1995, %v2247
        %v2251 = vadd.f32 %v1997, %v2247
        %v2252 = vadd.f32 %v1999, %v2247
        %v2253 = vadd.f32 %v2001, %v2247
        %v2254 = vadd.f32 %v2003, %v2247
        %v2255 = vadd.f32 %v2005, %v2247
        %v2256 = vadd.f32 %v2007, %v2247
        %v2257 = vadd.f32 %v2009, %v2247
        %v2258 = vadd.f32 %v2011, %v2247
        %v2259 = vadd.f32 %v2013, %v2247
        %v2260 = vadd.f32 %v2015, %v2247
        %v2261 = vadd.f32 %v2017, %v2247
        %v2262 = vadd.f32 %v2019, %v2247
        %v2263 = vadd.f32 %v2021, %v2247
        %v2264 = vadd.f32 %v2023, %v2247
        %v2265 = vadd.f32 %v2025, %v2247
        %v2266 = vadd.f32 %v2027, %v2247
        %v2267 = vadd.f32 %v2029, %v2247
        %v2268 = vadd.f32 %v2031, %v2247
        %v2269 = vadd.f32 %v2033, %v2247
        %v2270 = vadd.f32 %v2035, %v2247
        %v2271 = vadd.f32 %v2037, %v2247
        %v2272 = vadd.f32 %v2039, %v2247
        %v2273 = vadd.f32 %v2041, %v2247
        %v2274 = vadd.f32 %v2043, %v2247
        %v2275 = vadd.f32 %v2045, %v2247
        %v2276 = vadd.f32 %v2047, %v2247
        %v2277 = vadd.f32 %v2049, %v2247
        %v2278 = vadd.f32 %v2051, %v2247
        %v2279 = vadd.f32 %v2053, %v2247
        %v2280 = vadd.f32 %v2055, %v2247
        %v2281 = vadd.f32 %v2057, %v2247
        %v2282 = vadd.f32 %v2059, %v2247
        %v2283 = vadd.f32 %v2061, %v2247
        %v2284 = vadd.f32 %v2063, %v2247
        %v2285 = vadd.f32 %v2065, %v2247
        %v2286 = vadd.f32 %v2067, %v2247
        %v2287 = vadd.f32 %v2069, %v2247
        %v2288 = vadd.f32 %v2071, %v2247
        %v2289 = vadd.f32 %v2073, %v2247
        %v2290 = vadd.f32 %v2075, %v2247
        %v2291 = vadd.f32 %v2077, %v2247
        %v2292 = vadd.f32 %v2079, %v2247
        %v2293 = vadd.f32 %v2081, %v2247
        %v2294 = vadd.f32 %v2083, %v2247
        %v2295 = vadd.f32 %v2085, %v2247
        %v2296 = vadd.f32 %v2087, %v2247
        %v2297 = vadd.f32 %v2089, %v2247
        %v2298 = vadd.f32 %v2091, %v2247
        %v2299 = vadd.f32 %v2093, %v2247
        %v2300 = vadd.f32 %v2095, %v2247
        %v2301 = vadd.f32 %v2097, %v2247
        %v2302 = vadd.f32 %v2099, %v2247
        %v2303 = vadd.f32 %v2101, %v2247
        %v2304 = vadd.f32 %v2103, %v2247
        %v2305 = vadd.f32 %v2105, %v2247
        %v2306 = vadd.f32 %v2107, %v2247
        %v2307 = vadd.f32 %v2109, %v2247
        %v2308 = vadd.f32 %v2111, %v2247
        %v2309 = vadd.f32 %v2113, %v2247
        %v2310 = vadd.f32 %v2115, %v2247
        %v2311 = vadd.f32 %v2117, %v2247
        %v2312 = vadd.f32 %v2119, %v2247
        %v2313 = vadd.f32 %v2121, %v2247
        %v2314 = vadd.f32 %v2123, %v2247
        %v2315 = vadd.f32 %v2125, %v2247
        %v2316 = vadd.f32 %v2127, %v2247
        %v2317 = vadd.f32 %v2129, %v2247
        %v2318 = vadd.f32 %v2131, %v2247
        %v2319 = vadd.f32 %v2133, %v2247
        %v2320 = vadd.f32 %v2135, %v2247
        %v2321 = vadd.f32 %v2137, %v2247
        %v2322 = vadd.f32 %v2139, %v2247
        %v2323 = vadd.f32 %v2141, %v2247
        %v2324 = vadd.f32 %v2143, %v2247
        %v2325 = vadd.f32 %v2145, %v2247
        %v2326 = vadd.f32 %v2147, %v2247
        %v2327 = vadd.f32 %v2149, %v2247
        %v2328 = vadd.f32 %v2151, %v2247
        %v2329 = vadd.f32 %v2153, %v2247
        %v2330 = vadd.f32 %v2155, %v2247
        %v2331 = vadd.f32 %v2157, %v2247
        %v2332 = vadd.f32 %v2159, %v2247
        %v2333 = vadd.f32 %v2161, %v2247
        %v2334 = vadd.f32 %v2163, %v2247
        %v2335 = vadd.f32 %v2165, %v2247
        %v2336 = vadd.f32 %v2167, %v2247
        %v2337 = vadd.f32 %v2169, %v2247
        %v2338 = vadd.f32 %v2171, %v2247
        %v2339 = vadd.f32 %v2173, %v2247
        %v2340 = vadd.f32 %v2175, %v2247
        %v2341 = vadd.f32 %v2177, %v2247
        %v2342 = vadd.f32 %v2179, %v2247
        %v2343 = vadd.f32 %v2181, %v2247
        %v2344 = vadd.f32 %v2183, %v2247
        %v2345 = vadd.f32 %v2185, %v2247
        %v2346 = vadd.f32 %v2187, %v2247
        %v2347 = vadd.f32 %v2189, %v2247
        %v2348 = vadd.f32 %v2191, %v2247
        %v2349 = vadd.f32 %v2193, %v2247
        %v2350 = vadd.f32 %v2195, %v2247
        %v2351 = vadd.f32 %v2197, %v2247
        %v2352 = vadd.f32 %v2199, %v2247
        %v2353 = vadd.f32 %v2201, %v2247
        %v2354 = vadd.f32 %v2203, %v2247
        %v2355 = vadd.f32 %v2205, %v2247
        %v2356 = vadd.f32 %v2207, %v2247
        %v2357 = vadd.f32 %v2209, %v2247
        %v2358 = vadd.f32 %v2211, %v2247
        %v2359 = vadd.f32 %v2213, %v2247
        %v2360 = vadd.f32 %v2215, %v2247
        %v2361 = vadd.f32 %v2217, %v2247
        %v2362 = vadd.f32 %v2219, %v2247
        %v2363 = vadd.f32 %v2221, %v2247
        %v2364 = vadd.f32 %v2223, %v2247
        %v2365 = vadd.f32 %v2225, %v2247
        %v2366 = vadd.f32 %v2227, %v2247
        %v2367 = vadd.f32 %v2229, %v2247
        %v2368 = vadd.f32 %v2231, %v2247
        %v2369 = vadd.f32 %v2233, %v2247
        %v2370 = vadd.f32 %v2235, %v2247
        %v2371 = vadd.f32 %v2237, %v2247
        %v2372 = vadd.f32 %v2239, %v2247
        %v2373 = vadd.f32 %v2241, %v2247
        %v2374 = vadd.f32 %v2243, %v2247
        %v2375 = vadd.f32 %v2245, %v2247
        %v2504 = vlaneseq
        %v2505 = vand.u32 %v2504, 127
        %v2506 = vlaneseq
        %v2507 = vshrl.u32 %v2506, 7
        %v2508 = vsub.s32 %v2505, %v2507
        %v2509 = vrot.slane %v2248, %v2508
        %v2510 = vadd.s32 %v2505, 4294967288
        %v2511 = vlaneseq
        %v2512 = vshrl.u32 %v2511, 7
        %v2513 = vsub.s32 %v2510, %v2512
        %v2514 = vrot.slane %v2249, %v2513
        %vm2515 = vcmask 130112
        %v2516 = vsel %vm2515, %v2514, %v2509
        %v2517 = vadd.s32 %v2505, 4294967280
        %v2518 = vlaneseq
        %v2519 = vshrl.u32 %v2518, 7
        %v2520 = vsub.s32 %v2517, %v2519
        %v2521 = vrot.slane %v2250, %v2520
        %vm2522 = vcmask 195712
        %v2523 = vsel %vm2522, %v2521, %v2516
        %v2524 = vadd.s32 %v2505, 4294967272
        %v2525 = vlaneseq
        %v2526 = vshrl.u32 %v2525, 7
        %v2527 = vsub.s32 %v2524, %v2526
        %v2528 = vrot.slane %v2251, %v2527
        %vm2529 = vcmask 261312
        %v2530 = vsel %vm2529, %v2528, %v2523
        %v2531 = vadd.s32 %v2505, 4294967264
        %v2532 = vlaneseq
        %v2533 = vshrl.u32 %v2532, 7
        %v2534 = vsub.s32 %v2531, %v2533
        %v2535 = vrot.slane %v2252, %v2534
        %vm2536 = vcmask 326912
        %v2537 = vsel %vm2536, %v2535, %v2530
        %v2538 = vadd.s32 %v2505, 4294967256
        %v2539 = vlaneseq
        %v2540 = vshrl.u32 %v2539, 7
        %v2541 = vsub.s32 %v2538, %v2540
        %v2542 = vrot.slane %v2253, %v2541
        %vm2543 = vcmask 392512
        %v2544 = vsel %vm2543, %v2542, %v2537
        %v2545 = vadd.s32 %v2505, 4294967248
        %v2546 = vlaneseq
        %v2547 = vshrl.u32 %v2546, 7
        %v2548 = vsub.s32 %v2545, %v2547
        %v2549 = vrot.slane %v2254, %v2548
        %vm2550 = vcmask 458112
        %v2551 = vsel %vm2550, %v2549, %v2544
        %v2552 = vadd.s32 %v2505, 4294967240
        %v2553 = vlaneseq
        %v2554 = vshrl.u32 %v2553, 7
        %v2555 = vsub.s32 %v2552, %v2554
        %v2556 = vrot.slane %v2255, %v2555
        %vm2557 = vcmask 523712
        %v2558 = vsel %vm2557, %v2556, %v2551
        %v2559 = vadd.s32 %v2505, 4294967232
        %v2560 = vlaneseq
        %v2561 = vshrl.u32 %v2560, 7
        %v2562 = vsub.s32 %v2559, %v2561
        %v2563 = vrot.slane %v2256, %v2562
        %vm2564 = vcmask 589312
        %v2565 = vsel %vm2564, %v2563, %v2558
        %v2566 = vadd.s32 %v2505, 4294967224
        %v2567 = vlaneseq
        %v2568 = vshrl.u32 %v2567, 7
        %v2569 = vsub.s32 %v2566, %v2568
        %v2570 = vrot.slane %v2257, %v2569
        %vm2571 = vcmask 654912
        %v2572 = vsel %vm2571, %v2570, %v2565
        %v2573 = vadd.s32 %v2505, 4294967216
        %v2574 = vlaneseq
        %v2575 = vshrl.u32 %v2574, 7
        %v2576 = vsub.s32 %v2573, %v2575
        %v2577 = vrot.slane %v2258, %v2576
        %vm2578 = vcmask 720512
        %v2579 = vsel %vm2578, %v2577, %v2572
        %v2580 = vadd.s32 %v2505, 4294967208
        %v2581 = vlaneseq
        %v2582 = vshrl.u32 %v2581, 7
        %v2583 = vsub.s32 %v2580, %v2582
        %v2584 = vrot.slane %v2259, %v2583
        %vm2585 = vcmask 786112
        %v2586 = vsel %vm2585, %v2584, %v2579
        %v2587 = vadd.s32 %v2505, 4294967200
        %v2588 = vlaneseq
        %v2589 = vshrl.u32 %v2588, 7
        %v2590 = vsub.s32 %v2587, %v2589
        %v2591 = vrot.slane %v2260, %v2590
        %vm2592 = vcmask 851712
        %v2593 = vsel %vm2592, %v2591, %v2586
        %v2594 = vadd.s32 %v2505, 4294967192
        %v2595 = vlaneseq
        %v2596 = vshrl.u32 %v2595, 7
        %v2597 = vsub.s32 %v2594, %v2596
        %v2598 = vrot.slane %v2261, %v2597
        %vm2599 = vcmask 917312
        %v2600 = vsel %vm2599, %v2598, %v2593
        %v2601 = vadd.s32 %v2505, 4294967184
        %v2602 = vlaneseq
        %v2603 = vshrl.u32 %v2602, 7
        %v2604 = vsub.s32 %v2601, %v2603
        %v2605 = vrot.slane %v2262, %v2604
        %vm2606 = vcmask 982912
        %v2607 = vsel %vm2606, %v2605, %v2600
        %v2608 = vadd.s32 %v2505, 4294967176
        %v2609 = vlaneseq
        %v2610 = vshrl.u32 %v2609, 7
        %v2611 = vsub.s32 %v2608, %v2610
        %v2612 = vrot.slane %v2263, %v2611
        %vm2613 = vcmask 1048512
        %v2614 = vsel %vm2613, %v2612, %v2607
        %v2615 = vlaneseq
        %v2616 = vshrl.u32 %v2615, 7
        %v2617 = vsub.s32 %v2505, %v2616
        %v2618 = vrot.slane %v2264, %v2617
        %v2619 = vlaneseq
        %v2620 = vshrl.u32 %v2619, 7
        %v2621 = vsub.s32 %v2510, %v2620
        %v2622 = vrot.slane %v2265, %v2621
        %v2623 = vsel %vm2515, %v2622, %v2618
        %v2624 = vlaneseq
        %v2625 = vshrl.u32 %v2624, 7
        %v2626 = vsub.s32 %v2517, %v2625
        %v2627 = vrot.slane %v2266, %v2626
        %v2628 = vsel %vm2522, %v2627, %v2623
        %v2629 = vlaneseq
        %v2630 = vshrl.u32 %v2629, 7
        %v2631 = vsub.s32 %v2524, %v2630
        %v2632 = vrot.slane %v2267, %v2631
        %v2633 = vsel %vm2529, %v2632, %v2628
        %v2634 = vlaneseq
        %v2635 = vshrl.u32 %v2634, 7
        %v2636 = vsub.s32 %v2531, %v2635
        %v2637 = vrot.slane %v2268, %v2636
        %v2638 = vsel %vm2536, %v2637, %v2633
        %v2639 = vlaneseq
        %v2640 = vshrl.u32 %v2639, 7
        %v2641 = vsub.s32 %v2538, %v2640
        %v2642 = vrot.slane %v2269, %v2641
        %v2643 = vsel %vm2543, %v2642, %v2638
        %v2644 = vlaneseq
        %v2645 = vshrl.u32 %v2644, 7
        %v2646 = vsub.s32 %v2545, %v2645
        %v2647 = vrot.slane %v2270, %v2646
        %v2648 = vsel %vm2550, %v2647, %v2643
        %v2649 = vlaneseq
        %v2650 = vshrl.u32 %v2649, 7
        %v2651 = vsub.s32 %v2552, %v2650
        %v2652 = vrot.slane %v2271, %v2651
        %v2653 = vsel %vm2557, %v2652, %v2648
        %v2654 = vlaneseq
        %v2655 = vshrl.u32 %v2654, 7
        %v2656 = vsub.s32 %v2559, %v2655
        %v2657 = vrot.slane %v2272, %v2656
        %v2658 = vsel %vm2564, %v2657, %v2653
        %v2659 = vlaneseq
        %v2660 = vshrl.u32 %v2659, 7
        %v2661 = vsub.s32 %v2566, %v2660
        %v2662 = vrot.slane %v2273, %v2661
        %v2663 = vsel %vm2571, %v2662, %v2658
        %v2664 = vlaneseq
        %v2665 = vshrl.u32 %v2664, 7
        %v2666 = vsub.s32 %v2573, %v2665
        %v2667 = vrot.slane %v2274, %v2666
        %v2668 = vsel %vm2578, %v2667, %v2663
        %v2669 = vlaneseq
        %v2670 = vshrl.u32 %v2669, 7
        %v2671 = vsub.s32 %v2580, %v2670
        %v2672 = vrot.slane %v2275, %v2671
        %v2673 = vsel %vm2585, %v2672, %v2668
        %v2674 = vlaneseq
        %v2675 = vshrl.u32 %v2674, 7
        %v2676 = vsub.s32 %v2587, %v2675
        %v2677 = vrot.slane %v2276, %v2676
        %v2678 = vsel %vm2592, %v2677, %v2673
        %v2679 = vlaneseq
        %v2680 = vshrl.u32 %v2679, 7
        %v2681 = vsub.s32 %v2594, %v2680
        %v2682 = vrot.slane %v2277, %v2681
        %v2683 = vsel %vm2599, %v2682, %v2678
        %v2684 = vlaneseq
        %v2685 = vshrl.u32 %v2684, 7
        %v2686 = vsub.s32 %v2601, %v2685
        %v2687 = vrot.slane %v2278, %v2686
        %v2688 = vsel %vm2606, %v2687, %v2683
        %v2689 = vlaneseq
        %v2690 = vshrl.u32 %v2689, 7
        %v2691 = vsub.s32 %v2608, %v2690
        %v2692 = vrot.slane %v2279, %v2691
        %v2693 = vsel %vm2613, %v2692, %v2688
        %v2694 = vlaneseq
        %v2695 = vshrl.u32 %v2694, 7
        %v2696 = vsub.s32 %v2505, %v2695
        %v2697 = vrot.slane %v2280, %v2696
        %v2698 = vlaneseq
        %v2699 = vshrl.u32 %v2698, 7
        %v2700 = vsub.s32 %v2510, %v2699
        %v2701 = vrot.slane %v2281, %v2700
        %v2702 = vsel %vm2515, %v2701, %v2697
        %v2703 = vlaneseq
        %v2704 = vshrl.u32 %v2703, 7
        %v2705 = vsub.s32 %v2517, %v2704
        %v2706 = vrot.slane %v2282, %v2705
        %v2707 = vsel %vm2522, %v2706, %v2702
        %v2708 = vlaneseq
        %v2709 = vshrl.u32 %v2708, 7
        %v2710 = vsub.s32 %v2524, %v2709
        %v2711 = vrot.slane %v2283, %v2710
        %v2712 = vsel %vm2529, %v2711, %v2707
        %v2713 = vlaneseq
        %v2714 = vshrl.u32 %v2713, 7
        %v2715 = vsub.s32 %v2531, %v2714
        %v2716 = vrot.slane %v2284, %v2715
        %v2717 = vsel %vm2536, %v2716, %v2712
        %v2718 = vlaneseq
        %v2719 = vshrl.u32 %v2718, 7
        %v2720 = vsub.s32 %v2538, %v2719
        %v2721 = vrot.slane %v2285, %v2720
        %v2722 = vsel %vm2543, %v2721, %v2717
        %v2723 = vlaneseq
        %v2724 = vshrl.u32 %v2723, 7
        %v2725 = vsub.s32 %v2545, %v2724
        %v2726 = vrot.slane %v2286, %v2725
        %v2727 = vsel %vm2550, %v2726, %v2722
        %v2728 = vlaneseq
        %v2729 = vshrl.u32 %v2728, 7
        %v2730 = vsub.s32 %v2552, %v2729
        %v2731 = vrot.slane %v2287, %v2730
        %v2732 = vsel %vm2557, %v2731, %v2727
        %v2733 = vlaneseq
        %v2734 = vshrl.u32 %v2733, 7
        %v2735 = vsub.s32 %v2559, %v2734
        %v2736 = vrot.slane %v2288, %v2735
        %v2737 = vsel %vm2564, %v2736, %v2732
        %v2738 = vlaneseq
        %v2739 = vshrl.u32 %v2738, 7
        %v2740 = vsub.s32 %v2566, %v2739
        %v2741 = vrot.slane %v2289, %v2740
        %v2742 = vsel %vm2571, %v2741, %v2737
        %v2743 = vlaneseq
        %v2744 = vshrl.u32 %v2743, 7
        %v2745 = vsub.s32 %v2573, %v2744
        %v2746 = vrot.slane %v2290, %v2745
        %v2747 = vsel %vm2578, %v2746, %v2742
        %v2748 = vlaneseq
        %v2749 = vshrl.u32 %v2748, 7
        %v2750 = vsub.s32 %v2580, %v2749
        %v2751 = vrot.slane %v2291, %v2750
        %v2752 = vsel %vm2585, %v2751, %v2747
        %v2753 = vlaneseq
        %v2754 = vshrl.u32 %v2753, 7
        %v2755 = vsub.s32 %v2587, %v2754
        %v2756 = vrot.slane %v2292, %v2755
        %v2757 = vsel %vm2592, %v2756, %v2752
        %v2758 = vlaneseq
        %v2759 = vshrl.u32 %v2758, 7
        %v2760 = vsub.s32 %v2594, %v2759
        %v2761 = vrot.slane %v2293, %v2760
        %v2762 = vsel %vm2599, %v2761, %v2757
        %v2763 = vlaneseq
        %v2764 = vshrl.u32 %v2763, 7
        %v2765 = vsub.s32 %v2601, %v2764
        %v2766 = vrot.slane %v2294, %v2765
        %v2767 = vsel %vm2606, %v2766, %v2762
        %v2768 = vlaneseq
        %v2769 = vshrl.u32 %v2768, 7
        %v2770 = vsub.s32 %v2608, %v2769
        %v2771 = vrot.slane %v2295, %v2770
        %v2772 = vsel %vm2613, %v2771, %v2767
        %v2773 = vlaneseq
        %v2774 = vshrl.u32 %v2773, 7
        %v2775 = vsub.s32 %v2505, %v2774
        %v2776 = vrot.slane %v2296, %v2775
        %v2777 = vlaneseq
        %v2778 = vshrl.u32 %v2777, 7
        %v2779 = vsub.s32 %v2510, %v2778
        %v2780 = vrot.slane %v2297, %v2779
        %v2781 = vsel %vm2515, %v2780, %v2776
        %v2782 = vlaneseq
        %v2783 = vshrl.u32 %v2782, 7
        %v2784 = vsub.s32 %v2517, %v2783
        %v2785 = vrot.slane %v2298, %v2784
        %v2786 = vsel %vm2522, %v2785, %v2781
        %v2787 = vlaneseq
        %v2788 = vshrl.u32 %v2787, 7
        %v2789 = vsub.s32 %v2524, %v2788
        %v2790 = vrot.slane %v2299, %v2789
        %v2791 = vsel %vm2529, %v2790, %v2786
        %v2792 = vlaneseq
        %v2793 = vshrl.u32 %v2792, 7
        %v2794 = vsub.s32 %v2531, %v2793
        %v2795 = vrot.slane %v2300, %v2794
        %v2796 = vsel %vm2536, %v2795, %v2791
        %v2797 = vlaneseq
        %v2798 = vshrl.u32 %v2797, 7
        %v2799 = vsub.s32 %v2538, %v2798
        %v2800 = vrot.slane %v2301, %v2799
        %v2801 = vsel %vm2543, %v2800, %v2796
        %v2802 = vlaneseq
        %v2803 = vshrl.u32 %v2802, 7
        %v2804 = vsub.s32 %v2545, %v2803
        %v2805 = vrot.slane %v2302, %v2804
        %v2806 = vsel %vm2550, %v2805, %v2801
        %v2807 = vlaneseq
        %v2808 = vshrl.u32 %v2807, 7
        %v2809 = vsub.s32 %v2552, %v2808
        %v2810 = vrot.slane %v2303, %v2809
        %v2811 = vsel %vm2557, %v2810, %v2806
        %v2812 = vlaneseq
        %v2813 = vshrl.u32 %v2812, 7
        %v2814 = vsub.s32 %v2559, %v2813
        %v2815 = vrot.slane %v2304, %v2814
        %v2816 = vsel %vm2564, %v2815, %v2811
        %v2817 = vlaneseq
        %v2818 = vshrl.u32 %v2817, 7
        %v2819 = vsub.s32 %v2566, %v2818
        %v2820 = vrot.slane %v2305, %v2819
        %v2821 = vsel %vm2571, %v2820, %v2816
        %v2822 = vlaneseq
        %v2823 = vshrl.u32 %v2822, 7
        %v2824 = vsub.s32 %v2573, %v2823
        %v2825 = vrot.slane %v2306, %v2824
        %v2826 = vsel %vm2578, %v2825, %v2821
        %v2827 = vlaneseq
        %v2828 = vshrl.u32 %v2827, 7
        %v2829 = vsub.s32 %v2580, %v2828
        %v2830 = vrot.slane %v2307, %v2829
        %v2831 = vsel %vm2585, %v2830, %v2826
        %v2832 = vlaneseq
        %v2833 = vshrl.u32 %v2832, 7
        %v2834 = vsub.s32 %v2587, %v2833
        %v2835 = vrot.slane %v2308, %v2834
        %v2836 = vsel %vm2592, %v2835, %v2831
        %v2837 = vlaneseq
        %v2838 = vshrl.u32 %v2837, 7
        %v2839 = vsub.s32 %v2594, %v2838
        %v2840 = vrot.slane %v2309, %v2839
        %v2841 = vsel %vm2599, %v2840, %v2836
        %v2842 = vlaneseq
        %v2843 = vshrl.u32 %v2842, 7
        %v2844 = vsub.s32 %v2601, %v2843
        %v2845 = vrot.slane %v2310, %v2844
        %v2846 = vsel %vm2606, %v2845, %v2841
        %v2847 = vlaneseq
        %v2848 = vshrl.u32 %v2847, 7
        %v2849 = vsub.s32 %v2608, %v2848
        %v2850 = vrot.slane %v2311, %v2849
        %v2851 = vsel %vm2613, %v2850, %v2846
        %v2852 = vlaneseq
        %v2853 = vshrl.u32 %v2852, 7
        %v2854 = vsub.s32 %v2505, %v2853
        %v2855 = vrot.slane %v2312, %v2854
        %v2856 = vlaneseq
        %v2857 = vshrl.u32 %v2856, 7
        %v2858 = vsub.s32 %v2510, %v2857
        %v2859 = vrot.slane %v2313, %v2858
        %v2860 = vsel %vm2515, %v2859, %v2855
        %v2861 = vlaneseq
        %v2862 = vshrl.u32 %v2861, 7
        %v2863 = vsub.s32 %v2517, %v2862
        %v2864 = vrot.slane %v2314, %v2863
        %v2865 = vsel %vm2522, %v2864, %v2860
        %v2866 = vlaneseq
        %v2867 = vshrl.u32 %v2866, 7
        %v2868 = vsub.s32 %v2524, %v2867
        %v2869 = vrot.slane %v2315, %v2868
        %v2870 = vsel %vm2529, %v2869, %v2865
        %v2871 = vlaneseq
        %v2872 = vshrl.u32 %v2871, 7
        %v2873 = vsub.s32 %v2531, %v2872
        %v2874 = vrot.slane %v2316, %v2873
        %v2875 = vsel %vm2536, %v2874, %v2870
        %v2876 = vlaneseq
        %v2877 = vshrl.u32 %v2876, 7
        %v2878 = vsub.s32 %v2538, %v2877
        %v2879 = vrot.slane %v2317, %v2878
        %v2880 = vsel %vm2543, %v2879, %v2875
        %v2881 = vlaneseq
        %v2882 = vshrl.u32 %v2881, 7
        %v2883 = vsub.s32 %v2545, %v2882
        %v2884 = vrot.slane %v2318, %v2883
        %v2885 = vsel %vm2550, %v2884, %v2880
        %v2886 = vlaneseq
        %v2887 = vshrl.u32 %v2886, 7
        %v2888 = vsub.s32 %v2552, %v2887
        %v2889 = vrot.slane %v2319, %v2888
        %v2890 = vsel %vm2557, %v2889, %v2885
        %v2891 = vlaneseq
        %v2892 = vshrl.u32 %v2891, 7
        %v2893 = vsub.s32 %v2559, %v2892
        %v2894 = vrot.slane %v2320, %v2893
        %v2895 = vsel %vm2564, %v2894, %v2890
        %v2896 = vlaneseq
        %v2897 = vshrl.u32 %v2896, 7
        %v2898 = vsub.s32 %v2566, %v2897
        %v2899 = vrot.slane %v2321, %v2898
        %v2900 = vsel %vm2571, %v2899, %v2895
        %v2901 = vlaneseq
        %v2902 = vshrl.u32 %v2901, 7
        %v2903 = vsub.s32 %v2573, %v2902
        %v2904 = vrot.slane %v2322, %v2903
        %v2905 = vsel %vm2578, %v2904, %v2900
        %v2906 = vlaneseq
        %v2907 = vshrl.u32 %v2906, 7
        %v2908 = vsub.s32 %v2580, %v2907
        %v2909 = vrot.slane %v2323, %v2908
        %v2910 = vsel %vm2585, %v2909, %v2905
        %v2911 = vlaneseq
        %v2912 = vshrl.u32 %v2911, 7
        %v2913 = vsub.s32 %v2587, %v2912
        %v2914 = vrot.slane %v2324, %v2913
        %v2915 = vsel %vm2592, %v2914, %v2910
        %v2916 = vlaneseq
        %v2917 = vshrl.u32 %v2916, 7
        %v2918 = vsub.s32 %v2594, %v2917
        %v2919 = vrot.slane %v2325, %v2918
        %v2920 = vsel %vm2599, %v2919, %v2915
        %v2921 = vlaneseq
        %v2922 = vshrl.u32 %v2921, 7
        %v2923 = vsub.s32 %v2601, %v2922
        %v2924 = vrot.slane %v2326, %v2923
        %v2925 = vsel %vm2606, %v2924, %v2920
        %v2926 = vlaneseq
        %v2927 = vshrl.u32 %v2926, 7
        %v2928 = vsub.s32 %v2608, %v2927
        %v2929 = vrot.slane %v2327, %v2928
        %v2930 = vsel %vm2613, %v2929, %v2925
        %v2931 = vlaneseq
        %v2932 = vshrl.u32 %v2931, 7
        %v2933 = vsub.s32 %v2505, %v2932
        %v2934 = vrot.slane %v2328, %v2933
        %v2935 = vlaneseq
        %v2936 = vshrl.u32 %v2935, 7
        %v2937 = vsub.s32 %v2510, %v2936
        %v2938 = vrot.slane %v2329, %v2937
        %v2939 = vsel %vm2515, %v2938, %v2934
        %v2940 = vlaneseq
        %v2941 = vshrl.u32 %v2940, 7
        %v2942 = vsub.s32 %v2517, %v2941
        %v2943 = vrot.slane %v2330, %v2942
        %v2944 = vsel %vm2522, %v2943, %v2939
        %v2945 = vlaneseq
        %v2946 = vshrl.u32 %v2945, 7
        %v2947 = vsub.s32 %v2524, %v2946
        %v2948 = vrot.slane %v2331, %v2947
        %v2949 = vsel %vm2529, %v2948, %v2944
        %v2950 = vlaneseq
        %v2951 = vshrl.u32 %v2950, 7
        %v2952 = vsub.s32 %v2531, %v2951
        %v2953 = vrot.slane %v2332, %v2952
        %v2954 = vsel %vm2536, %v2953, %v2949
        %v2955 = vlaneseq
        %v2956 = vshrl.u32 %v2955, 7
        %v2957 = vsub.s32 %v2538, %v2956
        %v2958 = vrot.slane %v2333, %v2957
        %v2959 = vsel %vm2543, %v2958, %v2954
        %v2960 = vlaneseq
        %v2961 = vshrl.u32 %v2960, 7
        %v2962 = vsub.s32 %v2545, %v2961
        %v2963 = vrot.slane %v2334, %v2962
        %v2964 = vsel %vm2550, %v2963, %v2959
        %v2965 = vlaneseq
        %v2966 = vshrl.u32 %v2965, 7
        %v2967 = vsub.s32 %v2552, %v2966
        %v2968 = vrot.slane %v2335, %v2967
        %v2969 = vsel %vm2557, %v2968, %v2964
        %v2970 = vlaneseq
        %v2971 = vshrl.u32 %v2970, 7
        %v2972 = vsub.s32 %v2559, %v2971
        %v2973 = vrot.slane %v2336, %v2972
        %v2974 = vsel %vm2564, %v2973, %v2969
        %v2975 = vlaneseq
        %v2976 = vshrl.u32 %v2975, 7
        %v2977 = vsub.s32 %v2566, %v2976
        %v2978 = vrot.slane %v2337, %v2977
        %v2979 = vsel %vm2571, %v2978, %v2974
        %v2980 = vlaneseq
        %v2981 = vshrl.u32 %v2980, 7
        %v2982 = vsub.s32 %v2573, %v2981
        %v2983 = vrot.slane %v2338, %v2982
        %v2984 = vsel %vm2578, %v2983, %v2979
        %v2985 = vlaneseq
        %v2986 = vshrl.u32 %v2985, 7
        %v2987 = vsub.s32 %v2580, %v2986
        %v2988 = vrot.slane %v2339, %v2987
        %v2989 = vsel %vm2585, %v2988, %v2984
        %v2990 = vlaneseq
        %v2991 = vshrl.u32 %v2990, 7
        %v2992 = vsub.s32 %v2587, %v2991
        %v2993 = vrot.slane %v2340, %v2992
        %v2994 = vsel %vm2592, %v2993, %v2989
        %v2995 = vlaneseq
        %v2996 = vshrl.u32 %v2995, 7
        %v2997 = vsub.s32 %v2594, %v2996
        %v2998 = vrot.slane %v2341, %v2997
        %v2999 = vsel %vm2599, %v2998, %v2994
        %v3000 = vlaneseq
        %v3001 = vshrl.u32 %v3000, 7
        %v3002 = vsub.s32 %v2601, %v3001
        %v3003 = vrot.slane %v2342, %v3002
        %v3004 = vsel %vm2606, %v3003, %v2999
        %v3005 = vlaneseq
        %v3006 = vshrl.u32 %v3005, 7
        %v3007 = vsub.s32 %v2608, %v3006
        %v3008 = vrot.slane %v2343, %v3007
        %v3009 = vsel %vm2613, %v3008, %v3004
        %v3010 = vlaneseq
        %v3011 = vshrl.u32 %v3010, 7
        %v3012 = vsub.s32 %v2505, %v3011
        %v3013 = vrot.slane %v2344, %v3012
        %v3014 = vlaneseq
        %v3015 = vshrl.u32 %v3014, 7
        %v3016 = vsub.s32 %v2510, %v3015
        %v3017 = vrot.slane %v2345, %v3016
        %v3018 = vsel %vm2515, %v3017, %v3013
        %v3019 = vlaneseq
        %v3020 = vshrl.u32 %v3019, 7
        %v3021 = vsub.s32 %v2517, %v3020
        %v3022 = vrot.slane %v2346, %v3021
        %v3023 = vsel %vm2522, %v3022, %v3018
        %v3024 = vlaneseq
        %v3025 = vshrl.u32 %v3024, 7
        %v3026 = vsub.s32 %v2524, %v3025
        %v3027 = vrot.slane %v2347, %v3026
        %v3028 = vsel %vm2529, %v3027, %v3023
        %v3029 = vlaneseq
        %v3030 = vshrl.u32 %v3029, 7
        %v3031 = vsub.s32 %v2531, %v3030
        %v3032 = vrot.slane %v2348, %v3031
        %v3033 = vsel %vm2536, %v3032, %v3028
        %v3034 = vlaneseq
        %v3035 = vshrl.u32 %v3034, 7
        %v3036 = vsub.s32 %v2538, %v3035
        %v3037 = vrot.slane %v2349, %v3036
        %v3038 = vsel %vm2543, %v3037, %v3033
        %v3039 = vlaneseq
        %v3040 = vshrl.u32 %v3039, 7
        %v3041 = vsub.s32 %v2545, %v3040
        %v3042 = vrot.slane %v2350, %v3041
        %v3043 = vsel %vm2550, %v3042, %v3038
        %v3044 = vlaneseq
        %v3045 = vshrl.u32 %v3044, 7
        %v3046 = vsub.s32 %v2552, %v3045
        %v3047 = vrot.slane %v2351, %v3046
        %v3048 = vsel %vm2557, %v3047, %v3043
        %v3049 = vlaneseq
        %v3050 = vshrl.u32 %v3049, 7
        %v3051 = vsub.s32 %v2559, %v3050
        %v3052 = vrot.slane %v2352, %v3051
        %v3053 = vsel %vm2564, %v3052, %v3048
        %v3054 = vlaneseq
        %v3055 = vshrl.u32 %v3054, 7
        %v3056 = vsub.s32 %v2566, %v3055
        %v3057 = vrot.slane %v2353, %v3056
        %v3058 = vsel %vm2571, %v3057, %v3053
        %v3059 = vlaneseq
        %v3060 = vshrl.u32 %v3059, 7
        %v3061 = vsub.s32 %v2573, %v3060
        %v3062 = vrot.slane %v2354, %v3061
        %v3063 = vsel %vm2578, %v3062, %v3058
        %v3064 = vlaneseq
        %v3065 = vshrl.u32 %v3064, 7
        %v3066 = vsub.s32 %v2580, %v3065
        %v3067 = vrot.slane %v2355, %v3066
        %v3068 = vsel %vm2585, %v3067, %v3063
        %v3069 = vlaneseq
        %v3070 = vshrl.u32 %v3069, 7
        %v3071 = vsub.s32 %v2587, %v3070
        %v3072 = vrot.slane %v2356, %v3071
        %v3073 = vsel %vm2592, %v3072, %v3068
        %v3074 = vlaneseq
        %v3075 = vshrl.u32 %v3074, 7
        %v3076 = vsub.s32 %v2594, %v3075
        %v3077 = vrot.slane %v2357, %v3076
        %v3078 = vsel %vm2599, %v3077, %v3073
        %v3079 = vlaneseq
        %v3080 = vshrl.u32 %v3079, 7
        %v3081 = vsub.s32 %v2601, %v3080
        %v3082 = vrot.slane %v2358, %v3081
        %v3083 = vsel %vm2606, %v3082, %v3078
        %v3084 = vlaneseq
        %v3085 = vshrl.u32 %v3084, 7
        %v3086 = vsub.s32 %v2608, %v3085
        %v3087 = vrot.slane %v2359, %v3086
        %v3088 = vsel %vm2613, %v3087, %v3083
        %v3089 = vlaneseq
        %v3090 = vshrl.u32 %v3089, 7
        %v3091 = vsub.s32 %v2505, %v3090
        %v3092 = vrot.slane %v2360, %v3091
        %v3093 = vlaneseq
        %v3094 = vshrl.u32 %v3093, 7
        %v3095 = vsub.s32 %v2510, %v3094
        %v3096 = vrot.slane %v2361, %v3095
        %v3097 = vsel %vm2515, %v3096, %v3092
        %v3098 = vlaneseq
        %v3099 = vshrl.u32 %v3098, 7
        %v3100 = vsub.s32 %v2517, %v3099
        %v3101 = vrot.slane %v2362, %v3100
        %v3102 = vsel %vm2522, %v3101, %v3097
        %v3103 = vlaneseq
        %v3104 = vshrl.u32 %v3103, 7
        %v3105 = vsub.s32 %v2524, %v3104
        %v3106 = vrot.slane %v2363, %v3105
        %v3107 = vsel %vm2529, %v3106, %v3102
        %v3108 = vlaneseq
        %v3109 = vshrl.u32 %v3108, 7
        %v3110 = vsub.s32 %v2531, %v3109
        %v3111 = vrot.slane %v2364, %v3110
        %v3112 = vsel %vm2536, %v3111, %v3107
        %v3113 = vlaneseq
        %v3114 = vshrl.u32 %v3113, 7
        %v3115 = vsub.s32 %v2538, %v3114
        %v3116 = vrot.slane %v2365, %v3115
        %v3117 = vsel %vm2543, %v3116, %v3112
        %v3118 = vlaneseq
        %v3119 = vshrl.u32 %v3118, 7
        %v3120 = vsub.s32 %v2545, %v3119
        %v3121 = vrot.slane %v2366, %v3120
        %v3122 = vsel %vm2550, %v3121, %v3117
        %v3123 = vlaneseq
        %v3124 = vshrl.u32 %v3123, 7
        %v3125 = vsub.s32 %v2552, %v3124
        %v3126 = vrot.slane %v2367, %v3125
        %v3127 = vsel %vm2557, %v3126, %v3122
        %v3128 = vlaneseq
        %v3129 = vshrl.u32 %v3128, 7
        %v3130 = vsub.s32 %v2559, %v3129
        %v3131 = vrot.slane %v2368, %v3130
        %v3132 = vsel %vm2564, %v3131, %v3127
        %v3133 = vlaneseq
        %v3134 = vshrl.u32 %v3133, 7
        %v3135 = vsub.s32 %v2566, %v3134
        %v3136 = vrot.slane %v2369, %v3135
        %v3137 = vsel %vm2571, %v3136, %v3132
        %v3138 = vlaneseq
        %v3139 = vshrl.u32 %v3138, 7
        %v3140 = vsub.s32 %v2573, %v3139
        %v3141 = vrot.slane %v2370, %v3140
        %v3142 = vsel %vm2578, %v3141, %v3137
        %v3143 = vlaneseq
        %v3144 = vshrl.u32 %v3143, 7
        %v3145 = vsub.s32 %v2580, %v3144
        %v3146 = vrot.slane %v2371, %v3145
        %v3147 = vsel %vm2585, %v3146, %v3142
        %v3148 = vlaneseq
        %v3149 = vshrl.u32 %v3148, 7
        %v3150 = vsub.s32 %v2587, %v3149
        %v3151 = vrot.slane %v2372, %v3150
        %v3152 = vsel %vm2592, %v3151, %v3147
        %v3153 = vlaneseq
        %v3154 = vshrl.u32 %v3153, 7
        %v3155 = vsub.s32 %v2594, %v3154
        %v3156 = vrot.slane %v2373, %v3155
        %v3157 = vsel %vm2599, %v3156, %v3152
        %v3158 = vlaneseq
        %v3159 = vshrl.u32 %v3158, 7
        %v3160 = vsub.s32 %v2601, %v3159
        %v3161 = vrot.slane %v2374, %v3160
        %v3162 = vsel %vm2606, %v3161, %v3157
        %v3163 = vlaneseq
        %v3164 = vshrl.u32 %v3163, 7
        %v3165 = vsub.s32 %v2608, %v3164
        %v3166 = vrot.slane %v2375, %v3165
        %v3167 = vsel %vm2613, %v3166, %v3162
        %vm3168 = vcmask 1041409
        %v3169 = vsel %vm3168, %v2693, %v2614
        %vm3170 = vcmask 1042434
        %v3171 = vsel %vm3170, %v2772, %v3169
        %vm3172 = vcmask 1043459
        %v3173 = vsel %vm3172, %v2851, %v3171
        %vm3174 = vcmask 1044484
        %v3175 = vsel %vm3174, %v2930, %v3173
        %vm3176 = vcmask 1045509
        %v3177 = vsel %vm3176, %v3009, %v3175
        %vm3178 = vcmask 1046534
        %v3179 = vsel %vm3178, %v3088, %v3177
        %vm3180 = vcmask 1047559
        %v3181 = vsel %vm3180, %v3167, %v3179
        %3183 = vmax.xlane.f32.xlu0 %v3181
        %v3184 = vpop.xlane.xlu0 %3183
        %v3186 = vlaneseq
        %v3187 = vshrl.u32 %v3186, 7
        %v3188 = vsub.s32 0, %v3187
        %v3189 = vrot.slane %v3184, %v3188
        %v3190 = vlaneseq
        %v3191 = vshrl.u32 %v3190, 7
        %v3192 = vsub.s32 1, %v3191
        %v3193 = vrot.slane %v3184, %v3192
        %v3194 = vlaneseq
        %v3195 = vshrl.u32 %v3194, 7
        %v3196 = vsub.s32 2, %v3195
        %v3197 = vrot.slane %v3184, %v3196
        %v3198 = vlaneseq
        %v3199 = vshrl.u32 %v3198, 7
        %v3200 = vsub.s32 3, %v3199
        %v3201 = vrot.slane %v3184, %v3200
        %v3202 = vlaneseq
        %v3203 = vshrl.u32 %v3202, 7
        %v3204 = vsub.s32 4, %v3203
        %v3205 = vrot.slane %v3184, %v3204
        %v3206 = vlaneseq
        %v3207 = vshrl.u32 %v3206, 7
        %v3208 = vsub.s32 5, %v3207
        %v3209 = vrot.slane %v3184, %v3208
        %v3210 = vlaneseq
        %v3211 = vshrl.u32 %v3210, 7
        %v3212 = vsub.s32 6, %v3211
        %v3213 = vrot.slane %v3184, %v3212
        %v3214 = vlaneseq
        %v3215 = vshrl.u32 %v3214, 7
        %v3216 = vsub.s32 7, %v3215
        %v3217 = vrot.slane %v3184, %v3216
        %v3226 = vsub.f32 %v2248, %v3189
        %v3227 = vsub.f32 %v2249, %v3189
        %v3228 = vsub.f32 %v2250, %v3189
        %v3229 = vsub.f32 %v2251, %v3189
        %v3230 = vsub.f32 %v2252, %v3189
        %v3231 = vsub.f32 %v2253, %v3189
        %v3232 = vsub.f32 %v2254, %v3189
        %v3233 = vsub.f32 %v2255, %v3189
        %v3234 = vsub.f32 %v2256, %v3189
        %v3235 = vsub.f32 %v2257, %v3189
        %v3236 = vsub.f32 %v2258, %v3189
        %v3237 = vsub.f32 %v2259, %v3189
        %v3238 = vsub.f32 %v2260, %v3189
        %v3239 = vsub.f32 %v2261, %v3189
        %v3240 = vsub.f32 %v2262, %v3189
        %v3241 = vsub.f32 %v2263, %v3189
        %v3242 = vsub.f32 %v2264, %v3193
        %v3243 = vsub.f32 %v2265, %v3193
        %v3244 = vsub.f32 %v2266, %v3193
        %v3245 = vsub.f32 %v2267, %v3193
        %v3246 = vsub.f32 %v2268, %v3193
        %v3247 = vsub.f32 %v2269, %v3193
        %v3248 = vsub.f32 %v2270, %v3193
        %v3249 = vsub.f32 %v2271, %v3193
        %v3250 = vsub.f32 %v2272, %v3193
        %v3251 = vsub.f32 %v2273, %v3193
        %v3252 = vsub.f32 %v2274, %v3193
        %v3253 = vsub.f32 %v2275, %v3193
        %v3254 = vsub.f32 %v2276, %v3193
        %v3255 = vsub.f32 %v2277, %v3193
        %v3256 = vsub.f32 %v2278, %v3193
        %v3257 = vsub.f32 %v2279, %v3193
        %v3258 = vsub.f32 %v2280, %v3197
        %v3259 = vsub.f32 %v2281, %v3197
        %v3260 = vsub.f32 %v2282, %v3197
        %v3261 = vsub.f32 %v2283, %v3197
        %v3262 = vsub.f32 %v2284, %v3197
        %v3263 = vsub.f32 %v2285, %v3197
        %v3264 = vsub.f32 %v2286, %v3197
        %v3265 = vsub.f32 %v2287, %v3197
        %v3266 = vsub.f32 %v2288, %v3197
        %v3267 = vsub.f32 %v2289, %v3197
        %v3268 = vsub.f32 %v2290, %v3197
        %v3269 = vsub.f32 %v2291, %v3197
        %v3270 = vsub.f32 %v2292, %v3197
        %v3271 = vsub.f32 %v2293, %v3197
        %v3272 = vsub.f32 %v2294, %v3197
        %v3273 = vsub.f32 %v2295, %v3197
        %v3274 = vsub.f32 %v2296, %v3201
        %v3275 = vsub.f32 %v2297, %v3201
        %v3276 = vsub.f32 %v2298, %v3201
        %v3277 = vsub.f32 %v2299, %v3201
        %v3278 = vsub.f32 %v2300, %v3201
        %v3279 = vsub.f32 %v2301, %v3201
        %v3280 = vsub.f32 %v2302, %v3201
        %v3281 = vsub.f32 %v2303, %v3201
        %v3282 = vsub.f32 %v2304, %v3201
        %v3283 = vsub.f32 %v2305, %v3201
        %v3284 = vsub.f32 %v2306, %v3201
        %v3285 = vsub.f32 %v2307, %v3201
        %v3286 = vsub.f32 %v2308, %v3201
        %v3287 = vsub.f32 %v2309, %v3201
        %v3288 = vsub.f32 %v2310, %v3201
        %v3289 = vsub.f32 %v2311, %v3201
        %v3290 = vsub.f32 %v2312, %v3205
        %v3291 = vsub.f32 %v2313, %v3205
        %v3292 = vsub.f32 %v2314, %v3205
        %v3293 = vsub.f32 %v2315, %v3205
        %v3294 = vsub.f32 %v2316, %v3205
        %v3295 = vsub.f32 %v2317, %v3205
        %v3296 = vsub.f32 %v2318, %v3205
        %v3297 = vsub.f32 %v2319, %v3205
        %v3298 = vsub.f32 %v2320, %v3205
        %v3299 = vsub.f32 %v2321, %v3205
        %v3300 = vsub.f32 %v2322, %v3205
        %v3301 = vsub.f32 %v2323, %v3205
        %v3302 = vsub.f32 %v2324, %v3205
        %v3303 = vsub.f32 %v2325, %v3205
        %v3304 = vsub.f32 %v2326, %v3205
        %v3305 = vsub.f32 %v2327, %v3205
        %v3306 = vsub.f32 %v2328, %v3209
        %v3307 = vsub.f32 %v2329, %v3209
        %v3308 = vsub.f32 %v2330, %v3209
        %v3309 = vsub.f32 %v2331, %v3209
        %v3310 = vsub.f32 %v2332, %v3209
        %v3311 = vsub.f32 %v2333, %v3209
        %v3312 = vsub.f32 %v2334, %v3209
        %v3313 = vsub.f32 %v2335, %v3209
        %v3314 = vsub.f32 %v2336, %v3209
        %v3315 = vsub.f32 %v2337, %v3209
        %v3316 = vsub.f32 %v2338, %v3209
        %v3317 = vsub.f32 %v2339, %v3209
        %v3318 = vsub.f32 %v2340, %v3209
        %v3319 = vsub.f32 %v2341, %v3209
        %v3320 = vsub.f32 %v2342, %v3209
        %v3321 = vsub.f32 %v2343, %v3209
        %v3322 = vsub.f32 %v2344, %v3213
        %v3323 = vsub.f32 %v2345, %v3213
        %v3324 = vsub.f32 %v2346, %v3213
        %v3325 = vsub.f32 %v2347, %v3213
        %v3326 = vsub.f32 %v2348, %v3213
        %v3327 = vsub.f32 %v2349, %v3213
        %v3328 = vsub.f32 %v2350, %v3213
        %v3329 = vsub.f32 %v2351, %v3213
        %v3330 = vsub.f32 %v2352, %v3213
        %v3331 = vsub.f32 %v2353, %v3213
        %v3332 = vsub.f32 %v2354, %v3213
        %v3333 = vsub.f32 %v2355, %v3213
        %v3334 = vsub.f32 %v2356, %v3213
        %v3335 = vsub.f32 %v2357, %v3213
        %v3336 = vsub.f32 %v2358, %v3213
        %v3337 = vsub.f32 %v2359, %v3213
        %v3338 = vsub.f32 %v2360, %v3217
        %v3339 = vsub.f32 %v2361, %v3217
        %v3340 = vsub.f32 %v2362, %v3217
        %v3341 = vsub.f32 %v2363, %v3217
        %v3342 = vsub.f32 %v2364, %v3217
        %v3343 = vsub.f32 %v2365, %v3217
        %v3344 = vsub.f32 %v2366, %v3217
        %v3345 = vsub.f32 %v2367, %v3217
        %v3346 = vsub.f32 %v2368, %v3217
        %v3347 = vsub.f32 %v2369, %v3217
        %v3348 = vsub.f32 %v2370, %v3217
        %v3349 = vsub.f32 %v2371, %v3217
        %v3350 = vsub.f32 %v2372, %v3217
        %v3351 = vsub.f32 %v2373, %v3217
        %v3352 = vsub.f32 %v2374, %v3217
        %v3353 = vsub.f32 %v2375, %v3217
        %v3354 = vmul.f32 %v3226, 1.442695
        %v3355 = vpow.pop %v3354
        %v3356 = vmul.f32 %v3227, 1.442695
        %v3357 = vpow.pop %v3356
        %v3358 = vmul.f32 %v3228, 1.442695
        %v3359 = vpow.pop %v3358
        %v3360 = vmul.f32 %v3229, 1.442695
        %v3361 = vpow.pop %v3360
        %v3362 = vmul.f32 %v3230, 1.442695
        %v3363 = vpow.pop %v3362
        %v3364 = vmul.f32 %v3231, 1.442695
        %v3365 = vpow.pop %v3364
        %v3366 = vmul.f32 %v3232, 1.442695
        %v3367 = vpow.pop %v3366
        %v3368 = vmul.f32 %v3233, 1.442695
        %v3369 = vpow.pop %v3368
        %v3370 = vmul.f32 %v3234, 1.442695
        %v3371 = vpow.pop %v3370
        %v3372 = vmul.f32 %v3235, 1.442695
        %v3373 = vpow.pop %v3372
        %v3374 = vmul.f32 %v3236, 1.442695
        %v3375 = vpow.pop %v3374
        %v3376 = vmul.f32 %v3237, 1.442695
        %v3377 = vpow.pop %v3376
        %v3378 = vmul.f32 %v3238, 1.442695
        %v3379 = vpow.pop %v3378
        %v3380 = vmul.f32 %v3239, 1.442695
        %v3381 = vpow.pop %v3380
        %v3382 = vmul.f32 %v3240, 1.442695
        %v3383 = vpow.pop %v3382
        %v3384 = vmul.f32 %v3241, 1.442695
        %v3385 = vpow.pop %v3384
        %v3386 = vmul.f32 %v3242, 1.442695
        %v3387 = vpow.pop %v3386
        %v3388 = vmul.f32 %v3243, 1.442695
        %v3389 = vpow.pop %v3388
        %v3390 = vmul.f32 %v3244, 1.442695
        %v3391 = vpow.pop %v3390
        %v3392 = vmul.f32 %v3245, 1.442695
        %v3393 = vpow.pop %v3392
        %v3394 = vmul.f32 %v3246, 1.442695
        %v3395 = vpow.pop %v3394
        %v3396 = vmul.f32 %v3247, 1.442695
        %v3397 = vpow.pop %v3396
        %v3398 = vmul.f32 %v3248, 1.442695
        %v3399 = vpow.pop %v3398
        %v3400 = vmul.f32 %v3249, 1.442695
        %v3401 = vpow.pop %v3400
        %v3402 = vmul.f32 %v3250, 1.442695
        %v3403 = vpow.pop %v3402
        %v3404 = vmul.f32 %v3251, 1.442695
        %v3405 = vpow.pop %v3404
        %v3406 = vmul.f32 %v3252, 1.442695
        %v3407 = vpow.pop %v3406
        %v3408 = vmul.f32 %v3253, 1.442695
        %v3409 = vpow.pop %v3408
        %v3410 = vmul.f32 %v3254, 1.442695
        %v3411 = vpow.pop %v3410
        %v3412 = vmul.f32 %v3255, 1.442695
        %v3413 = vpow.pop %v3412
        %v3414 = vmul.f32 %v3256, 1.442695
        %v3415 = vpow.pop %v3414
        %v3416 = vmul.f32 %v3257, 1.442695
        %v3417 = vpow.pop %v3416
        %v3418 = vmul.f32 %v3258, 1.442695
        %v3419 = vpow.pop %v3418
        %v3420 = vmul.f32 %v3259, 1.442695
        %v3421 = vpow.pop %v3420
        %v3422 = vmul.f32 %v3260, 1.442695
        %v3423 = vpow.pop %v3422
        %v3424 = vmul.f32 %v3261, 1.442695
        %v3425 = vpow.pop %v3424
        %v3426 = vmul.f32 %v3262, 1.442695
        %v3427 = vpow.pop %v3426
        %v3428 = vmul.f32 %v3263, 1.442695
        %v3429 = vpow.pop %v3428
        %v3430 = vmul.f32 %v3264, 1.442695
        %v3431 = vpow.pop %v3430
        %v3432 = vmul.f32 %v3265, 1.442695
        %v3433 = vpow.pop %v3432
        %v3434 = vmul.f32 %v3266, 1.442695
        %v3435 = vpow.pop %v3434
        %v3436 = vmul.f32 %v3267, 1.442695
        %v3437 = vpow.pop %v3436
        %v3438 = vmul.f32 %v3268, 1.442695
        %v3439 = vpow.pop %v3438
        %v3440 = vmul.f32 %v3269, 1.442695
        %v3441 = vpow.pop %v3440
        %v3442 = vmul.f32 %v3270, 1.442695
        %v3443 = vpow.pop %v3442
        %v3444 = vmul.f32 %v3271, 1.442695
        %v3445 = vpow.pop %v3444
        %v3446 = vmul.f32 %v3272, 1.442695
        %v3447 = vpow.pop %v3446
        %v3448 = vmul.f32 %v3273, 1.442695
        %v3449 = vpow.pop %v3448
        %v3450 = vmul.f32 %v3274, 1.442695
        %v3451 = vpow.pop %v3450
        %v3452 = vmul.f32 %v3275, 1.442695
        %v3453 = vpow.pop %v3452
        %v3454 = vmul.f32 %v3276, 1.442695
        %v3455 = vpow.pop %v3454
        %v3456 = vmul.f32 %v3277, 1.442695
        %v3457 = vpow.pop %v3456
        %v3458 = vmul.f32 %v3278, 1.442695
        %v3459 = vpow.pop %v3458
        %v3460 = vmul.f32 %v3279, 1.442695
        %v3461 = vpow.pop %v3460
        %v3462 = vmul.f32 %v3280, 1.442695
        %v3463 = vpow.pop %v3462
        %v3464 = vmul.f32 %v3281, 1.442695
        %v3465 = vpow.pop %v3464
        %v3466 = vmul.f32 %v3282, 1.442695
        %v3467 = vpow.pop %v3466
        %v3468 = vmul.f32 %v3283, 1.442695
        %v3469 = vpow.pop %v3468
        %v3470 = vmul.f32 %v3284, 1.442695
        %v3471 = vpow.pop %v3470
        %v3472 = vmul.f32 %v3285, 1.442695
        %v3473 = vpow.pop %v3472
        %v3474 = vmul.f32 %v3286, 1.442695
        %v3475 = vpow.pop %v3474
        %v3476 = vmul.f32 %v3287, 1.442695
        %v3477 = vpow.pop %v3476
        %v3478 = vmul.f32 %v3288, 1.442695
        %v3479 = vpow.pop %v3478
        %v3480 = vmul.f32 %v3289, 1.442695
        %v3481 = vpow.pop %v3480
        %v3482 = vmul.f32 %v3290, 1.442695
        %v3483 = vpow.pop %v3482
        %v3484 = vmul.f32 %v3291, 1.442695
        %v3485 = vpow.pop %v3484
        %v3486 = vmul.f32 %v3292, 1.442695
        %v3487 = vpow.pop %v3486
        %v3488 = vmul.f32 %v3293, 1.442695
        %v3489 = vpow.pop %v3488
        %v3490 = vmul.f32 %v3294, 1.442695
        %v3491 = vpow.pop %v3490
        %v3492 = vmul.f32 %v3295, 1.442695
        %v3493 = vpow.pop %v3492
        %v3494 = vmul.f32 %v3296, 1.442695
        %v3495 = vpow.pop %v3494
        %v3496 = vmul.f32 %v3297, 1.442695
        %v3497 = vpow.pop %v3496
        %v3498 = vmul.f32 %v3298, 1.442695
        %v3499 = vpow.pop %v3498
        %v3500 = vmul.f32 %v3299, 1.442695
        %v3501 = vpow.pop %v3500
        %v3502 = vmul.f32 %v3300, 1.442695
        %v3503 = vpow.pop %v3502
        %v3504 = vmul.f32 %v3301, 1.442695
        %v3505 = vpow.pop %v3504
        %v3506 = vmul.f32 %v3302, 1.442695
        %v3507 = vpow.pop %v3506
        %v3508 = vmul.f32 %v3303, 1.442695
        %v3509 = vpow.pop %v3508
        %v3510 = vmul.f32 %v3304, 1.442695
        %v3511 = vpow.pop %v3510
        %v3512 = vmul.f32 %v3305, 1.442695
        %v3513 = vpow.pop %v3512
        %v3514 = vmul.f32 %v3306, 1.442695
        %v3515 = vpow.pop %v3514
        %v3516 = vmul.f32 %v3307, 1.442695
        %v3517 = vpow.pop %v3516
        %v3518 = vmul.f32 %v3308, 1.442695
        %v3519 = vpow.pop %v3518
        %v3520 = vmul.f32 %v3309, 1.442695
        %v3521 = vpow.pop %v3520
        %v3522 = vmul.f32 %v3310, 1.442695
        %v3523 = vpow.pop %v3522
        %v3524 = vmul.f32 %v3311, 1.442695
        %v3525 = vpow.pop %v3524
        %v3526 = vmul.f32 %v3312, 1.442695
        %v3527 = vpow.pop %v3526
        %v3528 = vmul.f32 %v3313, 1.442695
        %v3529 = vpow.pop %v3528
        %v3530 = vmul.f32 %v3314, 1.442695
        %v3531 = vpow.pop %v3530
        %v3532 = vmul.f32 %v3315, 1.442695
        %v3533 = vpow.pop %v3532
        %v3534 = vmul.f32 %v3316, 1.442695
        %v3535 = vpow.pop %v3534
        %v3536 = vmul.f32 %v3317, 1.442695
        %v3537 = vpow.pop %v3536
        %v3538 = vmul.f32 %v3318, 1.442695
        %v3539 = vpow.pop %v3538
        %v3540 = vmul.f32 %v3319, 1.442695
        %v3541 = vpow.pop %v3540
        %v3542 = vmul.f32 %v3320, 1.442695
        %v3543 = vpow.pop %v3542
        %v3544 = vmul.f32 %v3321, 1.442695
        %v3545 = vpow.pop %v3544
        %v3546 = vmul.f32 %v3322, 1.442695
        %v3547 = vpow.pop %v3546
        %v3548 = vmul.f32 %v3323, 1.442695
        %v3549 = vpow.pop %v3548
        %v3550 = vmul.f32 %v3324, 1.442695
        %v3551 = vpow.pop %v3550
        %v3552 = vmul.f32 %v3325, 1.442695
        %v3553 = vpow.pop %v3552
        %v3554 = vmul.f32 %v3326, 1.442695
        %v3555 = vpow.pop %v3554
        %v3556 = vmul.f32 %v3327, 1.442695
        %v3557 = vpow.pop %v3556
        %v3558 = vmul.f32 %v3328, 1.442695
        %v3559 = vpow.pop %v3558
        %v3560 = vmul.f32 %v3329, 1.442695
        %v3561 = vpow.pop %v3560
        %v3562 = vmul.f32 %v3330, 1.442695
        %v3563 = vpow.pop %v3562
        %v3564 = vmul.f32 %v3331, 1.442695
        %v3565 = vpow.pop %v3564
        %v3566 = vmul.f32 %v3332, 1.442695
        %v3567 = vpow.pop %v3566
        %v3568 = vmul.f32 %v3333, 1.442695
        %v3569 = vpow.pop %v3568
        %v3570 = vmul.f32 %v3334, 1.442695
        %v3571 = vpow.pop %v3570
        %v3572 = vmul.f32 %v3335, 1.442695
        %v3573 = vpow.pop %v3572
        %v3574 = vmul.f32 %v3336, 1.442695
        %v3575 = vpow.pop %v3574
        %v3576 = vmul.f32 %v3337, 1.442695
        %v3577 = vpow.pop %v3576
        %v3578 = vmul.f32 %v3338, 1.442695
        %v3579 = vpow.pop %v3578
        %v3580 = vmul.f32 %v3339, 1.442695
        %v3581 = vpow.pop %v3580
        %v3582 = vmul.f32 %v3340, 1.442695
        %v3583 = vpow.pop %v3582
        %v3584 = vmul.f32 %v3341, 1.442695
        %v3585 = vpow.pop %v3584
        %v3586 = vmul.f32 %v3342, 1.442695
        %v3587 = vpow.pop %v3586
        %v3588 = vmul.f32 %v3343, 1.442695
        %v3589 = vpow.pop %v3588
        %v3590 = vmul.f32 %v3344, 1.442695
        %v3591 = vpow.pop %v3590
        %v3592 = vmul.f32 %v3345, 1.442695
        %v3593 = vpow.pop %v3592
        %v3594 = vmul.f32 %v3346, 1.442695
        %v3595 = vpow.pop %v3594
        %v3596 = vmul.f32 %v3347, 1.442695
        %v3597 = vpow.pop %v3596
        %v3598 = vmul.f32 %v3348, 1.442695
        %v3599 = vpow.pop %v3598
        %v3600 = vmul.f32 %v3349, 1.442695
        %v3601 = vpow.pop %v3600
        %v3602 = vmul.f32 %v3350, 1.442695
        %v3603 = vpow.pop %v3602
        %v3604 = vmul.f32 %v3351, 1.442695
        %v3605 = vpow.pop %v3604
        %v3606 = vmul.f32 %v3352, 1.442695
        %v3607 = vpow.pop %v3606
        %v3608 = vmul.f32 %v3353, 1.442695
        %v3609 = vpow.pop %v3608
        %3738 = vset.pattern.permute.xlu0 0
        %3739 = vperm.xlu0 %3738, %v3355
        %v3740 = vpop.permute.xlu0 %3739
        %3741 = vset.pattern.permute.xlu0 0
        %3742 = vperm.xlu0 %3741, %v3357
        %v3743 = vpop.permute.xlu0 %3742
        %3744 = vset.pattern.permute.xlu0 0
        %3745 = vperm.xlu0 %3744, %v3359
        %v3746 = vpop.permute.xlu0 %3745
        %3747 = vset.pattern.permute.xlu0 0
        %3748 = vperm.xlu0 %3747, %v3361
        %v3749 = vpop.permute.xlu0 %3748
        %3750 = vset.pattern.permute.xlu0 0
        %3751 = vperm.xlu0 %3750, %v3363
        %v3752 = vpop.permute.xlu0 %3751
        %3753 = vset.pattern.permute.xlu0 0
        %3754 = vperm.xlu0 %3753, %v3365
        %v3755 = vpop.permute.xlu0 %3754
        %3756 = vset.pattern.permute.xlu0 0
        %3757 = vperm.xlu0 %3756, %v3367
        %v3758 = vpop.permute.xlu0 %3757
        %3759 = vset.pattern.permute.xlu0 0
        %3760 = vperm.xlu0 %3759, %v3369
        %v3761 = vpop.permute.xlu0 %3760
        %3762 = vset.pattern.permute.xlu0 0
        %3763 = vperm.xlu0 %3762, %v3371
        %v3764 = vpop.permute.xlu0 %3763
        %3765 = vset.pattern.permute.xlu0 0
        %3766 = vperm.xlu0 %3765, %v3373
        %v3767 = vpop.permute.xlu0 %3766
        %3768 = vset.pattern.permute.xlu0 0
        %3769 = vperm.xlu0 %3768, %v3375
        %v3770 = vpop.permute.xlu0 %3769
        %3771 = vset.pattern.permute.xlu0 0
        %3772 = vperm.xlu0 %3771, %v3377
        %v3773 = vpop.permute.xlu0 %3772
        %3774 = vset.pattern.permute.xlu0 0
        %3775 = vperm.xlu0 %3774, %v3379
        %v3776 = vpop.permute.xlu0 %3775
        %3777 = vset.pattern.permute.xlu0 0
        %3778 = vperm.xlu0 %3777, %v3381
        %v3779 = vpop.permute.xlu0 %3778
        %3780 = vset.pattern.permute.xlu0 0
        %3781 = vperm.xlu0 %3780, %v3383
        %v3782 = vpop.permute.xlu0 %3781
        %3783 = vset.pattern.permute.xlu0 0
        %3784 = vperm.xlu0 %3783, %v3385
        %v3785 = vpop.permute.xlu0 %3784
        %3786 = vset.pattern.permute.xlu0 0
        %3787 = vperm.xlu0 %3786, %v3387
        %v3788 = vpop.permute.xlu0 %3787
        %3789 = vset.pattern.permute.xlu0 0
        %3790 = vperm.xlu0 %3789, %v3389
        %v3791 = vpop.permute.xlu0 %3790
        %3792 = vset.pattern.permute.xlu0 0
        %3793 = vperm.xlu0 %3792, %v3391
        %v3794 = vpop.permute.xlu0 %3793
        %3795 = vset.pattern.permute.xlu0 0
        %3796 = vperm.xlu0 %3795, %v3393
        %v3797 = vpop.permute.xlu0 %3796
        %3798 = vset.pattern.permute.xlu0 0
        %3799 = vperm.xlu0 %3798, %v3395
        %v3800 = vpop.permute.xlu0 %3799
        %3801 = vset.pattern.permute.xlu0 0
        %3802 = vperm.xlu0 %3801, %v3397
        %v3803 = vpop.permute.xlu0 %3802
        %3804 = vset.pattern.permute.xlu0 0
        %3805 = vperm.xlu0 %3804, %v3399
        %v3806 = vpop.permute.xlu0 %3805
        %3807 = vset.pattern.permute.xlu0 0
        %3808 = vperm.xlu0 %3807, %v3401
        %v3809 = vpop.permute.xlu0 %3808
        %3810 = vset.pattern.permute.xlu0 0
        %3811 = vperm.xlu0 %3810, %v3403
        %v3812 = vpop.permute.xlu0 %3811
        %3813 = vset.pattern.permute.xlu0 0
        %3814 = vperm.xlu0 %3813, %v3405
        %v3815 = vpop.permute.xlu0 %3814
        %3816 = vset.pattern.permute.xlu0 0
        %3817 = vperm.xlu0 %3816, %v3407
        %v3818 = vpop.permute.xlu0 %3817
        %3819 = vset.pattern.permute.xlu0 0
        %3820 = vperm.xlu0 %3819, %v3409
        %v3821 = vpop.permute.xlu0 %3820
        %3822 = vset.pattern.permute.xlu0 0
        %3823 = vperm.xlu0 %3822, %v3411
        %v3824 = vpop.permute.xlu0 %3823
        %3825 = vset.pattern.permute.xlu0 0
        %3826 = vperm.xlu0 %3825, %v3413
        %v3827 = vpop.permute.xlu0 %3826
        %3828 = vset.pattern.permute.xlu0 0
        %3829 = vperm.xlu0 %3828, %v3415
        %v3830 = vpop.permute.xlu0 %3829
        %3831 = vset.pattern.permute.xlu0 0
        %3832 = vperm.xlu0 %3831, %v3417
        %v3833 = vpop.permute.xlu0 %3832
        %3834 = vset.pattern.permute.xlu0 0
        %3835 = vperm.xlu0 %3834, %v3419
        %v3836 = vpop.permute.xlu0 %3835
        %3837 = vset.pattern.permute.xlu0 0
        %3838 = vperm.xlu0 %3837, %v3421
        %v3839 = vpop.permute.xlu0 %3838
        %3840 = vset.pattern.permute.xlu0 0
        %3841 = vperm.xlu0 %3840, %v3423
        %v3842 = vpop.permute.xlu0 %3841
        %3843 = vset.pattern.permute.xlu0 0
        %3844 = vperm.xlu0 %3843, %v3425
        %v3845 = vpop.permute.xlu0 %3844
        %3846 = vset.pattern.permute.xlu0 0
        %3847 = vperm.xlu0 %3846, %v3427
        %v3848 = vpop.permute.xlu0 %3847
        %3849 = vset.pattern.permute.xlu0 0
        %3850 = vperm.xlu0 %3849, %v3429
        %v3851 = vpop.permute.xlu0 %3850
        %3852 = vset.pattern.permute.xlu0 0
        %3853 = vperm.xlu0 %3852, %v3431
        %v3854 = vpop.permute.xlu0 %3853
        %3855 = vset.pattern.permute.xlu0 0
        %3856 = vperm.xlu0 %3855, %v3433
        %v3857 = vpop.permute.xlu0 %3856
        %3858 = vset.pattern.permute.xlu0 0
        %3859 = vperm.xlu0 %3858, %v3435
        %v3860 = vpop.permute.xlu0 %3859
        %3861 = vset.pattern.permute.xlu0 0
        %3862 = vperm.xlu0 %3861, %v3437
        %v3863 = vpop.permute.xlu0 %3862
        %3864 = vset.pattern.permute.xlu0 0
        %3865 = vperm.xlu0 %3864, %v3439
        %v3866 = vpop.permute.xlu0 %3865
        %3867 = vset.pattern.permute.xlu0 0
        %3868 = vperm.xlu0 %3867, %v3441
        %v3869 = vpop.permute.xlu0 %3868
        %3870 = vset.pattern.permute.xlu0 0
        %3871 = vperm.xlu0 %3870, %v3443
        %v3872 = vpop.permute.xlu0 %3871
        %3873 = vset.pattern.permute.xlu0 0
        %3874 = vperm.xlu0 %3873, %v3445
        %v3875 = vpop.permute.xlu0 %3874
        %3876 = vset.pattern.permute.xlu0 0
        %3877 = vperm.xlu0 %3876, %v3447
        %v3878 = vpop.permute.xlu0 %3877
        %3879 = vset.pattern.permute.xlu0 0
        %3880 = vperm.xlu0 %3879, %v3449
        %v3881 = vpop.permute.xlu0 %3880
        %3882 = vset.pattern.permute.xlu0 0
        %3883 = vperm.xlu0 %3882, %v3451
        %v3884 = vpop.permute.xlu0 %3883
        %3885 = vset.pattern.permute.xlu0 0
        %3886 = vperm.xlu0 %3885, %v3453
        %v3887 = vpop.permute.xlu0 %3886
        %3888 = vset.pattern.permute.xlu0 0
        %3889 = vperm.xlu0 %3888, %v3455
        %v3890 = vpop.permute.xlu0 %3889
        %3891 = vset.pattern.permute.xlu0 0
        %3892 = vperm.xlu0 %3891, %v3457
        %v3893 = vpop.permute.xlu0 %3892
        %3894 = vset.pattern.permute.xlu0 0
        %3895 = vperm.xlu0 %3894, %v3459
        %v3896 = vpop.permute.xlu0 %3895
        %3897 = vset.pattern.permute.xlu0 0
        %3898 = vperm.xlu0 %3897, %v3461
        %v3899 = vpop.permute.xlu0 %3898
        %3900 = vset.pattern.permute.xlu0 0
        %3901 = vperm.xlu0 %3900, %v3463
        %v3902 = vpop.permute.xlu0 %3901
        %3903 = vset.pattern.permute.xlu0 0
        %3904 = vperm.xlu0 %3903, %v3465
        %v3905 = vpop.permute.xlu0 %3904
        %3906 = vset.pattern.permute.xlu0 0
        %3907 = vperm.xlu0 %3906, %v3467
        %v3908 = vpop.permute.xlu0 %3907
        %3909 = vset.pattern.permute.xlu0 0
        %3910 = vperm.xlu0 %3909, %v3469
        %v3911 = vpop.permute.xlu0 %3910
        %3912 = vset.pattern.permute.xlu0 0
        %3913 = vperm.xlu0 %3912, %v3471
        %v3914 = vpop.permute.xlu0 %3913
        %3915 = vset.pattern.permute.xlu0 0
        %3916 = vperm.xlu0 %3915, %v3473
        %v3917 = vpop.permute.xlu0 %3916
        %3918 = vset.pattern.permute.xlu0 0
        %3919 = vperm.xlu0 %3918, %v3475
        %v3920 = vpop.permute.xlu0 %3919
        %3921 = vset.pattern.permute.xlu0 0
        %3922 = vperm.xlu0 %3921, %v3477
        %v3923 = vpop.permute.xlu0 %3922
        %3924 = vset.pattern.permute.xlu0 0
        %3925 = vperm.xlu0 %3924, %v3479
        %v3926 = vpop.permute.xlu0 %3925
        %3927 = vset.pattern.permute.xlu0 0
        %3928 = vperm.xlu0 %3927, %v3481
        %v3929 = vpop.permute.xlu0 %3928
        %3930 = vset.pattern.permute.xlu0 0
        %3931 = vperm.xlu0 %3930, %v3483
        %v3932 = vpop.permute.xlu0 %3931
        %3933 = vset.pattern.permute.xlu0 0
        %3934 = vperm.xlu0 %3933, %v3485
        %v3935 = vpop.permute.xlu0 %3934
        %3936 = vset.pattern.permute.xlu0 0
        %3937 = vperm.xlu0 %3936, %v3487
        %v3938 = vpop.permute.xlu0 %3937
        %3939 = vset.pattern.permute.xlu0 0
        %3940 = vperm.xlu0 %3939, %v3489
        %v3941 = vpop.permute.xlu0 %3940
        %3942 = vset.pattern.permute.xlu0 0
        %3943 = vperm.xlu0 %3942, %v3491
        %v3944 = vpop.permute.xlu0 %3943
        %3945 = vset.pattern.permute.xlu0 0
        %3946 = vperm.xlu0 %3945, %v3493
        %v3947 = vpop.permute.xlu0 %3946
        %3948 = vset.pattern.permute.xlu0 0
        %3949 = vperm.xlu0 %3948, %v3495
        %v3950 = vpop.permute.xlu0 %3949
        %3951 = vset.pattern.permute.xlu0 0
        %3952 = vperm.xlu0 %3951, %v3497
        %v3953 = vpop.permute.xlu0 %3952
        %3954 = vset.pattern.permute.xlu0 0
        %3955 = vperm.xlu0 %3954, %v3499
        %v3956 = vpop.permute.xlu0 %3955
        %3957 = vset.pattern.permute.xlu0 0
        %3958 = vperm.xlu0 %3957, %v3501
        %v3959 = vpop.permute.xlu0 %3958
        %3960 = vset.pattern.permute.xlu0 0
        %3961 = vperm.xlu0 %3960, %v3503
        %v3962 = vpop.permute.xlu0 %3961
        %3963 = vset.pattern.permute.xlu0 0
        %3964 = vperm.xlu0 %3963, %v3505
        %v3965 = vpop.permute.xlu0 %3964
        %3966 = vset.pattern.permute.xlu0 0
        %3967 = vperm.xlu0 %3966, %v3507
        %v3968 = vpop.permute.xlu0 %3967
        %3969 = vset.pattern.permute.xlu0 0
        %3970 = vperm.xlu0 %3969, %v3509
        %v3971 = vpop.permute.xlu0 %3970
        %3972 = vset.pattern.permute.xlu0 0
        %3973 = vperm.xlu0 %3972, %v3511
        %v3974 = vpop.permute.xlu0 %3973
        %3975 = vset.pattern.permute.xlu0 0
        %3976 = vperm.xlu0 %3975, %v3513
        %v3977 = vpop.permute.xlu0 %3976
        %3978 = vset.pattern.permute.xlu0 0
        %3979 = vperm.xlu0 %3978, %v3515
        %v3980 = vpop.permute.xlu0 %3979
        %3981 = vset.pattern.permute.xlu0 0
        %3982 = vperm.xlu0 %3981, %v3517
        %v3983 = vpop.permute.xlu0 %3982
        %3984 = vset.pattern.permute.xlu0 0
        %3985 = vperm.xlu0 %3984, %v3519
        %v3986 = vpop.permute.xlu0 %3985
        %3987 = vset.pattern.permute.xlu0 0
        %3988 = vperm.xlu0 %3987, %v3521
        %v3989 = vpop.permute.xlu0 %3988
        %3990 = vset.pattern.permute.xlu0 0
        %3991 = vperm.xlu0 %3990, %v3523
        %v3992 = vpop.permute.xlu0 %3991
        %3993 = vset.pattern.permute.xlu0 0
        %3994 = vperm.xlu0 %3993, %v3525
        %v3995 = vpop.permute.xlu0 %3994
        %3996 = vset.pattern.permute.xlu0 0
        %3997 = vperm.xlu0 %3996, %v3527
        %v3998 = vpop.permute.xlu0 %3997
        %3999 = vset.pattern.permute.xlu0 0
        %4000 = vperm.xlu0 %3999, %v3529
        %v4001 = vpop.permute.xlu0 %4000
        %4002 = vset.pattern.permute.xlu0 0
        %4003 = vperm.xlu0 %4002, %v3531
        %v4004 = vpop.permute.xlu0 %4003
        %4005 = vset.pattern.permute.xlu0 0
        %4006 = vperm.xlu0 %4005, %v3533
        %v4007 = vpop.permute.xlu0 %4006
        %4008 = vset.pattern.permute.xlu0 0
        %4009 = vperm.xlu0 %4008, %v3535
        %v4010 = vpop.permute.xlu0 %4009
        %4011 = vset.pattern.permute.xlu0 0
        %4012 = vperm.xlu0 %4011, %v3537
        %v4013 = vpop.permute.xlu0 %4012
        %4014 = vset.pattern.permute.xlu0 0
        %4015 = vperm.xlu0 %4014, %v3539
        %v4016 = vpop.permute.xlu0 %4015
        %4017 = vset.pattern.permute.xlu0 0
        %4018 = vperm.xlu0 %4017, %v3541
        %v4019 = vpop.permute.xlu0 %4018
        %4020 = vset.pattern.permute.xlu0 0
        %4021 = vperm.xlu0 %4020, %v3543
        %v4022 = vpop.permute.xlu0 %4021
        %4023 = vset.pattern.permute.xlu0 0
        %4024 = vperm.xlu0 %4023, %v3545
        %v4025 = vpop.permute.xlu0 %4024
        %4026 = vset.pattern.permute.xlu0 0
        %4027 = vperm.xlu0 %4026, %v3547
        %v4028 = vpop.permute.xlu0 %4027
        %4029 = vset.pattern.permute.xlu0 0
        %4030 = vperm.xlu0 %4029, %v3549
        %v4031 = vpop.permute.xlu0 %4030
        %4032 = vset.pattern.permute.xlu0 0
        %4033 = vperm.xlu0 %4032, %v3551
        %v4034 = vpop.permute.xlu0 %4033
        %4035 = vset.pattern.permute.xlu0 0
        %4036 = vperm.xlu0 %4035, %v3553
        %v4037 = vpop.permute.xlu0 %4036
        %4038 = vset.pattern.permute.xlu0 0
        %4039 = vperm.xlu0 %4038, %v3555
        %v4040 = vpop.permute.xlu0 %4039
        %4041 = vset.pattern.permute.xlu0 0
        %4042 = vperm.xlu0 %4041, %v3557
        %v4043 = vpop.permute.xlu0 %4042
        %4044 = vset.pattern.permute.xlu0 0
        %4045 = vperm.xlu0 %4044, %v3559
        %v4046 = vpop.permute.xlu0 %4045
        %4047 = vset.pattern.permute.xlu0 0
        %4048 = vperm.xlu0 %4047, %v3561
        %v4049 = vpop.permute.xlu0 %4048
        %4050 = vset.pattern.permute.xlu0 0
        %4051 = vperm.xlu0 %4050, %v3563
        %v4052 = vpop.permute.xlu0 %4051
        %4053 = vset.pattern.permute.xlu0 0
        %4054 = vperm.xlu0 %4053, %v3565
        %v4055 = vpop.permute.xlu0 %4054
        %4056 = vset.pattern.permute.xlu0 0
        %4057 = vperm.xlu0 %4056, %v3567
        %v4058 = vpop.permute.xlu0 %4057
        %4059 = vset.pattern.permute.xlu0 0
        %4060 = vperm.xlu0 %4059, %v3569
        %v4061 = vpop.permute.xlu0 %4060
        %4062 = vset.pattern.permute.xlu0 0
        %4063 = vperm.xlu0 %4062, %v3571
        %v4064 = vpop.permute.xlu0 %4063
        %4065 = vset.pattern.permute.xlu0 0
        %4066 = vperm.xlu0 %4065, %v3573
        %v4067 = vpop.permute.xlu0 %4066
        %4068 = vset.pattern.permute.xlu0 0
        %4069 = vperm.xlu0 %4068, %v3575
        %v4070 = vpop.permute.xlu0 %4069
        %4071 = vset.pattern.permute.xlu0 0
        %4072 = vperm.xlu0 %4071, %v3577
        %v4073 = vpop.permute.xlu0 %4072
        %4074 = vset.pattern.permute.xlu0 0
        %4075 = vperm.xlu0 %4074, %v3579
        %v4076 = vpop.permute.xlu0 %4075
        %4077 = vset.pattern.permute.xlu0 0
        %4078 = vperm.xlu0 %4077, %v3581
        %v4079 = vpop.permute.xlu0 %4078
        %4080 = vset.pattern.permute.xlu0 0
        %4081 = vperm.xlu0 %4080, %v3583
        %v4082 = vpop.permute.xlu0 %4081
        %4083 = vset.pattern.permute.xlu0 0
        %4084 = vperm.xlu0 %4083, %v3585
        %v4085 = vpop.permute.xlu0 %4084
        %4086 = vset.pattern.permute.xlu0 0
        %4087 = vperm.xlu0 %4086, %v3587
        %v4088 = vpop.permute.xlu0 %4087
        %4089 = vset.pattern.permute.xlu0 0
        %4090 = vperm.xlu0 %4089, %v3589
        %v4091 = vpop.permute.xlu0 %4090
        %4092 = vset.pattern.permute.xlu0 0
        %4093 = vperm.xlu0 %4092, %v3591
        %v4094 = vpop.permute.xlu0 %4093
        %4095 = vset.pattern.permute.xlu0 0
        %4096 = vperm.xlu0 %4095, %v3593
        %v4097 = vpop.permute.xlu0 %4096
        %4098 = vset.pattern.permute.xlu0 0
        %4099 = vperm.xlu0 %4098, %v3595
        %v4100 = vpop.permute.xlu0 %4099
        %4101 = vset.pattern.permute.xlu0 0
        %4102 = vperm.xlu0 %4101, %v3597
        %v4103 = vpop.permute.xlu0 %4102
        %4104 = vset.pattern.permute.xlu0 0
        %4105 = vperm.xlu0 %4104, %v3599
        %v4106 = vpop.permute.xlu0 %4105
        %4107 = vset.pattern.permute.xlu0 0
        %4108 = vperm.xlu0 %4107, %v3601
        %v4109 = vpop.permute.xlu0 %4108
        %4110 = vset.pattern.permute.xlu0 0
        %4111 = vperm.xlu0 %4110, %v3603
        %v4112 = vpop.permute.xlu0 %4111
        %4113 = vset.pattern.permute.xlu0 0
        %4114 = vperm.xlu0 %4113, %v3605
        %v4115 = vpop.permute.xlu0 %4114
        %4116 = vset.pattern.permute.xlu0 0
        %4117 = vperm.xlu0 %4116, %v3607
        %v4118 = vpop.permute.xlu0 %4117
        %4119 = vset.pattern.permute.xlu0 0
        %4120 = vperm.xlu0 %4119, %v3609
        %v4121 = vpop.permute.xlu0 %4120
        %v4122 = vlaneseq
        %v4123 = vshrl.u32 %v4122, 7
        %v4124 = vsub.s32 %v2505, %v4123
        %v4125 = vrot.slane %v3740, %v4124
        %v4126 = vlaneseq
        %v4127 = vshrl.u32 %v4126, 7
        %v4128 = vsub.s32 %v2510, %v4127
        %v4129 = vrot.slane %v3743, %v4128
        %v4130 = vsel %vm2515, %v4129, %v4125
        %v4131 = vlaneseq
        %v4132 = vshrl.u32 %v4131, 7
        %v4133 = vsub.s32 %v2517, %v4132
        %v4134 = vrot.slane %v3746, %v4133
        %v4135 = vsel %vm2522, %v4134, %v4130
        %v4136 = vlaneseq
        %v4137 = vshrl.u32 %v4136, 7
        %v4138 = vsub.s32 %v2524, %v4137
        %v4139 = vrot.slane %v3749, %v4138
        %v4140 = vsel %vm2529, %v4139, %v4135
        %v4141 = vlaneseq
        %v4142 = vshrl.u32 %v4141, 7
        %v4143 = vsub.s32 %v2531, %v4142
        %v4144 = vrot.slane %v3752, %v4143
        %v4145 = vsel %vm2536, %v4144, %v4140
        %v4146 = vlaneseq
        %v4147 = vshrl.u32 %v4146, 7
        %v4148 = vsub.s32 %v2538, %v4147
        %v4149 = vrot.slane %v3755, %v4148
        %v4150 = vsel %vm2543, %v4149, %v4145
        %v4151 = vlaneseq
        %v4152 = vshrl.u32 %v4151, 7
        %v4153 = vsub.s32 %v2545, %v4152
        %v4154 = vrot.slane %v3758, %v4153
        %v4155 = vsel %vm2550, %v4154, %v4150
        %v4156 = vlaneseq
        %v4157 = vshrl.u32 %v4156, 7
        %v4158 = vsub.s32 %v2552, %v4157
        %v4159 = vrot.slane %v3761, %v4158
        %v4160 = vsel %vm2557, %v4159, %v4155
        %v4161 = vlaneseq
        %v4162 = vshrl.u32 %v4161, 7
        %v4163 = vsub.s32 %v2559, %v4162
        %v4164 = vrot.slane %v3764, %v4163
        %v4165 = vsel %vm2564, %v4164, %v4160
        %v4166 = vlaneseq
        %v4167 = vshrl.u32 %v4166, 7
        %v4168 = vsub.s32 %v2566, %v4167
        %v4169 = vrot.slane %v3767, %v4168
        %v4170 = vsel %vm2571, %v4169, %v4165
        %v4171 = vlaneseq
        %v4172 = vshrl.u32 %v4171, 7
        %v4173 = vsub.s32 %v2573, %v4172
        %v4174 = vrot.slane %v3770, %v4173
        %v4175 = vsel %vm2578, %v4174, %v4170
        %v4176 = vlaneseq
        %v4177 = vshrl.u32 %v4176, 7
        %v4178 = vsub.s32 %v2580, %v4177
        %v4179 = vrot.slane %v3773, %v4178
        %v4180 = vsel %vm2585, %v4179, %v4175
        %v4181 = vlaneseq
        %v4182 = vshrl.u32 %v4181, 7
        %v4183 = vsub.s32 %v2587, %v4182
        %v4184 = vrot.slane %v3776, %v4183
        %v4185 = vsel %vm2592, %v4184, %v4180
        %v4186 = vlaneseq
        %v4187 = vshrl.u32 %v4186, 7
        %v4188 = vsub.s32 %v2594, %v4187
        %v4189 = vrot.slane %v3779, %v4188
        %v4190 = vsel %vm2599, %v4189, %v4185
        %v4191 = vlaneseq
        %v4192 = vshrl.u32 %v4191, 7
        %v4193 = vsub.s32 %v2601, %v4192
        %v4194 = vrot.slane %v3782, %v4193
        %v4195 = vsel %vm2606, %v4194, %v4190
        %v4196 = vlaneseq
        %v4197 = vshrl.u32 %v4196, 7
        %v4198 = vsub.s32 %v2608, %v4197
        %v4199 = vrot.slane %v3785, %v4198
        %v4200 = vsel %vm2613, %v4199, %v4195
        %v4201 = vlaneseq
        %v4202 = vshrl.u32 %v4201, 7
        %v4203 = vsub.s32 %v2505, %v4202
        %v4204 = vrot.slane %v3788, %v4203
        %v4205 = vlaneseq
        %v4206 = vshrl.u32 %v4205, 7
        %v4207 = vsub.s32 %v2510, %v4206
        %v4208 = vrot.slane %v3791, %v4207
        %v4209 = vsel %vm2515, %v4208, %v4204
        %v4210 = vlaneseq
        %v4211 = vshrl.u32 %v4210, 7
        %v4212 = vsub.s32 %v2517, %v4211
        %v4213 = vrot.slane %v3794, %v4212
        %v4214 = vsel %vm2522, %v4213, %v4209
        %v4215 = vlaneseq
        %v4216 = vshrl.u32 %v4215, 7
        %v4217 = vsub.s32 %v2524, %v4216
        %v4218 = vrot.slane %v3797, %v4217
        %v4219 = vsel %vm2529, %v4218, %v4214
        %v4220 = vlaneseq
        %v4221 = vshrl.u32 %v4220, 7
        %v4222 = vsub.s32 %v2531, %v4221
        %v4223 = vrot.slane %v3800, %v4222
        %v4224 = vsel %vm2536, %v4223, %v4219
        %v4225 = vlaneseq
        %v4226 = vshrl.u32 %v4225, 7
        %v4227 = vsub.s32 %v2538, %v4226
        %v4228 = vrot.slane %v3803, %v4227
        %v4229 = vsel %vm2543, %v4228, %v4224
        %v4230 = vlaneseq
        %v4231 = vshrl.u32 %v4230, 7
        %v4232 = vsub.s32 %v2545, %v4231
        %v4233 = vrot.slane %v3806, %v4232
        %v4234 = vsel %vm2550, %v4233, %v4229
        %v4235 = vlaneseq
        %v4236 = vshrl.u32 %v4235, 7
        %v4237 = vsub.s32 %v2552, %v4236
        %v4238 = vrot.slane %v3809, %v4237
        %v4239 = vsel %vm2557, %v4238, %v4234
        %v4240 = vlaneseq
        %v4241 = vshrl.u32 %v4240, 7
        %v4242 = vsub.s32 %v2559, %v4241
        %v4243 = vrot.slane %v3812, %v4242
        %v4244 = vsel %vm2564, %v4243, %v4239
        %v4245 = vlaneseq
        %v4246 = vshrl.u32 %v4245, 7
        %v4247 = vsub.s32 %v2566, %v4246
        %v4248 = vrot.slane %v3815, %v4247
        %v4249 = vsel %vm2571, %v4248, %v4244
        %v4250 = vlaneseq
        %v4251 = vshrl.u32 %v4250, 7
        %v4252 = vsub.s32 %v2573, %v4251
        %v4253 = vrot.slane %v3818, %v4252
        %v4254 = vsel %vm2578, %v4253, %v4249
        %v4255 = vlaneseq
        %v4256 = vshrl.u32 %v4255, 7
        %v4257 = vsub.s32 %v2580, %v4256
        %v4258 = vrot.slane %v3821, %v4257
        %v4259 = vsel %vm2585, %v4258, %v4254
        %v4260 = vlaneseq
        %v4261 = vshrl.u32 %v4260, 7
        %v4262 = vsub.s32 %v2587, %v4261
        %v4263 = vrot.slane %v3824, %v4262
        %v4264 = vsel %vm2592, %v4263, %v4259
        %v4265 = vlaneseq
        %v4266 = vshrl.u32 %v4265, 7
        %v4267 = vsub.s32 %v2594, %v4266
        %v4268 = vrot.slane %v3827, %v4267
        %v4269 = vsel %vm2599, %v4268, %v4264
        %v4270 = vlaneseq
        %v4271 = vshrl.u32 %v4270, 7
        %v4272 = vsub.s32 %v2601, %v4271
        %v4273 = vrot.slane %v3830, %v4272
        %v4274 = vsel %vm2606, %v4273, %v4269
        %v4275 = vlaneseq
        %v4276 = vshrl.u32 %v4275, 7
        %v4277 = vsub.s32 %v2608, %v4276
        %v4278 = vrot.slane %v3833, %v4277
        %v4279 = vsel %vm2613, %v4278, %v4274
        %v4280 = vlaneseq
        %v4281 = vshrl.u32 %v4280, 7
        %v4282 = vsub.s32 %v2505, %v4281
        %v4283 = vrot.slane %v3836, %v4282
        %v4284 = vlaneseq
        %v4285 = vshrl.u32 %v4284, 7
        %v4286 = vsub.s32 %v2510, %v4285
        %v4287 = vrot.slane %v3839, %v4286
        %v4288 = vsel %vm2515, %v4287, %v4283
        %v4289 = vlaneseq
        %v4290 = vshrl.u32 %v4289, 7
        %v4291 = vsub.s32 %v2517, %v4290
        %v4292 = vrot.slane %v3842, %v4291
        %v4293 = vsel %vm2522, %v4292, %v4288
        %v4294 = vlaneseq
        %v4295 = vshrl.u32 %v4294, 7
        %v4296 = vsub.s32 %v2524, %v4295
        %v4297 = vrot.slane %v3845, %v4296
        %v4298 = vsel %vm2529, %v4297, %v4293
        %v4299 = vlaneseq
        %v4300 = vshrl.u32 %v4299, 7
        %v4301 = vsub.s32 %v2531, %v4300
        %v4302 = vrot.slane %v3848, %v4301
        %v4303 = vsel %vm2536, %v4302, %v4298
        %v4304 = vlaneseq
        %v4305 = vshrl.u32 %v4304, 7
        %v4306 = vsub.s32 %v2538, %v4305
        %v4307 = vrot.slane %v3851, %v4306
        %v4308 = vsel %vm2543, %v4307, %v4303
        %v4309 = vlaneseq
        %v4310 = vshrl.u32 %v4309, 7
        %v4311 = vsub.s32 %v2545, %v4310
        %v4312 = vrot.slane %v3854, %v4311
        %v4313 = vsel %vm2550, %v4312, %v4308
        %v4314 = vlaneseq
        %v4315 = vshrl.u32 %v4314, 7
        %v4316 = vsub.s32 %v2552, %v4315
        %v4317 = vrot.slane %v3857, %v4316
        %v4318 = vsel %vm2557, %v4317, %v4313
        %v4319 = vlaneseq
        %v4320 = vshrl.u32 %v4319, 7
        %v4321 = vsub.s32 %v2559, %v4320
        %v4322 = vrot.slane %v3860, %v4321
        %v4323 = vsel %vm2564, %v4322, %v4318
        %v4324 = vlaneseq
        %v4325 = vshrl.u32 %v4324, 7
        %v4326 = vsub.s32 %v2566, %v4325
        %v4327 = vrot.slane %v3863, %v4326
        %v4328 = vsel %vm2571, %v4327, %v4323
        %v4329 = vlaneseq
        %v4330 = vshrl.u32 %v4329, 7
        %v4331 = vsub.s32 %v2573, %v4330
        %v4332 = vrot.slane %v3866, %v4331
        %v4333 = vsel %vm2578, %v4332, %v4328
        %v4334 = vlaneseq
        %v4335 = vshrl.u32 %v4334, 7
        %v4336 = vsub.s32 %v2580, %v4335
        %v4337 = vrot.slane %v3869, %v4336
        %v4338 = vsel %vm2585, %v4337, %v4333
        %v4339 = vlaneseq
        %v4340 = vshrl.u32 %v4339, 7
        %v4341 = vsub.s32 %v2587, %v4340
        %v4342 = vrot.slane %v3872, %v4341
        %v4343 = vsel %vm2592, %v4342, %v4338
        %v4344 = vlaneseq
        %v4345 = vshrl.u32 %v4344, 7
        %v4346 = vsub.s32 %v2594, %v4345
        %v4347 = vrot.slane %v3875, %v4346
        %v4348 = vsel %vm2599, %v4347, %v4343
        %v4349 = vlaneseq
        %v4350 = vshrl.u32 %v4349, 7
        %v4351 = vsub.s32 %v2601, %v4350
        %v4352 = vrot.slane %v3878, %v4351
        %v4353 = vsel %vm2606, %v4352, %v4348
        %v4354 = vlaneseq
        %v4355 = vshrl.u32 %v4354, 7
        %v4356 = vsub.s32 %v2608, %v4355
        %v4357 = vrot.slane %v3881, %v4356
        %v4358 = vsel %vm2613, %v4357, %v4353
        %v4359 = vlaneseq
        %v4360 = vshrl.u32 %v4359, 7
        %v4361 = vsub.s32 %v2505, %v4360
        %v4362 = vrot.slane %v3884, %v4361
        %v4363 = vlaneseq
        %v4364 = vshrl.u32 %v4363, 7
        %v4365 = vsub.s32 %v2510, %v4364
        %v4366 = vrot.slane %v3887, %v4365
        %v4367 = vsel %vm2515, %v4366, %v4362
        %v4368 = vlaneseq
        %v4369 = vshrl.u32 %v4368, 7
        %v4370 = vsub.s32 %v2517, %v4369
        %v4371 = vrot.slane %v3890, %v4370
        %v4372 = vsel %vm2522, %v4371, %v4367
        %v4373 = vlaneseq
        %v4374 = vshrl.u32 %v4373, 7
        %v4375 = vsub.s32 %v2524, %v4374
        %v4376 = vrot.slane %v3893, %v4375
        %v4377 = vsel %vm2529, %v4376, %v4372
        %v4378 = vlaneseq
        %v4379 = vshrl.u32 %v4378, 7
        %v4380 = vsub.s32 %v2531, %v4379
        %v4381 = vrot.slane %v3896, %v4380
        %v4382 = vsel %vm2536, %v4381, %v4377
        %v4383 = vlaneseq
        %v4384 = vshrl.u32 %v4383, 7
        %v4385 = vsub.s32 %v2538, %v4384
        %v4386 = vrot.slane %v3899, %v4385
        %v4387 = vsel %vm2543, %v4386, %v4382
        %v4388 = vlaneseq
        %v4389 = vshrl.u32 %v4388, 7
        %v4390 = vsub.s32 %v2545, %v4389
        %v4391 = vrot.slane %v3902, %v4390
        %v4392 = vsel %vm2550, %v4391, %v4387
        %v4393 = vlaneseq
        %v4394 = vshrl.u32 %v4393, 7
        %v4395 = vsub.s32 %v2552, %v4394
        %v4396 = vrot.slane %v3905, %v4395
        %v4397 = vsel %vm2557, %v4396, %v4392
        %v4398 = vlaneseq
        %v4399 = vshrl.u32 %v4398, 7
        %v4400 = vsub.s32 %v2559, %v4399
        %v4401 = vrot.slane %v3908, %v4400
        %v4402 = vsel %vm2564, %v4401, %v4397
        %v4403 = vlaneseq
        %v4404 = vshrl.u32 %v4403, 7
        %v4405 = vsub.s32 %v2566, %v4404
        %v4406 = vrot.slane %v3911, %v4405
        %v4407 = vsel %vm2571, %v4406, %v4402
        %v4408 = vlaneseq
        %v4409 = vshrl.u32 %v4408, 7
        %v4410 = vsub.s32 %v2573, %v4409
        %v4411 = vrot.slane %v3914, %v4410
        %v4412 = vsel %vm2578, %v4411, %v4407
        %v4413 = vlaneseq
        %v4414 = vshrl.u32 %v4413, 7
        %v4415 = vsub.s32 %v2580, %v4414
        %v4416 = vrot.slane %v3917, %v4415
        %v4417 = vsel %vm2585, %v4416, %v4412
        %v4418 = vlaneseq
        %v4419 = vshrl.u32 %v4418, 7
        %v4420 = vsub.s32 %v2587, %v4419
        %v4421 = vrot.slane %v3920, %v4420
        %v4422 = vsel %vm2592, %v4421, %v4417
        %v4423 = vlaneseq
        %v4424 = vshrl.u32 %v4423, 7
        %v4425 = vsub.s32 %v2594, %v4424
        %v4426 = vrot.slane %v3923, %v4425
        %v4427 = vsel %vm2599, %v4426, %v4422
        %v4428 = vlaneseq
        %v4429 = vshrl.u32 %v4428, 7
        %v4430 = vsub.s32 %v2601, %v4429
        %v4431 = vrot.slane %v3926, %v4430
        %v4432 = vsel %vm2606, %v4431, %v4427
        %v4433 = vlaneseq
        %v4434 = vshrl.u32 %v4433, 7
        %v4435 = vsub.s32 %v2608, %v4434
        %v4436 = vrot.slane %v3929, %v4435
        %v4437 = vsel %vm2613, %v4436, %v4432
        %v4438 = vlaneseq
        %v4439 = vshrl.u32 %v4438, 7
        %v4440 = vsub.s32 %v2505, %v4439
        %v4441 = vrot.slane %v3932, %v4440
        %v4442 = vlaneseq
        %v4443 = vshrl.u32 %v4442, 7
        %v4444 = vsub.s32 %v2510, %v4443
        %v4445 = vrot.slane %v3935, %v4444
        %v4446 = vsel %vm2515, %v4445, %v4441
        %v4447 = vlaneseq
        %v4448 = vshrl.u32 %v4447, 7
        %v4449 = vsub.s32 %v2517, %v4448
        %v4450 = vrot.slane %v3938, %v4449
        %v4451 = vsel %vm2522, %v4450, %v4446
        %v4452 = vlaneseq
        %v4453 = vshrl.u32 %v4452, 7
        %v4454 = vsub.s32 %v2524, %v4453
        %v4455 = vrot.slane %v3941, %v4454
        %v4456 = vsel %vm2529, %v4455, %v4451
        %v4457 = vlaneseq
        %v4458 = vshrl.u32 %v4457, 7
        %v4459 = vsub.s32 %v2531, %v4458
        %v4460 = vrot.slane %v3944, %v4459
        %v4461 = vsel %vm2536, %v4460, %v4456
        %v4462 = vlaneseq
        %v4463 = vshrl.u32 %v4462, 7
        %v4464 = vsub.s32 %v2538, %v4463
        %v4465 = vrot.slane %v3947, %v4464
        %v4466 = vsel %vm2543, %v4465, %v4461
        %v4467 = vlaneseq
        %v4468 = vshrl.u32 %v4467, 7
        %v4469 = vsub.s32 %v2545, %v4468
        %v4470 = vrot.slane %v3950, %v4469
        %v4471 = vsel %vm2550, %v4470, %v4466
        %v4472 = vlaneseq
        %v4473 = vshrl.u32 %v4472, 7
        %v4474 = vsub.s32 %v2552, %v4473
        %v4475 = vrot.slane %v3953, %v4474
        %v4476 = vsel %vm2557, %v4475, %v4471
        %v4477 = vlaneseq
        %v4478 = vshrl.u32 %v4477, 7
        %v4479 = vsub.s32 %v2559, %v4478
        %v4480 = vrot.slane %v3956, %v4479
        %v4481 = vsel %vm2564, %v4480, %v4476
        %v4482 = vlaneseq
        %v4483 = vshrl.u32 %v4482, 7
        %v4484 = vsub.s32 %v2566, %v4483
        %v4485 = vrot.slane %v3959, %v4484
        %v4486 = vsel %vm2571, %v4485, %v4481
        %v4487 = vlaneseq
        %v4488 = vshrl.u32 %v4487, 7
        %v4489 = vsub.s32 %v2573, %v4488
        %v4490 = vrot.slane %v3962, %v4489
        %v4491 = vsel %vm2578, %v4490, %v4486
        %v4492 = vlaneseq
        %v4493 = vshrl.u32 %v4492, 7
        %v4494 = vsub.s32 %v2580, %v4493
        %v4495 = vrot.slane %v3965, %v4494
        %v4496 = vsel %vm2585, %v4495, %v4491
        %v4497 = vlaneseq
        %v4498 = vshrl.u32 %v4497, 7
        %v4499 = vsub.s32 %v2587, %v4498
        %v4500 = vrot.slane %v3968, %v4499
        %v4501 = vsel %vm2592, %v4500, %v4496
        %v4502 = vlaneseq
        %v4503 = vshrl.u32 %v4502, 7
        %v4504 = vsub.s32 %v2594, %v4503
        %v4505 = vrot.slane %v3971, %v4504
        %v4506 = vsel %vm2599, %v4505, %v4501
        %v4507 = vlaneseq
        %v4508 = vshrl.u32 %v4507, 7
        %v4509 = vsub.s32 %v2601, %v4508
        %v4510 = vrot.slane %v3974, %v4509
        %v4511 = vsel %vm2606, %v4510, %v4506
        %v4512 = vlaneseq
        %v4513 = vshrl.u32 %v4512, 7
        %v4514 = vsub.s32 %v2608, %v4513
        %v4515 = vrot.slane %v3977, %v4514
        %v4516 = vsel %vm2613, %v4515, %v4511
        %v4517 = vlaneseq
        %v4518 = vshrl.u32 %v4517, 7
        %v4519 = vsub.s32 %v2505, %v4518
        %v4520 = vrot.slane %v3980, %v4519
        %v4521 = vlaneseq
        %v4522 = vshrl.u32 %v4521, 7
        %v4523 = vsub.s32 %v2510, %v4522
        %v4524 = vrot.slane %v3983, %v4523
        %v4525 = vsel %vm2515, %v4524, %v4520
        %v4526 = vlaneseq
        %v4527 = vshrl.u32 %v4526, 7
        %v4528 = vsub.s32 %v2517, %v4527
        %v4529 = vrot.slane %v3986, %v4528
        %v4530 = vsel %vm2522, %v4529, %v4525
        %v4531 = vlaneseq
        %v4532 = vshrl.u32 %v4531, 7
        %v4533 = vsub.s32 %v2524, %v4532
        %v4534 = vrot.slane %v3989, %v4533
        %v4535 = vsel %vm2529, %v4534, %v4530
        %v4536 = vlaneseq
        %v4537 = vshrl.u32 %v4536, 7
        %v4538 = vsub.s32 %v2531, %v4537
        %v4539 = vrot.slane %v3992, %v4538
        %v4540 = vsel %vm2536, %v4539, %v4535
        %v4541 = vlaneseq
        %v4542 = vshrl.u32 %v4541, 7
        %v4543 = vsub.s32 %v2538, %v4542
        %v4544 = vrot.slane %v3995, %v4543
        %v4545 = vsel %vm2543, %v4544, %v4540
        %v4546 = vlaneseq
        %v4547 = vshrl.u32 %v4546, 7
        %v4548 = vsub.s32 %v2545, %v4547
        %v4549 = vrot.slane %v3998, %v4548
        %v4550 = vsel %vm2550, %v4549, %v4545
        %v4551 = vlaneseq
        %v4552 = vshrl.u32 %v4551, 7
        %v4553 = vsub.s32 %v2552, %v4552
        %v4554 = vrot.slane %v4001, %v4553
        %v4555 = vsel %vm2557, %v4554, %v4550
        %v4556 = vlaneseq
        %v4557 = vshrl.u32 %v4556, 7
        %v4558 = vsub.s32 %v2559, %v4557
        %v4559 = vrot.slane %v4004, %v4558
        %v4560 = vsel %vm2564, %v4559, %v4555
        %v4561 = vlaneseq
        %v4562 = vshrl.u32 %v4561, 7
        %v4563 = vsub.s32 %v2566, %v4562
        %v4564 = vrot.slane %v4007, %v4563
        %v4565 = vsel %vm2571, %v4564, %v4560
        %v4566 = vlaneseq
        %v4567 = vshrl.u32 %v4566, 7
        %v4568 = vsub.s32 %v2573, %v4567
        %v4569 = vrot.slane %v4010, %v4568
        %v4570 = vsel %vm2578, %v4569, %v4565
        %v4571 = vlaneseq
        %v4572 = vshrl.u32 %v4571, 7
        %v4573 = vsub.s32 %v2580, %v4572
        %v4574 = vrot.slane %v4013, %v4573
        %v4575 = vsel %vm2585, %v4574, %v4570
        %v4576 = vlaneseq
        %v4577 = vshrl.u32 %v4576, 7
        %v4578 = vsub.s32 %v2587, %v4577
        %v4579 = vrot.slane %v4016, %v4578
        %v4580 = vsel %vm2592, %v4579, %v4575
        %v4581 = vlaneseq
        %v4582 = vshrl.u32 %v4581, 7
        %v4583 = vsub.s32 %v2594, %v4582
        %v4584 = vrot.slane %v4019, %v4583
        %v4585 = vsel %vm2599, %v4584, %v4580
        %v4586 = vlaneseq
        %v4587 = vshrl.u32 %v4586, 7
        %v4588 = vsub.s32 %v2601, %v4587
        %v4589 = vrot.slane %v4022, %v4588
        %v4590 = vsel %vm2606, %v4589, %v4585
        %v4591 = vlaneseq
        %v4592 = vshrl.u32 %v4591, 7
        %v4593 = vsub.s32 %v2608, %v4592
        %v4594 = vrot.slane %v4025, %v4593
        %v4595 = vsel %vm2613, %v4594, %v4590
        %v4596 = vlaneseq
        %v4597 = vshrl.u32 %v4596, 7
        %v4598 = vsub.s32 %v2505, %v4597
        %v4599 = vrot.slane %v4028, %v4598
        %v4600 = vlaneseq
        %v4601 = vshrl.u32 %v4600, 7
        %v4602 = vsub.s32 %v2510, %v4601
        %v4603 = vrot.slane %v4031, %v4602
        %v4604 = vsel %vm2515, %v4603, %v4599
        %v4605 = vlaneseq
        %v4606 = vshrl.u32 %v4605, 7
        %v4607 = vsub.s32 %v2517, %v4606
        %v4608 = vrot.slane %v4034, %v4607
        %v4609 = vsel %vm2522, %v4608, %v4604
        %v4610 = vlaneseq
        %v4611 = vshrl.u32 %v4610, 7
        %v4612 = vsub.s32 %v2524, %v4611
        %v4613 = vrot.slane %v4037, %v4612
        %v4614 = vsel %vm2529, %v4613, %v4609
        %v4615 = vlaneseq
        %v4616 = vshrl.u32 %v4615, 7
        %v4617 = vsub.s32 %v2531, %v4616
        %v4618 = vrot.slane %v4040, %v4617
        %v4619 = vsel %vm2536, %v4618, %v4614
        %v4620 = vlaneseq
        %v4621 = vshrl.u32 %v4620, 7
        %v4622 = vsub.s32 %v2538, %v4621
        %v4623 = vrot.slane %v4043, %v4622
        %v4624 = vsel %vm2543, %v4623, %v4619
        %v4625 = vlaneseq
        %v4626 = vshrl.u32 %v4625, 7
        %v4627 = vsub.s32 %v2545, %v4626
        %v4628 = vrot.slane %v4046, %v4627
        %v4629 = vsel %vm2550, %v4628, %v4624
        %v4630 = vlaneseq
        %v4631 = vshrl.u32 %v4630, 7
        %v4632 = vsub.s32 %v2552, %v4631
        %v4633 = vrot.slane %v4049, %v4632
        %v4634 = vsel %vm2557, %v4633, %v4629
        %v4635 = vlaneseq
        %v4636 = vshrl.u32 %v4635, 7
        %v4637 = vsub.s32 %v2559, %v4636
        %v4638 = vrot.slane %v4052, %v4637
        %v4639 = vsel %vm2564, %v4638, %v4634
        %v4640 = vlaneseq
        %v4641 = vshrl.u32 %v4640, 7
        %v4642 = vsub.s32 %v2566, %v4641
        %v4643 = vrot.slane %v4055, %v4642
        %v4644 = vsel %vm2571, %v4643, %v4639
        %v4645 = vlaneseq
        %v4646 = vshrl.u32 %v4645, 7
        %v4647 = vsub.s32 %v2573, %v4646
        %v4648 = vrot.slane %v4058, %v4647
        %v4649 = vsel %vm2578, %v4648, %v4644
        %v4650 = vlaneseq
        %v4651 = vshrl.u32 %v4650, 7
        %v4652 = vsub.s32 %v2580, %v4651
        %v4653 = vrot.slane %v4061, %v4652
        %v4654 = vsel %vm2585, %v4653, %v4649
        %v4655 = vlaneseq
        %v4656 = vshrl.u32 %v4655, 7
        %v4657 = vsub.s32 %v2587, %v4656
        %v4658 = vrot.slane %v4064, %v4657
        %v4659 = vsel %vm2592, %v4658, %v4654
        %v4660 = vlaneseq
        %v4661 = vshrl.u32 %v4660, 7
        %v4662 = vsub.s32 %v2594, %v4661
        %v4663 = vrot.slane %v4067, %v4662
        %v4664 = vsel %vm2599, %v4663, %v4659
        %v4665 = vlaneseq
        %v4666 = vshrl.u32 %v4665, 7
        %v4667 = vsub.s32 %v2601, %v4666
        %v4668 = vrot.slane %v4070, %v4667
        %v4669 = vsel %vm2606, %v4668, %v4664
        %v4670 = vlaneseq
        %v4671 = vshrl.u32 %v4670, 7
        %v4672 = vsub.s32 %v2608, %v4671
        %v4673 = vrot.slane %v4073, %v4672
        %v4674 = vsel %vm2613, %v4673, %v4669
        %v4675 = vlaneseq
        %v4676 = vshrl.u32 %v4675, 7
        %v4677 = vsub.s32 %v2505, %v4676
        %v4678 = vrot.slane %v4076, %v4677
        %v4679 = vlaneseq
        %v4680 = vshrl.u32 %v4679, 7
        %v4681 = vsub.s32 %v2510, %v4680
        %v4682 = vrot.slane %v4079, %v4681
        %v4683 = vsel %vm2515, %v4682, %v4678
        %v4684 = vlaneseq
        %v4685 = vshrl.u32 %v4684, 7
        %v4686 = vsub.s32 %v2517, %v4685
        %v4687 = vrot.slane %v4082, %v4686
        %v4688 = vsel %vm2522, %v4687, %v4683
        %v4689 = vlaneseq
        %v4690 = vshrl.u32 %v4689, 7
        %v4691 = vsub.s32 %v2524, %v4690
        %v4692 = vrot.slane %v4085, %v4691
        %v4693 = vsel %vm2529, %v4692, %v4688
        %v4694 = vlaneseq
        %v4695 = vshrl.u32 %v4694, 7
        %v4696 = vsub.s32 %v2531, %v4695
        %v4697 = vrot.slane %v4088, %v4696
        %v4698 = vsel %vm2536, %v4697, %v4693
        %v4699 = vlaneseq
        %v4700 = vshrl.u32 %v4699, 7
        %v4701 = vsub.s32 %v2538, %v4700
        %v4702 = vrot.slane %v4091, %v4701
        %v4703 = vsel %vm2543, %v4702, %v4698
        %v4704 = vlaneseq
        %v4705 = vshrl.u32 %v4704, 7
        %v4706 = vsub.s32 %v2545, %v4705
        %v4707 = vrot.slane %v4094, %v4706
        %v4708 = vsel %vm2550, %v4707, %v4703
        %v4709 = vlaneseq
        %v4710 = vshrl.u32 %v4709, 7
        %v4711 = vsub.s32 %v2552, %v4710
        %v4712 = vrot.slane %v4097, %v4711
        %v4713 = vsel %vm2557, %v4712, %v4708
        %v4714 = vlaneseq
        %v4715 = vshrl.u32 %v4714, 7
        %v4716 = vsub.s32 %v2559, %v4715
        %v4717 = vrot.slane %v4100, %v4716
        %v4718 = vsel %vm2564, %v4717, %v4713
        %v4719 = vlaneseq
        %v4720 = vshrl.u32 %v4719, 7
        %v4721 = vsub.s32 %v2566, %v4720
        %v4722 = vrot.slane %v4103, %v4721
        %v4723 = vsel %vm2571, %v4722, %v4718
        %v4724 = vlaneseq
        %v4725 = vshrl.u32 %v4724, 7
        %v4726 = vsub.s32 %v2573, %v4725
        %v4727 = vrot.slane %v4106, %v4726
        %v4728 = vsel %vm2578, %v4727, %v4723
        %v4729 = vlaneseq
        %v4730 = vshrl.u32 %v4729, 7
        %v4731 = vsub.s32 %v2580, %v4730
        %v4732 = vrot.slane %v4109, %v4731
        %v4733 = vsel %vm2585, %v4732, %v4728
        %v4734 = vlaneseq
        %v4735 = vshrl.u32 %v4734, 7
        %v4736 = vsub.s32 %v2587, %v4735
        %v4737 = vrot.slane %v4112, %v4736
        %v4738 = vsel %vm2592, %v4737, %v4733
        %v4739 = vlaneseq
        %v4740 = vshrl.u32 %v4739, 7
        %v4741 = vsub.s32 %v2594, %v4740
        %v4742 = vrot.slane %v4115, %v4741
        %v4743 = vsel %vm2599, %v4742, %v4738
        %v4744 = vlaneseq
        %v4745 = vshrl.u32 %v4744, 7
        %v4746 = vsub.s32 %v2601, %v4745
        %v4747 = vrot.slane %v4118, %v4746
        %v4748 = vsel %vm2606, %v4747, %v4743
        %v4749 = vlaneseq
        %v4750 = vshrl.u32 %v4749, 7
        %v4751 = vsub.s32 %v2608, %v4750
        %v4752 = vrot.slane %v4121, %v4751
        %v4753 = vsel %vm2613, %v4752, %v4748
        %v4754 = vsel %vm3168, %v4279, %v4200
        %v4755 = vsel %vm3170, %v4358, %v4754
        %v4756 = vsel %vm3172, %v4437, %v4755
        %v4757 = vsel %vm3174, %v4516, %v4756
        %v4758 = vsel %vm3176, %v4595, %v4757
        %v4759 = vsel %vm3178, %v4674, %v4758
        %v4760 = vsel %vm3180, %v4753, %v4759
        %4762 = vadd.xlane.f32.xlu0 %v4760
        %v4763 = vpop.xlane.xlu0 %4762
        %v4764 = vrcp.pop %v4763
        %v4766 = vlaneseq
        %v4767 = vshrl.u32 %v4766, 7
        %v4768 = vsub.s32 0, %v4767
        %v4769 = vrot.slane %v4764, %v4768
        %v4770 = vlaneseq
        %v4771 = vshrl.u32 %v4770, 7
        %v4772 = vsub.s32 1, %v4771
        %v4773 = vrot.slane %v4764, %v4772
        %v4774 = vlaneseq
        %v4775 = vshrl.u32 %v4774, 7
        %v4776 = vsub.s32 2, %v4775
        %v4777 = vrot.slane %v4764, %v4776
        %v4778 = vlaneseq
        %v4779 = vshrl.u32 %v4778, 7
        %v4780 = vsub.s32 3, %v4779
        %v4781 = vrot.slane %v4764, %v4780
        %v4782 = vlaneseq
        %v4783 = vshrl.u32 %v4782, 7
        %v4784 = vsub.s32 4, %v4783
        %v4785 = vrot.slane %v4764, %v4784
        %v4786 = vlaneseq
        %v4787 = vshrl.u32 %v4786, 7
        %v4788 = vsub.s32 5, %v4787
        %v4789 = vrot.slane %v4764, %v4788
        %v4790 = vlaneseq
        %v4791 = vshrl.u32 %v4790, 7
        %v4792 = vsub.s32 6, %v4791
        %v4793 = vrot.slane %v4764, %v4792
        %v4794 = vlaneseq
        %v4795 = vshrl.u32 %v4794, 7
        %v4796 = vsub.s32 7, %v4795
        %v4797 = vrot.slane %v4764, %v4796
        %v4806 = vmul.f32 %v3355, %v4769
        %v4807 = vmul.f32 %v3357, %v4769
        %v4808 = vmul.f32 %v3359, %v4769
        %v4809 = vmul.f32 %v3361, %v4769
        %v4810 = vmul.f32 %v3363, %v4769
        %v4811 = vmul.f32 %v3365, %v4769
        %v4812 = vmul.f32 %v3367, %v4769
        %v4813 = vmul.f32 %v3369, %v4769
        %v4814 = vmul.f32 %v3371, %v4769
        %v4815 = vmul.f32 %v3373, %v4769
        %v4816 = vmul.f32 %v3375, %v4769
        %v4817 = vmul.f32 %v3377, %v4769
        %v4818 = vmul.f32 %v3379, %v4769
        %v4819 = vmul.f32 %v3381, %v4769
        %v4820 = vmul.f32 %v3383, %v4769
        %v4821 = vmul.f32 %v3385, %v4769
        %v4822 = vmul.f32 %v3387, %v4773
        %v4823 = vmul.f32 %v3389, %v4773
        %v4824 = vmul.f32 %v3391, %v4773
        %v4825 = vmul.f32 %v3393, %v4773
        %v4826 = vmul.f32 %v3395, %v4773
        %v4827 = vmul.f32 %v3397, %v4773
        %v4828 = vmul.f32 %v3399, %v4773
        %v4829 = vmul.f32 %v3401, %v4773
        %v4830 = vmul.f32 %v3403, %v4773
        %v4831 = vmul.f32 %v3405, %v4773
        %v4832 = vmul.f32 %v3407, %v4773
        %v4833 = vmul.f32 %v3409, %v4773
        %v4834 = vmul.f32 %v3411, %v4773
        %v4835 = vmul.f32 %v3413, %v4773
        %v4836 = vmul.f32 %v3415, %v4773
        %v4837 = vmul.f32 %v3417, %v4773
        %v4838 = vmul.f32 %v3419, %v4777
        %v4839 = vmul.f32 %v3421, %v4777
        %v4840 = vmul.f32 %v3423, %v4777
        %v4841 = vmul.f32 %v3425, %v4777
        %v4842 = vmul.f32 %v3427, %v4777
        %v4843 = vmul.f32 %v3429, %v4777
        %v4844 = vmul.f32 %v3431, %v4777
        %v4845 = vmul.f32 %v3433, %v4777
        %v4846 = vmul.f32 %v3435, %v4777
        %v4847 = vmul.f32 %v3437, %v4777
        %v4848 = vmul.f32 %v3439, %v4777
        %v4849 = vmul.f32 %v3441, %v4777
        %v4850 = vmul.f32 %v3443, %v4777
        %v4851 = vmul.f32 %v3445, %v4777
        %v4852 = vmul.f32 %v3447, %v4777
        %v4853 = vmul.f32 %v3449, %v4777
        %v4854 = vmul.f32 %v3451, %v4781
        %v4855 = vmul.f32 %v3453, %v4781
        %v4856 = vmul.f32 %v3455, %v4781
        %v4857 = vmul.f32 %v3457, %v4781
        %v4858 = vmul.f32 %v3459, %v4781
        %v4859 = vmul.f32 %v3461, %v4781
        %v4860 = vmul.f32 %v3463, %v4781
        %v4861 = vmul.f32 %v3465, %v4781
        %v4862 = vmul.f32 %v3467, %v4781
        %v4863 = vmul.f32 %v3469, %v4781
        %v4864 = vmul.f32 %v3471, %v4781
        %v4865 = vmul.f32 %v3473, %v4781
        %v4866 = vmul.f32 %v3475, %v4781
        %v4867 = vmul.f32 %v3477, %v4781
        %v4868 = vmul.f32 %v3479, %v4781
        %v4869 = vmul.f32 %v3481, %v4781
        %v4870 = vmul.f32 %v3483, %v4785
        %v4871 = vmul.f32 %v3485, %v4785
        %v4872 = vmul.f32 %v3487, %v4785
        %v4873 = vmul.f32 %v3489, %v4785
        %v4874 = vmul.f32 %v3491, %v4785
        %v4875 = vmul.f32 %v3493, %v4785
        %v4876 = vmul.f32 %v3495, %v4785
        %v4877 = vmul.f32 %v3497, %v4785
        %v4878 = vmul.f32 %v3499, %v4785
        %v4879 = vmul.f32 %v3501, %v4785
        %v4880 = vmul.f32 %v3503, %v4785
        %v4881 = vmul.f32 %v3505, %v4785
        %v4882 = vmul.f32 %v3507, %v4785
        %v4883 = vmul.f32 %v3509, %v4785
        %v4884 = vmul.f32 %v3511, %v4785
        %v4885 = vmul.f32 %v3513, %v4785
        %v4886 = vmul.f32 %v3515, %v4789
        %v4887 = vmul.f32 %v3517, %v4789
        %v4888 = vmul.f32 %v3519, %v4789
        %v4889 = vmul.f32 %v3521, %v4789
        %v4890 = vmul.f32 %v3523, %v4789
        %v4891 = vmul.f32 %v3525, %v4789
        %v4892 = vmul.f32 %v3527, %v4789
        %v4893 = vmul.f32 %v3529, %v4789
        %v4894 = vmul.f32 %v3531, %v4789
        %v4895 = vmul.f32 %v3533, %v4789
        %v4896 = vmul.f32 %v3535, %v4789
        %v4897 = vmul.f32 %v3537, %v4789
        %v4898 = vmul.f32 %v3539, %v4789
        %v4899 = vmul.f32 %v3541, %v4789
        %v4900 = vmul.f32 %v3543, %v4789
        %v4901 = vmul.f32 %v3545, %v4789
        %v4902 = vmul.f32 %v3547, %v4793
        %v4903 = vmul.f32 %v3549, %v4793
        %v4904 = vmul.f32 %v3551, %v4793
        %v4905 = vmul.f32 %v3553, %v4793
        %v4906 = vmul.f32 %v3555, %v4793
        %v4907 = vmul.f32 %v3557, %v4793
        %v4908 = vmul.f32 %v3559, %v4793
        %v4909 = vmul.f32 %v3561, %v4793
        %v4910 = vmul.f32 %v3563, %v4793
        %v4911 = vmul.f32 %v3565, %v4793
        %v4912 = vmul.f32 %v3567, %v4793
        %v4913 = vmul.f32 %v3569, %v4793
        %v4914 = vmul.f32 %v3571, %v4793
        %v4915 = vmul.f32 %v3573, %v4793
        %v4916 = vmul.f32 %v3575, %v4793
        %v4917 = vmul.f32 %v3577, %v4793
        %v4918 = vmul.f32 %v3579, %v4797
        %v4919 = vmul.f32 %v3581, %v4797
        %v4920 = vmul.f32 %v3583, %v4797
        %v4921 = vmul.f32 %v3585, %v4797
        %v4922 = vmul.f32 %v3587, %v4797
        %v4923 = vmul.f32 %v3589, %v4797
        %v4924 = vmul.f32 %v3591, %v4797
        %v4925 = vmul.f32 %v3593, %v4797
        %v4926 = vmul.f32 %v3595, %v4797
        %v4927 = vmul.f32 %v3597, %v4797
        %v4928 = vmul.f32 %v3599, %v4797
        %v4929 = vmul.f32 %v3601, %v4797
        %v4930 = vmul.f32 %v3603, %v4797
        %v4931 = vmul.f32 %v3605, %v4797
        %v4932 = vmul.f32 %v3607, %v4797
        %v4933 = vmul.f32 %v3609, %v4797
        %4935 = vset.pattern.permute.xlu0 0
        %4936 = vperm.xlu0 %4935, %v4806
        %v4937 = vpop.permute.xlu0 %4936
        %4940 = vset.pattern.permute.xlu0 0
        %4941 = vperm.xlu0 %4940, %v4807
        %v4942 = vpop.permute.xlu0 %4941
        %4945 = vset.pattern.permute.xlu0 0
        %4946 = vperm.xlu0 %4945, %v4808
        %v4947 = vpop.permute.xlu0 %4946
        %4950 = vset.pattern.permute.xlu0 0
        %4951 = vperm.xlu0 %4950, %v4809
        %v4952 = vpop.permute.xlu0 %4951
        %4955 = vset.pattern.permute.xlu0 0
        %4956 = vperm.xlu0 %4955, %v4810
        %v4957 = vpop.permute.xlu0 %4956
        %4960 = vset.pattern.permute.xlu0 0
        %4961 = vperm.xlu0 %4960, %v4811
        %v4962 = vpop.permute.xlu0 %4961
        %4965 = vset.pattern.permute.xlu0 0
        %4966 = vperm.xlu0 %4965, %v4812
        %v4967 = vpop.permute.xlu0 %4966
        %4970 = vset.pattern.permute.xlu0 0
        %4971 = vperm.xlu0 %4970, %v4813
        %v4972 = vpop.permute.xlu0 %4971
        %4975 = vset.pattern.permute.xlu0 0
        %4976 = vperm.xlu0 %4975, %v4814
        %v4977 = vpop.permute.xlu0 %4976
        %4980 = vset.pattern.permute.xlu0 0
        %4981 = vperm.xlu0 %4980, %v4815
        %v4982 = vpop.permute.xlu0 %4981
        %4985 = vset.pattern.permute.xlu0 0
        %4986 = vperm.xlu0 %4985, %v4816
        %v4987 = vpop.permute.xlu0 %4986
        %4990 = vset.pattern.permute.xlu0 0
        %4991 = vperm.xlu0 %4990, %v4817
        %v4992 = vpop.permute.xlu0 %4991
        %4995 = vset.pattern.permute.xlu0 0
        %4996 = vperm.xlu0 %4995, %v4818
        %v4997 = vpop.permute.xlu0 %4996
        %5000 = vset.pattern.permute.xlu0 0
        %5001 = vperm.xlu0 %5000, %v4819
        %v5002 = vpop.permute.xlu0 %5001
        %5005 = vset.pattern.permute.xlu0 0
        %5006 = vperm.xlu0 %5005, %v4820
        %v5007 = vpop.permute.xlu0 %5006
        %5010 = vset.pattern.permute.xlu0 0
        %5011 = vperm.xlu0 %5010, %v4821
        %v5012 = vpop.permute.xlu0 %5011
        %5015 = vset.pattern.permute.xlu0 0
        %5016 = vperm.xlu0 %5015, %v4822
        %v5017 = vpop.permute.xlu0 %5016
        %5020 = vset.pattern.permute.xlu0 0
        %5021 = vperm.xlu0 %5020, %v4823
        %v5022 = vpop.permute.xlu0 %5021
        %5025 = vset.pattern.permute.xlu0 0
        %5026 = vperm.xlu0 %5025, %v4824
        %v5027 = vpop.permute.xlu0 %5026
        %5030 = vset.pattern.permute.xlu0 0
        %5031 = vperm.xlu0 %5030, %v4825
        %v5032 = vpop.permute.xlu0 %5031
        %5035 = vset.pattern.permute.xlu0 0
        %5036 = vperm.xlu0 %5035, %v4826
        %v5037 = vpop.permute.xlu0 %5036
        %5040 = vset.pattern.permute.xlu0 0
        %5041 = vperm.xlu0 %5040, %v4827
        %v5042 = vpop.permute.xlu0 %5041
        %5045 = vset.pattern.permute.xlu0 0
        %5046 = vperm.xlu0 %5045, %v4828
        %v5047 = vpop.permute.xlu0 %5046
        %5050 = vset.pattern.permute.xlu0 0
        %5051 = vperm.xlu0 %5050, %v4829
        %v5052 = vpop.permute.xlu0 %5051
        %5055 = vset.pattern.permute.xlu0 0
        %5056 = vperm.xlu0 %5055, %v4830
        %v5057 = vpop.permute.xlu0 %5056
        %5060 = vset.pattern.permute.xlu0 0
        %5061 = vperm.xlu0 %5060, %v4831
        %v5062 = vpop.permute.xlu0 %5061
        %5065 = vset.pattern.permute.xlu0 0
        %5066 = vperm.xlu0 %5065, %v4832
        %v5067 = vpop.permute.xlu0 %5066
        %5070 = vset.pattern.permute.xlu0 0
        %5071 = vperm.xlu0 %5070, %v4833
        %v5072 = vpop.permute.xlu0 %5071
        %5075 = vset.pattern.permute.xlu0 0
        %5076 = vperm.xlu0 %5075, %v4834
        %v5077 = vpop.permute.xlu0 %5076
        %5080 = vset.pattern.permute.xlu0 0
        %5081 = vperm.xlu0 %5080, %v4835
        %v5082 = vpop.permute.xlu0 %5081
        %5085 = vset.pattern.permute.xlu0 0
        %5086 = vperm.xlu0 %5085, %v4836
        %v5087 = vpop.permute.xlu0 %5086
        %5090 = vset.pattern.permute.xlu0 0
        %5091 = vperm.xlu0 %5090, %v4837
        %v5092 = vpop.permute.xlu0 %5091
        %5095 = vset.pattern.permute.xlu0 0
        %5096 = vperm.xlu0 %5095, %v4838
        %v5097 = vpop.permute.xlu0 %5096
        %5100 = vset.pattern.permute.xlu0 0
        %5101 = vperm.xlu0 %5100, %v4839
        %v5102 = vpop.permute.xlu0 %5101
        %5105 = vset.pattern.permute.xlu0 0
        %5106 = vperm.xlu0 %5105, %v4840
        %v5107 = vpop.permute.xlu0 %5106
        %5110 = vset.pattern.permute.xlu0 0
        %5111 = vperm.xlu0 %5110, %v4841
        %v5112 = vpop.permute.xlu0 %5111
        %5115 = vset.pattern.permute.xlu0 0
        %5116 = vperm.xlu0 %5115, %v4842
        %v5117 = vpop.permute.xlu0 %5116
        %5120 = vset.pattern.permute.xlu0 0
        %5121 = vperm.xlu0 %5120, %v4843
        %v5122 = vpop.permute.xlu0 %5121
        %5125 = vset.pattern.permute.xlu0 0
        %5126 = vperm.xlu0 %5125, %v4844
        %v5127 = vpop.permute.xlu0 %5126
        %5130 = vset.pattern.permute.xlu0 0
        %5131 = vperm.xlu0 %5130, %v4845
        %v5132 = vpop.permute.xlu0 %5131
        %5135 = vset.pattern.permute.xlu0 0
        %5136 = vperm.xlu0 %5135, %v4846
        %v5137 = vpop.permute.xlu0 %5136
        %5140 = vset.pattern.permute.xlu0 0
        %5141 = vperm.xlu0 %5140, %v4847
        %v5142 = vpop.permute.xlu0 %5141
        %5145 = vset.pattern.permute.xlu0 0
        %5146 = vperm.xlu0 %5145, %v4848
        %v5147 = vpop.permute.xlu0 %5146
        %5150 = vset.pattern.permute.xlu0 0
        %5151 = vperm.xlu0 %5150, %v4849
        %v5152 = vpop.permute.xlu0 %5151
        %5155 = vset.pattern.permute.xlu0 0
        %5156 = vperm.xlu0 %5155, %v4850
        %v5157 = vpop.permute.xlu0 %5156
        %5160 = vset.pattern.permute.xlu0 0
        %5161 = vperm.xlu0 %5160, %v4851
        %v5162 = vpop.permute.xlu0 %5161
        %5165 = vset.pattern.permute.xlu0 0
        %5166 = vperm.xlu0 %5165, %v4852
        %v5167 = vpop.permute.xlu0 %5166
        %5170 = vset.pattern.permute.xlu0 0
        %5171 = vperm.xlu0 %5170, %v4853
        %v5172 = vpop.permute.xlu0 %5171
        %5175 = vset.pattern.permute.xlu0 0
        %5176 = vperm.xlu0 %5175, %v4854
        %v5177 = vpop.permute.xlu0 %5176
        %5180 = vset.pattern.permute.xlu0 0
        %5181 = vperm.xlu0 %5180, %v4855
        %v5182 = vpop.permute.xlu0 %5181
        %5185 = vset.pattern.permute.xlu0 0
        %5186 = vperm.xlu0 %5185, %v4856
        %v5187 = vpop.permute.xlu0 %5186
        %5190 = vset.pattern.permute.xlu0 0
        %5191 = vperm.xlu0 %5190, %v4857
        %v5192 = vpop.permute.xlu0 %5191
        %5195 = vset.pattern.permute.xlu0 0
        %5196 = vperm.xlu0 %5195, %v4858
        %v5197 = vpop.permute.xlu0 %5196
        %5200 = vset.pattern.permute.xlu0 0
        %5201 = vperm.xlu0 %5200, %v4859
        %v5202 = vpop.permute.xlu0 %5201
        %5205 = vset.pattern.permute.xlu0 0
        %5206 = vperm.xlu0 %5205, %v4860
        %v5207 = vpop.permute.xlu0 %5206
        %5210 = vset.pattern.permute.xlu0 0
        %5211 = vperm.xlu0 %5210, %v4861
        %v5212 = vpop.permute.xlu0 %5211
        %5215 = vset.pattern.permute.xlu0 0
        %5216 = vperm.xlu0 %5215, %v4862
        %v5217 = vpop.permute.xlu0 %5216
        %5220 = vset.pattern.permute.xlu0 0
        %5221 = vperm.xlu0 %5220, %v4863
        %v5222 = vpop.permute.xlu0 %5221
        %5225 = vset.pattern.permute.xlu0 0
        %5226 = vperm.xlu0 %5225, %v4864
        %v5227 = vpop.permute.xlu0 %5226
        %5230 = vset.pattern.permute.xlu0 0
        %5231 = vperm.xlu0 %5230, %v4865
        %v5232 = vpop.permute.xlu0 %5231
        %5235 = vset.pattern.permute.xlu0 0
        %5236 = vperm.xlu0 %5235, %v4866
        %v5237 = vpop.permute.xlu0 %5236
        %5240 = vset.pattern.permute.xlu0 0
        %5241 = vperm.xlu0 %5240, %v4867
        %v5242 = vpop.permute.xlu0 %5241
        %5245 = vset.pattern.permute.xlu0 0
        %5246 = vperm.xlu0 %5245, %v4868
        %v5247 = vpop.permute.xlu0 %5246
        %5250 = vset.pattern.permute.xlu0 0
        %5251 = vperm.xlu0 %5250, %v4869
        %v5252 = vpop.permute.xlu0 %5251
        %5255 = vset.pattern.permute.xlu0 0
        %5256 = vperm.xlu0 %5255, %v4870
        %v5257 = vpop.permute.xlu0 %5256
        %5260 = vset.pattern.permute.xlu0 0
        %5261 = vperm.xlu0 %5260, %v4871
        %v5262 = vpop.permute.xlu0 %5261
        %5265 = vset.pattern.permute.xlu0 0
        %5266 = vperm.xlu0 %5265, %v4872
        %v5267 = vpop.permute.xlu0 %5266
        %5270 = vset.pattern.permute.xlu0 0
        %5271 = vperm.xlu0 %5270, %v4873
        %v5272 = vpop.permute.xlu0 %5271
        %5275 = vset.pattern.permute.xlu0 0
        %5276 = vperm.xlu0 %5275, %v4874
        %v5277 = vpop.permute.xlu0 %5276
        %5280 = vset.pattern.permute.xlu0 0
        %5281 = vperm.xlu0 %5280, %v4875
        %v5282 = vpop.permute.xlu0 %5281
        %5285 = vset.pattern.permute.xlu0 0
        %5286 = vperm.xlu0 %5285, %v4876
        %v5287 = vpop.permute.xlu0 %5286
        %5290 = vset.pattern.permute.xlu0 0
        %5291 = vperm.xlu0 %5290, %v4877
        %v5292 = vpop.permute.xlu0 %5291
        %5295 = vset.pattern.permute.xlu0 0
        %5296 = vperm.xlu0 %5295, %v4878
        %v5297 = vpop.permute.xlu0 %5296
        %5300 = vset.pattern.permute.xlu0 0
        %5301 = vperm.xlu0 %5300, %v4879
        %v5302 = vpop.permute.xlu0 %5301
        %5305 = vset.pattern.permute.xlu0 0
        %5306 = vperm.xlu0 %5305, %v4880
        %v5307 = vpop.permute.xlu0 %5306
        %5310 = vset.pattern.permute.xlu0 0
        %5311 = vperm.xlu0 %5310, %v4881
        %v5312 = vpop.permute.xlu0 %5311
        %5315 = vset.pattern.permute.xlu0 0
        %5316 = vperm.xlu0 %5315, %v4882
        %v5317 = vpop.permute.xlu0 %5316
        %5320 = vset.pattern.permute.xlu0 0
        %5321 = vperm.xlu0 %5320, %v4883
        %v5322 = vpop.permute.xlu0 %5321
        %5325 = vset.pattern.permute.xlu0 0
        %5326 = vperm.xlu0 %5325, %v4884
        %v5327 = vpop.permute.xlu0 %5326
        %5330 = vset.pattern.permute.xlu0 0
        %5331 = vperm.xlu0 %5330, %v4885
        %v5332 = vpop.permute.xlu0 %5331
        %5335 = vset.pattern.permute.xlu0 0
        %5336 = vperm.xlu0 %5335, %v4886
        %v5337 = vpop.permute.xlu0 %5336
        %5340 = vset.pattern.permute.xlu0 0
        %5341 = vperm.xlu0 %5340, %v4887
        %v5342 = vpop.permute.xlu0 %5341
        %5345 = vset.pattern.permute.xlu0 0
        %5346 = vperm.xlu0 %5345, %v4888
        %v5347 = vpop.permute.xlu0 %5346
        %5350 = vset.pattern.permute.xlu0 0
        %5351 = vperm.xlu0 %5350, %v4889
        %v5352 = vpop.permute.xlu0 %5351
        %5355 = vset.pattern.permute.xlu0 0
        %5356 = vperm.xlu0 %5355, %v4890
        %v5357 = vpop.permute.xlu0 %5356
        %5360 = vset.pattern.permute.xlu0 0
        %5361 = vperm.xlu0 %5360, %v4891
        %v5362 = vpop.permute.xlu0 %5361
        %5365 = vset.pattern.permute.xlu0 0
        %5366 = vperm.xlu0 %5365, %v4892
        %v5367 = vpop.permute.xlu0 %5366
        %5370 = vset.pattern.permute.xlu0 0
        %5371 = vperm.xlu0 %5370, %v4893
        %v5372 = vpop.permute.xlu0 %5371
        %5375 = vset.pattern.permute.xlu0 0
        %5376 = vperm.xlu0 %5375, %v4894
        %v5377 = vpop.permute.xlu0 %5376
        %5380 = vset.pattern.permute.xlu0 0
        %5381 = vperm.xlu0 %5380, %v4895
        %v5382 = vpop.permute.xlu0 %5381
        %5385 = vset.pattern.permute.xlu0 0
        %5386 = vperm.xlu0 %5385, %v4896
        %v5387 = vpop.permute.xlu0 %5386
        %5390 = vset.pattern.permute.xlu0 0
        %5391 = vperm.xlu0 %5390, %v4897
        %v5392 = vpop.permute.xlu0 %5391
        %5395 = vset.pattern.permute.xlu0 0
        %5396 = vperm.xlu0 %5395, %v4898
        %v5397 = vpop.permute.xlu0 %5396
        %5400 = vset.pattern.permute.xlu0 0
        %5401 = vperm.xlu0 %5400, %v4899
        %v5402 = vpop.permute.xlu0 %5401
        %5405 = vset.pattern.permute.xlu0 0
        %5406 = vperm.xlu0 %5405, %v4900
        %v5407 = vpop.permute.xlu0 %5406
        %5410 = vset.pattern.permute.xlu0 0
        %5411 = vperm.xlu0 %5410, %v4901
        %v5412 = vpop.permute.xlu0 %5411
        %5415 = vset.pattern.permute.xlu0 0
        %5416 = vperm.xlu0 %5415, %v4902
        %v5417 = vpop.permute.xlu0 %5416
        %5420 = vset.pattern.permute.xlu0 0
        %5421 = vperm.xlu0 %5420, %v4903
        %v5422 = vpop.permute.xlu0 %5421
        %5425 = vset.pattern.permute.xlu0 0
        %5426 = vperm.xlu0 %5425, %v4904
        %v5427 = vpop.permute.xlu0 %5426
        %5430 = vset.pattern.permute.xlu0 0
        %5431 = vperm.xlu0 %5430, %v4905
        %v5432 = vpop.permute.xlu0 %5431
        %5435 = vset.pattern.permute.xlu0 0
        %5436 = vperm.xlu0 %5435, %v4906
        %v5437 = vpop.permute.xlu0 %5436
        %5440 = vset.pattern.permute.xlu0 0
        %5441 = vperm.xlu0 %5440, %v4907
        %v5442 = vpop.permute.xlu0 %5441
        %5445 = vset.pattern.permute.xlu0 0
        %5446 = vperm.xlu0 %5445, %v4908
        %v5447 = vpop.permute.xlu0 %5446
        %5450 = vset.pattern.permute.xlu0 0
        %5451 = vperm.xlu0 %5450, %v4909
        %v5452 = vpop.permute.xlu0 %5451
        %5455 = vset.pattern.permute.xlu0 0
        %5456 = vperm.xlu0 %5455, %v4910
        %v5457 = vpop.permute.xlu0 %5456
        %5460 = vset.pattern.permute.xlu0 0
        %5461 = vperm.xlu0 %5460, %v4911
        %v5462 = vpop.permute.xlu0 %5461
        %5465 = vset.pattern.permute.xlu0 0
        %5466 = vperm.xlu0 %5465, %v4912
        %v5467 = vpop.permute.xlu0 %5466
        %5470 = vset.pattern.permute.xlu0 0
        %5471 = vperm.xlu0 %5470, %v4913
        %v5472 = vpop.permute.xlu0 %5471
        %5475 = vset.pattern.permute.xlu0 0
        %5476 = vperm.xlu0 %5475, %v4914
        %v5477 = vpop.permute.xlu0 %5476
        %5480 = vset.pattern.permute.xlu0 0
        %5481 = vperm.xlu0 %5480, %v4915
        %v5482 = vpop.permute.xlu0 %5481
        %5485 = vset.pattern.permute.xlu0 0
        %5486 = vperm.xlu0 %5485, %v4916
        %v5487 = vpop.permute.xlu0 %5486
        %5490 = vset.pattern.permute.xlu0 0
        %5491 = vperm.xlu0 %5490, %v4917
        %v5492 = vpop.permute.xlu0 %5491
        %5495 = vset.pattern.permute.xlu0 0
        %5496 = vperm.xlu0 %5495, %v4918
        %v5497 = vpop.permute.xlu0 %5496
        %5500 = vset.pattern.permute.xlu0 0
        %5501 = vperm.xlu0 %5500, %v4919
        %v5502 = vpop.permute.xlu0 %5501
        %5505 = vset.pattern.permute.xlu0 0
        %5506 = vperm.xlu0 %5505, %v4920
        %v5507 = vpop.permute.xlu0 %5506
        %5510 = vset.pattern.permute.xlu0 0
        %5511 = vperm.xlu0 %5510, %v4921
        %v5512 = vpop.permute.xlu0 %5511
        %5515 = vset.pattern.permute.xlu0 0
        %5516 = vperm.xlu0 %5515, %v4922
        %v5517 = vpop.permute.xlu0 %5516
        %5520 = vset.pattern.permute.xlu0 0
        %5521 = vperm.xlu0 %5520, %v4923
        %v5522 = vpop.permute.xlu0 %5521
        %5525 = vset.pattern.permute.xlu0 0
        %5526 = vperm.xlu0 %5525, %v4924
        %v5527 = vpop.permute.xlu0 %5526
        %5530 = vset.pattern.permute.xlu0 0
        %5531 = vperm.xlu0 %5530, %v4925
        %v5532 = vpop.permute.xlu0 %5531
        %5535 = vset.pattern.permute.xlu0 0
        %5536 = vperm.xlu0 %5535, %v4926
        %v5537 = vpop.permute.xlu0 %5536
        %5540 = vset.pattern.permute.xlu0 0
        %5541 = vperm.xlu0 %5540, %v4927
        %v5542 = vpop.permute.xlu0 %5541
        %5545 = vset.pattern.permute.xlu0 0
        %5546 = vperm.xlu0 %5545, %v4928
        %v5547 = vpop.permute.xlu0 %5546
        %5550 = vset.pattern.permute.xlu0 0
        %5551 = vperm.xlu0 %5550, %v4929
        %v5552 = vpop.permute.xlu0 %5551
        %5555 = vset.pattern.permute.xlu0 0
        %5556 = vperm.xlu0 %5555, %v4930
        %v5557 = vpop.permute.xlu0 %5556
        %5560 = vset.pattern.permute.xlu0 0
        %5561 = vperm.xlu0 %5560, %v4931
        %v5562 = vpop.permute.xlu0 %5561
        %5565 = vset.pattern.permute.xlu0 0
        %5566 = vperm.xlu0 %5565, %v4932
        %v5567 = vpop.permute.xlu0 %5566
        %5570 = vset.pattern.permute.xlu0 0
        %5571 = vperm.xlu0 %5570, %v4933
        %v5572 = vpop.permute.xlu0 %5571
        %v5574 = vmul.f32 %v431, %v4937
        %v5575 = vmul.f32 %v432, %v4942
        %v5576 = vmul.f32 %v433, %v4947
        %v5577 = vmul.f32 %v434, %v4952
        %v5578 = vmul.f32 %v435, %v4957
        %v5579 = vmul.f32 %v436, %v4962
        %v5580 = vmul.f32 %v437, %v4967
        %v5581 = vmul.f32 %v438, %v4972
        %v5582 = vmul.f32 %v439, %v4977
        %v5583 = vmul.f32 %v440, %v4982
        %v5584 = vmul.f32 %v441, %v4987
        %v5585 = vmul.f32 %v442, %v4992
        %v5586 = vmul.f32 %v443, %v4997
        %v5587 = vmul.f32 %v444, %v5002
        %v5588 = vmul.f32 %v445, %v5007
        %v5589 = vmul.f32 %v446, %v5012
        %v5590 = vmul.f32 %v447, %v5017
        %v5591 = vmul.f32 %v448, %v5022
        %v5592 = vmul.f32 %v449, %v5027
        %v5593 = vmul.f32 %v450, %v5032
        %v5594 = vmul.f32 %v451, %v5037
        %v5595 = vmul.f32 %v452, %v5042
        %v5596 = vmul.f32 %v453, %v5047
        %v5597 = vmul.f32 %v454, %v5052
        %v5598 = vmul.f32 %v455, %v5057
        %v5599 = vmul.f32 %v456, %v5062
        %v5600 = vmul.f32 %v457, %v5067
        %v5601 = vmul.f32 %v458, %v5072
        %v5602 = vmul.f32 %v459, %v5077
        %v5603 = vmul.f32 %v460, %v5082
        %v5604 = vmul.f32 %v461, %v5087
        %v5605 = vmul.f32 %v462, %v5092
        %v5606 = vmul.f32 %v463, %v5097
        %v5607 = vmul.f32 %v464, %v5102
        %v5608 = vmul.f32 %v465, %v5107
        %v5609 = vmul.f32 %v466, %v5112
        %v5610 = vmul.f32 %v467, %v5117
        %v5611 = vmul.f32 %v468, %v5122
        %v5612 = vmul.f32 %v469, %v5127
        %v5613 = vmul.f32 %v470, %v5132
        %v5614 = vmul.f32 %v471, %v5137
        %v5615 = vmul.f32 %v472, %v5142
        %v5616 = vmul.f32 %v473, %v5147
        %v5617 = vmul.f32 %v474, %v5152
        %v5618 = vmul.f32 %v475, %v5157
        %v5619 = vmul.f32 %v476, %v5162
        %v5620 = vmul.f32 %v477, %v5167
        %v5621 = vmul.f32 %v478, %v5172
        %v5622 = vmul.f32 %v479, %v5177
        %v5623 = vmul.f32 %v480, %v5182
        %v5624 = vmul.f32 %v481, %v5187
        %v5625 = vmul.f32 %v482, %v5192
        %v5626 = vmul.f32 %v483, %v5197
        %v5627 = vmul.f32 %v484, %v5202
        %v5628 = vmul.f32 %v485, %v5207
        %v5629 = vmul.f32 %v486, %v5212
        %v5630 = vmul.f32 %v487, %v5217
        %v5631 = vmul.f32 %v488, %v5222
        %v5632 = vmul.f32 %v489, %v5227
        %v5633 = vmul.f32 %v490, %v5232
        %v5634 = vmul.f32 %v491, %v5237
        %v5635 = vmul.f32 %v492, %v5242
        %v5636 = vmul.f32 %v493, %v5247
        %v5637 = vmul.f32 %v494, %v5252
        %v5638 = vmul.f32 %v495, %v5257
        %v5639 = vmul.f32 %v496, %v5262
        %v5640 = vmul.f32 %v497, %v5267
        %v5641 = vmul.f32 %v498, %v5272
        %v5642 = vmul.f32 %v499, %v5277
        %v5643 = vmul.f32 %v500, %v5282
        %v5644 = vmul.f32 %v501, %v5287
        %v5645 = vmul.f32 %v502, %v5292
        %v5646 = vmul.f32 %v503, %v5297
        %v5647 = vmul.f32 %v504, %v5302
        %v5648 = vmul.f32 %v505, %v5307
        %v5649 = vmul.f32 %v506, %v5312
        %v5650 = vmul.f32 %v507, %v5317
        %v5651 = vmul.f32 %v508, %v5322
        %v5652 = vmul.f32 %v509, %v5327
        %v5653 = vmul.f32 %v510, %v5332
        %v5654 = vmul.f32 %v511, %v5337
        %v5655 = vmul.f32 %v512, %v5342
        %v5656 = vmul.f32 %v513, %v5347
        %v5657 = vmul.f32 %v514, %v5352
        %v5658 = vmul.f32 %v515, %v5357
        %v5659 = vmul.f32 %v516, %v5362
        %v5660 = vmul.f32 %v517, %v5367
        %v5661 = vmul.f32 %v518, %v5372
        %v5662 = vmul.f32 %v519, %v5377
        %v5663 = vmul.f32 %v520, %v5382
        %v5664 = vmul.f32 %v521, %v5387
        %v5665 = vmul.f32 %v522, %v5392
        %v5666 = vmul.f32 %v523, %v5397
        %v5667 = vmul.f32 %v524, %v5402
        %v5668 = vmul.f32 %v525, %v5407
        %v5669 = vmul.f32 %v526, %v5412
        %v5670 = vmul.f32 %v527, %v5417
        %v5671 = vmul.f32 %v528, %v5422
        %v5672 = vmul.f32 %v529, %v5427
        %v5673 = vmul.f32 %v530, %v5432
        %v5674 = vmul.f32 %v531, %v5437
        %v5675 = vmul.f32 %v532, %v5442
        %v5676 = vmul.f32 %v533, %v5447
        %v5677 = vmul.f32 %v534, %v5452
        %v5678 = vmul.f32 %v535, %v5457
        %v5679 = vmul.f32 %v536, %v5462
        %v5680 = vmul.f32 %v537, %v5467
        %v5681 = vmul.f32 %v538, %v5472
        %v5682 = vmul.f32 %v539, %v5477
        %v5683 = vmul.f32 %v540, %v5482
        %v5684 = vmul.f32 %v541, %v5487
        %v5685 = vmul.f32 %v542, %v5492
        %v5686 = vmul.f32 %v543, %v5497
        %v5687 = vmul.f32 %v544, %v5502
        %v5688 = vmul.f32 %v545, %v5507
        %v5689 = vmul.f32 %v546, %v5512
        %v5690 = vmul.f32 %v547, %v5517
        %v5691 = vmul.f32 %v548, %v5522
        %v5692 = vmul.f32 %v549, %v5527
        %v5693 = vmul.f32 %v550, %v5532
        %v5694 = vmul.f32 %v551, %v5537
        %v5695 = vmul.f32 %v552, %v5542
        %v5696 = vmul.f32 %v553, %v5547
        %v5697 = vmul.f32 %v554, %v5552
        %v5698 = vmul.f32 %v555, %v5557
        %v5699 = vmul.f32 %v556, %v5562
        %v5700 = vmul.f32 %v557, %v5567
        %v5701 = vmul.f32 %v558, %v5572
        %v5702 = vadd.f32 %v5574, %v5575
        %v5703 = vadd.f32 %v5702, %v5576
        %v5704 = vadd.f32 %v5703, %v5577
        %v5705 = vadd.f32 %v5704, %v5578
        %v5706 = vadd.f32 %v5705, %v5579
        %v5707 = vadd.f32 %v5706, %v5580
        %v5708 = vadd.f32 %v5707, %v5581
        %v5709 = vadd.f32 %v5708, %v5582
        %v5710 = vadd.f32 %v5709, %v5583
        %v5711 = vadd.f32 %v5710, %v5584
        %v5712 = vadd.f32 %v5711, %v5585
        %v5713 = vadd.f32 %v5712, %v5586
        %v5714 = vadd.f32 %v5713, %v5587
        %v5715 = vadd.f32 %v5714, %v5588
        %v5716 = vadd.f32 %v5715, %v5589
        %v5717 = vrot.slane %v5716, 4
        %v5718 = vadd.f32 %v5716, %v5717
        %v5719 = vrot.slane %v5718, 2
        %v5720 = vadd.f32 %v5718, %v5719
        %v5721 = vrot.slane %v5720, 1
        %v5722 = vadd.f32 %v5720, %v5721
        %v5723 = vadd.f32 %v5590, %v5591
        %v5724 = vadd.f32 %v5723, %v5592
        %v5725 = vadd.f32 %v5724, %v5593
        %v5726 = vadd.f32 %v5725, %v5594
        %v5727 = vadd.f32 %v5726, %v5595
        %v5728 = vadd.f32 %v5727, %v5596
        %v5729 = vadd.f32 %v5728, %v5597
        %v5730 = vadd.f32 %v5729, %v5598
        %v5731 = vadd.f32 %v5730, %v5599
        %v5732 = vadd.f32 %v5731, %v5600
        %v5733 = vadd.f32 %v5732, %v5601
        %v5734 = vadd.f32 %v5733, %v5602
        %v5735 = vadd.f32 %v5734, %v5603
        %v5736 = vadd.f32 %v5735, %v5604
        %v5737 = vadd.f32 %v5736, %v5605
        %v5738 = vrot.slane %v5737, 4
        %v5739 = vadd.f32 %v5737, %v5738
        %v5740 = vrot.slane %v5739, 2
        %v5741 = vadd.f32 %v5739, %v5740
        %v5742 = vrot.slane %v5741, 1
        %v5743 = vadd.f32 %v5741, %v5742
        %v5744 = vadd.f32 %v5606, %v5607
        %v5745 = vadd.f32 %v5744, %v5608
        %v5746 = vadd.f32 %v5745, %v5609
        %v5747 = vadd.f32 %v5746, %v5610
        %v5748 = vadd.f32 %v5747, %v5611
        %v5749 = vadd.f32 %v5748, %v5612
        %v5750 = vadd.f32 %v5749, %v5613
        %v5751 = vadd.f32 %v5750, %v5614
        %v5752 = vadd.f32 %v5751, %v5615
        %v5753 = vadd.f32 %v5752, %v5616
        %v5754 = vadd.f32 %v5753, %v5617
        %v5755 = vadd.f32 %v5754, %v5618
        %v5756 = vadd.f32 %v5755, %v5619
        %v5757 = vadd.f32 %v5756, %v5620
        %v5758 = vadd.f32 %v5757, %v5621
        %v5759 = vrot.slane %v5758, 4
        %v5760 = vadd.f32 %v5758, %v5759
        %v5761 = vrot.slane %v5760, 2
        %v5762 = vadd.f32 %v5760, %v5761
        %v5763 = vrot.slane %v5762, 1
        %v5764 = vadd.f32 %v5762, %v5763
        %v5765 = vadd.f32 %v5622, %v5623
        %v5766 = vadd.f32 %v5765, %v5624
        %v5767 = vadd.f32 %v5766, %v5625
        %v5768 = vadd.f32 %v5767, %v5626
        %v5769 = vadd.f32 %v5768, %v5627
        %v5770 = vadd.f32 %v5769, %v5628
        %v5771 = vadd.f32 %v5770, %v5629
        %v5772 = vadd.f32 %v5771, %v5630
        %v5773 = vadd.f32 %v5772, %v5631
        %v5774 = vadd.f32 %v5773, %v5632
        %v5775 = vadd.f32 %v5774, %v5633
        %v5776 = vadd.f32 %v5775, %v5634
        %v5777 = vadd.f32 %v5776, %v5635
        %v5778 = vadd.f32 %v5777, %v5636
        %v5779 = vadd.f32 %v5778, %v5637
        %v5780 = vrot.slane %v5779, 4
        %v5781 = vadd.f32 %v5779, %v5780
        %v5782 = vrot.slane %v5781, 2
        %v5783 = vadd.f32 %v5781, %v5782
        %v5784 = vrot.slane %v5783, 1
        %v5785 = vadd.f32 %v5783, %v5784
        %v5786 = vadd.f32 %v5638, %v5639
        %v5787 = vadd.f32 %v5786, %v5640
        %v5788 = vadd.f32 %v5787, %v5641
        %v5789 = vadd.f32 %v5788, %v5642
        %v5790 = vadd.f32 %v5789, %v5643
        %v5791 = vadd.f32 %v5790, %v5644
        %v5792 = vadd.f32 %v5791, %v5645
        %v5793 = vadd.f32 %v5792, %v5646
        %v5794 = vadd.f32 %v5793, %v5647
        %v5795 = vadd.f32 %v5794, %v5648
        %v5796 = vadd.f32 %v5795, %v5649
        %v5797 = vadd.f32 %v5796, %v5650
        %v5798 = vadd.f32 %v5797, %v5651
        %v5799 = vadd.f32 %v5798, %v5652
        %v5800 = vadd.f32 %v5799, %v5653
        %v5801 = vrot.slane %v5800, 4
        %v5802 = vadd.f32 %v5800, %v5801
        %v5803 = vrot.slane %v5802, 2
        %v5804 = vadd.f32 %v5802, %v5803
        %v5805 = vrot.slane %v5804, 1
        %v5806 = vadd.f32 %v5804, %v5805
        %v5807 = vadd.f32 %v5654, %v5655
        %v5808 = vadd.f32 %v5807, %v5656
        %v5809 = vadd.f32 %v5808, %v5657
        %v5810 = vadd.f32 %v5809, %v5658
        %v5811 = vadd.f32 %v5810, %v5659
        %v5812 = vadd.f32 %v5811, %v5660
        %v5813 = vadd.f32 %v5812, %v5661
        %v5814 = vadd.f32 %v5813, %v5662
        %v5815 = vadd.f32 %v5814, %v5663
        %v5816 = vadd.f32 %v5815, %v5664
        %v5817 = vadd.f32 %v5816, %v5665
        %v5818 = vadd.f32 %v5817, %v5666
        %v5819 = vadd.f32 %v5818, %v5667
        %v5820 = vadd.f32 %v5819, %v5668
        %v5821 = vadd.f32 %v5820, %v5669
        %v5822 = vrot.slane %v5821, 4
        %v5823 = vadd.f32 %v5821, %v5822
        %v5824 = vrot.slane %v5823, 2
        %v5825 = vadd.f32 %v5823, %v5824
        %v5826 = vrot.slane %v5825, 1
        %v5827 = vadd.f32 %v5825, %v5826
        %v5828 = vadd.f32 %v5670, %v5671
        %v5829 = vadd.f32 %v5828, %v5672
        %v5830 = vadd.f32 %v5829, %v5673
        %v5831 = vadd.f32 %v5830, %v5674
        %v5832 = vadd.f32 %v5831, %v5675
        %v5833 = vadd.f32 %v5832, %v5676
        %v5834 = vadd.f32 %v5833, %v5677
        %v5835 = vadd.f32 %v5834, %v5678
        %v5836 = vadd.f32 %v5835, %v5679
        %v5837 = vadd.f32 %v5836, %v5680
        %v5838 = vadd.f32 %v5837, %v5681
        %v5839 = vadd.f32 %v5838, %v5682
        %v5840 = vadd.f32 %v5839, %v5683
        %v5841 = vadd.f32 %v5840, %v5684
        %v5842 = vadd.f32 %v5841, %v5685
        %v5843 = vrot.slane %v5842, 4
        %v5844 = vadd.f32 %v5842, %v5843
        %v5845 = vrot.slane %v5844, 2
        %v5846 = vadd.f32 %v5844, %v5845
        %v5847 = vrot.slane %v5846, 1
        %v5848 = vadd.f32 %v5846, %v5847
        %v5849 = vadd.f32 %v5686, %v5687
        %v5850 = vadd.f32 %v5849, %v5688
        %v5851 = vadd.f32 %v5850, %v5689
        %v5852 = vadd.f32 %v5851, %v5690
        %v5853 = vadd.f32 %v5852, %v5691
        %v5854 = vadd.f32 %v5853, %v5692
        %v5855 = vadd.f32 %v5854, %v5693
        %v5856 = vadd.f32 %v5855, %v5694
        %v5857 = vadd.f32 %v5856, %v5695
        %v5858 = vadd.f32 %v5857, %v5696
        %v5859 = vadd.f32 %v5858, %v5697
        %v5860 = vadd.f32 %v5859, %v5698
        %v5861 = vadd.f32 %v5860, %v5699
        %v5862 = vadd.f32 %v5861, %v5700
        %v5863 = vadd.f32 %v5862, %v5701
        %v5864 = vrot.slane %v5863, 4
        %v5865 = vadd.f32 %v5863, %v5864
        %v5866 = vrot.slane %v5865, 2
        %v5867 = vadd.f32 %v5865, %v5866
        %v5868 = vrot.slane %v5867, 1
        %v5869 = vadd.f32 %v5867, %v5868
        %v5870 = vlaneseq
        %v5871 = vshrl.u32 %v5870, 7
        %v5872 = vsub.s32 %v2505, %v5871
        %v5873 = vrot.slane %v4937, %v5872
        %v5874 = vlaneseq
        %v5875 = vshrl.u32 %v5874, 7
        %v5876 = vsub.s32 %v2510, %v5875
        %v5877 = vrot.slane %v4942, %v5876
        %v5878 = vsel %vm2515, %v5877, %v5873
        %v5879 = vlaneseq
        %v5880 = vshrl.u32 %v5879, 7
        %v5881 = vsub.s32 %v2517, %v5880
        %v5882 = vrot.slane %v4947, %v5881
        %v5883 = vsel %vm2522, %v5882, %v5878
        %v5884 = vlaneseq
        %v5885 = vshrl.u32 %v5884, 7
        %v5886 = vsub.s32 %v2524, %v5885
        %v5887 = vrot.slane %v4952, %v5886
        %v5888 = vsel %vm2529, %v5887, %v5883
        %v5889 = vlaneseq
        %v5890 = vshrl.u32 %v5889, 7
        %v5891 = vsub.s32 %v2531, %v5890
        %v5892 = vrot.slane %v4957, %v5891
        %v5893 = vsel %vm2536, %v5892, %v5888
        %v5894 = vlaneseq
        %v5895 = vshrl.u32 %v5894, 7
        %v5896 = vsub.s32 %v2538, %v5895
        %v5897 = vrot.slane %v4962, %v5896
        %v5898 = vsel %vm2543, %v5897, %v5893
        %v5899 = vlaneseq
        %v5900 = vshrl.u32 %v5899, 7
        %v5901 = vsub.s32 %v2545, %v5900
        %v5902 = vrot.slane %v4967, %v5901
        %v5903 = vsel %vm2550, %v5902, %v5898
        %v5904 = vlaneseq
        %v5905 = vshrl.u32 %v5904, 7
        %v5906 = vsub.s32 %v2552, %v5905
        %v5907 = vrot.slane %v4972, %v5906
        %v5908 = vsel %vm2557, %v5907, %v5903
        %v5909 = vlaneseq
        %v5910 = vshrl.u32 %v5909, 7
        %v5911 = vsub.s32 %v2559, %v5910
        %v5912 = vrot.slane %v4977, %v5911
        %v5913 = vsel %vm2564, %v5912, %v5908
        %v5914 = vlaneseq
        %v5915 = vshrl.u32 %v5914, 7
        %v5916 = vsub.s32 %v2566, %v5915
        %v5917 = vrot.slane %v4982, %v5916
        %v5918 = vsel %vm2571, %v5917, %v5913
        %v5919 = vlaneseq
        %v5920 = vshrl.u32 %v5919, 7
        %v5921 = vsub.s32 %v2573, %v5920
        %v5922 = vrot.slane %v4987, %v5921
        %v5923 = vsel %vm2578, %v5922, %v5918
        %v5924 = vlaneseq
        %v5925 = vshrl.u32 %v5924, 7
        %v5926 = vsub.s32 %v2580, %v5925
        %v5927 = vrot.slane %v4992, %v5926
        %v5928 = vsel %vm2585, %v5927, %v5923
        %v5929 = vlaneseq
        %v5930 = vshrl.u32 %v5929, 7
        %v5931 = vsub.s32 %v2587, %v5930
        %v5932 = vrot.slane %v4997, %v5931
        %v5933 = vsel %vm2592, %v5932, %v5928
        %v5934 = vlaneseq
        %v5935 = vshrl.u32 %v5934, 7
        %v5936 = vsub.s32 %v2594, %v5935
        %v5937 = vrot.slane %v5002, %v5936
        %v5938 = vsel %vm2599, %v5937, %v5933
        %v5939 = vlaneseq
        %v5940 = vshrl.u32 %v5939, 7
        %v5941 = vsub.s32 %v2601, %v5940
        %v5942 = vrot.slane %v5007, %v5941
        %v5943 = vsel %vm2606, %v5942, %v5938
        %v5944 = vlaneseq
        %v5945 = vshrl.u32 %v5944, 7
        %v5946 = vsub.s32 %v2608, %v5945
        %v5947 = vrot.slane %v5012, %v5946
        %v5948 = vsel %vm2613, %v5947, %v5943
        %v5949 = vlaneseq
        %v5950 = vshrl.u32 %v5949, 7
        %v5951 = vsub.s32 %v2505, %v5950
        %v5952 = vrot.slane %v5017, %v5951
        %v5953 = vlaneseq
        %v5954 = vshrl.u32 %v5953, 7
        %v5955 = vsub.s32 %v2510, %v5954
        %v5956 = vrot.slane %v5022, %v5955
        %v5957 = vsel %vm2515, %v5956, %v5952
        %v5958 = vlaneseq
        %v5959 = vshrl.u32 %v5958, 7
        %v5960 = vsub.s32 %v2517, %v5959
        %v5961 = vrot.slane %v5027, %v5960
        %v5962 = vsel %vm2522, %v5961, %v5957
        %v5963 = vlaneseq
        %v5964 = vshrl.u32 %v5963, 7
        %v5965 = vsub.s32 %v2524, %v5964
        %v5966 = vrot.slane %v5032, %v5965
        %v5967 = vsel %vm2529, %v5966, %v5962
        %v5968 = vlaneseq
        %v5969 = vshrl.u32 %v5968, 7
        %v5970 = vsub.s32 %v2531, %v5969
        %v5971 = vrot.slane %v5037, %v5970
        %v5972 = vsel %vm2536, %v5971, %v5967
        %v5973 = vlaneseq
        %v5974 = vshrl.u32 %v5973, 7
        %v5975 = vsub.s32 %v2538, %v5974
        %v5976 = vrot.slane %v5042, %v5975
        %v5977 = vsel %vm2543, %v5976, %v5972
        %v5978 = vlaneseq
        %v5979 = vshrl.u32 %v5978, 7
        %v5980 = vsub.s32 %v2545, %v5979
        %v5981 = vrot.slane %v5047, %v5980
        %v5982 = vsel %vm2550, %v5981, %v5977
        %v5983 = vlaneseq
        %v5984 = vshrl.u32 %v5983, 7
        %v5985 = vsub.s32 %v2552, %v5984
        %v5986 = vrot.slane %v5052, %v5985
        %v5987 = vsel %vm2557, %v5986, %v5982
        %v5988 = vlaneseq
        %v5989 = vshrl.u32 %v5988, 7
        %v5990 = vsub.s32 %v2559, %v5989
        %v5991 = vrot.slane %v5057, %v5990
        %v5992 = vsel %vm2564, %v5991, %v5987
        %v5993 = vlaneseq
        %v5994 = vshrl.u32 %v5993, 7
        %v5995 = vsub.s32 %v2566, %v5994
        %v5996 = vrot.slane %v5062, %v5995
        %v5997 = vsel %vm2571, %v5996, %v5992
        %v5998 = vlaneseq
        %v5999 = vshrl.u32 %v5998, 7
        %v6000 = vsub.s32 %v2573, %v5999
        %v6001 = vrot.slane %v5067, %v6000
        %v6002 = vsel %vm2578, %v6001, %v5997
        %v6003 = vlaneseq
        %v6004 = vshrl.u32 %v6003, 7
        %v6005 = vsub.s32 %v2580, %v6004
        %v6006 = vrot.slane %v5072, %v6005
        %v6007 = vsel %vm2585, %v6006, %v6002
        %v6008 = vlaneseq
        %v6009 = vshrl.u32 %v6008, 7
        %v6010 = vsub.s32 %v2587, %v6009
        %v6011 = vrot.slane %v5077, %v6010
        %v6012 = vsel %vm2592, %v6011, %v6007
        %v6013 = vlaneseq
        %v6014 = vshrl.u32 %v6013, 7
        %v6015 = vsub.s32 %v2594, %v6014
        %v6016 = vrot.slane %v5082, %v6015
        %v6017 = vsel %vm2599, %v6016, %v6012
        %v6018 = vlaneseq
        %v6019 = vshrl.u32 %v6018, 7
        %v6020 = vsub.s32 %v2601, %v6019
        %v6021 = vrot.slane %v5087, %v6020
        %v6022 = vsel %vm2606, %v6021, %v6017
        %v6023 = vlaneseq
        %v6024 = vshrl.u32 %v6023, 7
        %v6025 = vsub.s32 %v2608, %v6024
        %v6026 = vrot.slane %v5092, %v6025
        %v6027 = vsel %vm2613, %v6026, %v6022
        %v6028 = vlaneseq
        %v6029 = vshrl.u32 %v6028, 7
        %v6030 = vsub.s32 %v2505, %v6029
        %v6031 = vrot.slane %v5097, %v6030
        %v6032 = vlaneseq
        %v6033 = vshrl.u32 %v6032, 7
        %v6034 = vsub.s32 %v2510, %v6033
        %v6035 = vrot.slane %v5102, %v6034
        %v6036 = vsel %vm2515, %v6035, %v6031
        %v6037 = vlaneseq
        %v6038 = vshrl.u32 %v6037, 7
        %v6039 = vsub.s32 %v2517, %v6038
        %v6040 = vrot.slane %v5107, %v6039
        %v6041 = vsel %vm2522, %v6040, %v6036
        %v6042 = vlaneseq
        %v6043 = vshrl.u32 %v6042, 7
        %v6044 = vsub.s32 %v2524, %v6043
        %v6045 = vrot.slane %v5112, %v6044
        %v6046 = vsel %vm2529, %v6045, %v6041
        %v6047 = vlaneseq
        %v6048 = vshrl.u32 %v6047, 7
        %v6049 = vsub.s32 %v2531, %v6048
        %v6050 = vrot.slane %v5117, %v6049
        %v6051 = vsel %vm2536, %v6050, %v6046
        %v6052 = vlaneseq
        %v6053 = vshrl.u32 %v6052, 7
        %v6054 = vsub.s32 %v2538, %v6053
        %v6055 = vrot.slane %v5122, %v6054
        %v6056 = vsel %vm2543, %v6055, %v6051
        %v6057 = vlaneseq
        %v6058 = vshrl.u32 %v6057, 7
        %v6059 = vsub.s32 %v2545, %v6058
        %v6060 = vrot.slane %v5127, %v6059
        %v6061 = vsel %vm2550, %v6060, %v6056
        %v6062 = vlaneseq
        %v6063 = vshrl.u32 %v6062, 7
        %v6064 = vsub.s32 %v2552, %v6063
        %v6065 = vrot.slane %v5132, %v6064
        %v6066 = vsel %vm2557, %v6065, %v6061
        %v6067 = vlaneseq
        %v6068 = vshrl.u32 %v6067, 7
        %v6069 = vsub.s32 %v2559, %v6068
        %v6070 = vrot.slane %v5137, %v6069
        %v6071 = vsel %vm2564, %v6070, %v6066
        %v6072 = vlaneseq
        %v6073 = vshrl.u32 %v6072, 7
        %v6074 = vsub.s32 %v2566, %v6073
        %v6075 = vrot.slane %v5142, %v6074
        %v6076 = vsel %vm2571, %v6075, %v6071
        %v6077 = vlaneseq
        %v6078 = vshrl.u32 %v6077, 7
        %v6079 = vsub.s32 %v2573, %v6078
        %v6080 = vrot.slane %v5147, %v6079
        %v6081 = vsel %vm2578, %v6080, %v6076
        %v6082 = vlaneseq
        %v6083 = vshrl.u32 %v6082, 7
        %v6084 = vsub.s32 %v2580, %v6083
        %v6085 = vrot.slane %v5152, %v6084
        %v6086 = vsel %vm2585, %v6085, %v6081
        %v6087 = vlaneseq
        %v6088 = vshrl.u32 %v6087, 7
        %v6089 = vsub.s32 %v2587, %v6088
        %v6090 = vrot.slane %v5157, %v6089
        %v6091 = vsel %vm2592, %v6090, %v6086
        %v6092 = vlaneseq
        %v6093 = vshrl.u32 %v6092, 7
        %v6094 = vsub.s32 %v2594, %v6093
        %v6095 = vrot.slane %v5162, %v6094
        %v6096 = vsel %vm2599, %v6095, %v6091
        %v6097 = vlaneseq
        %v6098 = vshrl.u32 %v6097, 7
        %v6099 = vsub.s32 %v2601, %v6098
        %v6100 = vrot.slane %v5167, %v6099
        %v6101 = vsel %vm2606, %v6100, %v6096
        %v6102 = vlaneseq
        %v6103 = vshrl.u32 %v6102, 7
        %v6104 = vsub.s32 %v2608, %v6103
        %v6105 = vrot.slane %v5172, %v6104
        %v6106 = vsel %vm2613, %v6105, %v6101
        %v6107 = vlaneseq
        %v6108 = vshrl.u32 %v6107, 7
        %v6109 = vsub.s32 %v2505, %v6108
        %v6110 = vrot.slane %v5177, %v6109
        %v6111 = vlaneseq
        %v6112 = vshrl.u32 %v6111, 7
        %v6113 = vsub.s32 %v2510, %v6112
        %v6114 = vrot.slane %v5182, %v6113
        %v6115 = vsel %vm2515, %v6114, %v6110
        %v6116 = vlaneseq
        %v6117 = vshrl.u32 %v6116, 7
        %v6118 = vsub.s32 %v2517, %v6117
        %v6119 = vrot.slane %v5187, %v6118
        %v6120 = vsel %vm2522, %v6119, %v6115
        %v6121 = vlaneseq
        %v6122 = vshrl.u32 %v6121, 7
        %v6123 = vsub.s32 %v2524, %v6122
        %v6124 = vrot.slane %v5192, %v6123
        %v6125 = vsel %vm2529, %v6124, %v6120
        %v6126 = vlaneseq
        %v6127 = vshrl.u32 %v6126, 7
        %v6128 = vsub.s32 %v2531, %v6127
        %v6129 = vrot.slane %v5197, %v6128
        %v6130 = vsel %vm2536, %v6129, %v6125
        %v6131 = vlaneseq
        %v6132 = vshrl.u32 %v6131, 7
        %v6133 = vsub.s32 %v2538, %v6132
        %v6134 = vrot.slane %v5202, %v6133
        %v6135 = vsel %vm2543, %v6134, %v6130
        %v6136 = vlaneseq
        %v6137 = vshrl.u32 %v6136, 7
        %v6138 = vsub.s32 %v2545, %v6137
        %v6139 = vrot.slane %v5207, %v6138
        %v6140 = vsel %vm2550, %v6139, %v6135
        %v6141 = vlaneseq
        %v6142 = vshrl.u32 %v6141, 7
        %v6143 = vsub.s32 %v2552, %v6142
        %v6144 = vrot.slane %v5212, %v6143
        %v6145 = vsel %vm2557, %v6144, %v6140
        %v6146 = vlaneseq
        %v6147 = vshrl.u32 %v6146, 7
        %v6148 = vsub.s32 %v2559, %v6147
        %v6149 = vrot.slane %v5217, %v6148
        %v6150 = vsel %vm2564, %v6149, %v6145
        %v6151 = vlaneseq
        %v6152 = vshrl.u32 %v6151, 7
        %v6153 = vsub.s32 %v2566, %v6152
        %v6154 = vrot.slane %v5222, %v6153
        %v6155 = vsel %vm2571, %v6154, %v6150
        %v6156 = vlaneseq
        %v6157 = vshrl.u32 %v6156, 7
        %v6158 = vsub.s32 %v2573, %v6157
        %v6159 = vrot.slane %v5227, %v6158
        %v6160 = vsel %vm2578, %v6159, %v6155
        %v6161 = vlaneseq
        %v6162 = vshrl.u32 %v6161, 7
        %v6163 = vsub.s32 %v2580, %v6162
        %v6164 = vrot.slane %v5232, %v6163
        %v6165 = vsel %vm2585, %v6164, %v6160
        %v6166 = vlaneseq
        %v6167 = vshrl.u32 %v6166, 7
        %v6168 = vsub.s32 %v2587, %v6167
        %v6169 = vrot.slane %v5237, %v6168
        %v6170 = vsel %vm2592, %v6169, %v6165
        %v6171 = vlaneseq
        %v6172 = vshrl.u32 %v6171, 7
        %v6173 = vsub.s32 %v2594, %v6172
        %v6174 = vrot.slane %v5242, %v6173
        %v6175 = vsel %vm2599, %v6174, %v6170
        %v6176 = vlaneseq
        %v6177 = vshrl.u32 %v6176, 7
        %v6178 = vsub.s32 %v2601, %v6177
        %v6179 = vrot.slane %v5247, %v6178
        %v6180 = vsel %vm2606, %v6179, %v6175
        %v6181 = vlaneseq
        %v6182 = vshrl.u32 %v6181, 7
        %v6183 = vsub.s32 %v2608, %v6182
        %v6184 = vrot.slane %v5252, %v6183
        %v6185 = vsel %vm2613, %v6184, %v6180
        %v6186 = vlaneseq
        %v6187 = vshrl.u32 %v6186, 7
        %v6188 = vsub.s32 %v2505, %v6187
        %v6189 = vrot.slane %v5257, %v6188
        %v6190 = vlaneseq
        %v6191 = vshrl.u32 %v6190, 7
        %v6192 = vsub.s32 %v2510, %v6191
        %v6193 = vrot.slane %v5262, %v6192
        %v6194 = vsel %vm2515, %v6193, %v6189
        %v6195 = vlaneseq
        %v6196 = vshrl.u32 %v6195, 7
        %v6197 = vsub.s32 %v2517, %v6196
        %v6198 = vrot.slane %v5267, %v6197
        %v6199 = vsel %vm2522, %v6198, %v6194
        %v6200 = vlaneseq
        %v6201 = vshrl.u32 %v6200, 7
        %v6202 = vsub.s32 %v2524, %v6201
        %v6203 = vrot.slane %v5272, %v6202
        %v6204 = vsel %vm2529, %v6203, %v6199
        %v6205 = vlaneseq
        %v6206 = vshrl.u32 %v6205, 7
        %v6207 = vsub.s32 %v2531, %v6206
        %v6208 = vrot.slane %v5277, %v6207
        %v6209 = vsel %vm2536, %v6208, %v6204
        %v6210 = vlaneseq
        %v6211 = vshrl.u32 %v6210, 7
        %v6212 = vsub.s32 %v2538, %v6211
        %v6213 = vrot.slane %v5282, %v6212
        %v6214 = vsel %vm2543, %v6213, %v6209
        %v6215 = vlaneseq
        %v6216 = vshrl.u32 %v6215, 7
        %v6217 = vsub.s32 %v2545, %v6216
        %v6218 = vrot.slane %v5287, %v6217
        %v6219 = vsel %vm2550, %v6218, %v6214
        %v6220 = vlaneseq
        %v6221 = vshrl.u32 %v6220, 7
        %v6222 = vsub.s32 %v2552, %v6221
        %v6223 = vrot.slane %v5292, %v6222
        %v6224 = vsel %vm2557, %v6223, %v6219
        %v6225 = vlaneseq
        %v6226 = vshrl.u32 %v6225, 7
        %v6227 = vsub.s32 %v2559, %v6226
        %v6228 = vrot.slane %v5297, %v6227
        %v6229 = vsel %vm2564, %v6228, %v6224
        %v6230 = vlaneseq
        %v6231 = vshrl.u32 %v6230, 7
        %v6232 = vsub.s32 %v2566, %v6231
        %v6233 = vrot.slane %v5302, %v6232
        %v6234 = vsel %vm2571, %v6233, %v6229
        %v6235 = vlaneseq
        %v6236 = vshrl.u32 %v6235, 7
        %v6237 = vsub.s32 %v2573, %v6236
        %v6238 = vrot.slane %v5307, %v6237
        %v6239 = vsel %vm2578, %v6238, %v6234
        %v6240 = vlaneseq
        %v6241 = vshrl.u32 %v6240, 7
        %v6242 = vsub.s32 %v2580, %v6241
        %v6243 = vrot.slane %v5312, %v6242
        %v6244 = vsel %vm2585, %v6243, %v6239
        %v6245 = vlaneseq
        %v6246 = vshrl.u32 %v6245, 7
        %v6247 = vsub.s32 %v2587, %v6246
        %v6248 = vrot.slane %v5317, %v6247
        %v6249 = vsel %vm2592, %v6248, %v6244
        %v6250 = vlaneseq
        %v6251 = vshrl.u32 %v6250, 7
        %v6252 = vsub.s32 %v2594, %v6251
        %v6253 = vrot.slane %v5322, %v6252
        %v6254 = vsel %vm2599, %v6253, %v6249
        %v6255 = vlaneseq
        %v6256 = vshrl.u32 %v6255, 7
        %v6257 = vsub.s32 %v2601, %v6256
        %v6258 = vrot.slane %v5327, %v6257
        %v6259 = vsel %vm2606, %v6258, %v6254
        %v6260 = vlaneseq
        %v6261 = vshrl.u32 %v6260, 7
        %v6262 = vsub.s32 %v2608, %v6261
        %v6263 = vrot.slane %v5332, %v6262
        %v6264 = vsel %vm2613, %v6263, %v6259
        %v6265 = vlaneseq
        %v6266 = vshrl.u32 %v6265, 7
        %v6267 = vsub.s32 %v2505, %v6266
        %v6268 = vrot.slane %v5337, %v6267
        %v6269 = vlaneseq
        %v6270 = vshrl.u32 %v6269, 7
        %v6271 = vsub.s32 %v2510, %v6270
        %v6272 = vrot.slane %v5342, %v6271
        %v6273 = vsel %vm2515, %v6272, %v6268
        %v6274 = vlaneseq
        %v6275 = vshrl.u32 %v6274, 7
        %v6276 = vsub.s32 %v2517, %v6275
        %v6277 = vrot.slane %v5347, %v6276
        %v6278 = vsel %vm2522, %v6277, %v6273
        %v6279 = vlaneseq
        %v6280 = vshrl.u32 %v6279, 7
        %v6281 = vsub.s32 %v2524, %v6280
        %v6282 = vrot.slane %v5352, %v6281
        %v6283 = vsel %vm2529, %v6282, %v6278
        %v6284 = vlaneseq
        %v6285 = vshrl.u32 %v6284, 7
        %v6286 = vsub.s32 %v2531, %v6285
        %v6287 = vrot.slane %v5357, %v6286
        %v6288 = vsel %vm2536, %v6287, %v6283
        %v6289 = vlaneseq
        %v6290 = vshrl.u32 %v6289, 7
        %v6291 = vsub.s32 %v2538, %v6290
        %v6292 = vrot.slane %v5362, %v6291
        %v6293 = vsel %vm2543, %v6292, %v6288
        %v6294 = vlaneseq
        %v6295 = vshrl.u32 %v6294, 7
        %v6296 = vsub.s32 %v2545, %v6295
        %v6297 = vrot.slane %v5367, %v6296
        %v6298 = vsel %vm2550, %v6297, %v6293
        %v6299 = vlaneseq
        %v6300 = vshrl.u32 %v6299, 7
        %v6301 = vsub.s32 %v2552, %v6300
        %v6302 = vrot.slane %v5372, %v6301
        %v6303 = vsel %vm2557, %v6302, %v6298
        %v6304 = vlaneseq
        %v6305 = vshrl.u32 %v6304, 7
        %v6306 = vsub.s32 %v2559, %v6305
        %v6307 = vrot.slane %v5377, %v6306
        %v6308 = vsel %vm2564, %v6307, %v6303
        %v6309 = vlaneseq
        %v6310 = vshrl.u32 %v6309, 7
        %v6311 = vsub.s32 %v2566, %v6310
        %v6312 = vrot.slane %v5382, %v6311
        %v6313 = vsel %vm2571, %v6312, %v6308
        %v6314 = vlaneseq
        %v6315 = vshrl.u32 %v6314, 7
        %v6316 = vsub.s32 %v2573, %v6315
        %v6317 = vrot.slane %v5387, %v6316
        %v6318 = vsel %vm2578, %v6317, %v6313
        %v6319 = vlaneseq
        %v6320 = vshrl.u32 %v6319, 7
        %v6321 = vsub.s32 %v2580, %v6320
        %v6322 = vrot.slane %v5392, %v6321
        %v6323 = vsel %vm2585, %v6322, %v6318
        %v6324 = vlaneseq
        %v6325 = vshrl.u32 %v6324, 7
        %v6326 = vsub.s32 %v2587, %v6325
        %v6327 = vrot.slane %v5397, %v6326
        %v6328 = vsel %vm2592, %v6327, %v6323
        %v6329 = vlaneseq
        %v6330 = vshrl.u32 %v6329, 7
        %v6331 = vsub.s32 %v2594, %v6330
        %v6332 = vrot.slane %v5402, %v6331
        %v6333 = vsel %vm2599, %v6332, %v6328
        %v6334 = vlaneseq
        %v6335 = vshrl.u32 %v6334, 7
        %v6336 = vsub.s32 %v2601, %v6335
        %v6337 = vrot.slane %v5407, %v6336
        %v6338 = vsel %vm2606, %v6337, %v6333
        %v6339 = vlaneseq
        %v6340 = vshrl.u32 %v6339, 7
        %v6341 = vsub.s32 %v2608, %v6340
        %v6342 = vrot.slane %v5412, %v6341
        %v6343 = vsel %vm2613, %v6342, %v6338
        %v6344 = vlaneseq
        %v6345 = vshrl.u32 %v6344, 7
        %v6346 = vsub.s32 %v2505, %v6345
        %v6347 = vrot.slane %v5417, %v6346
        %v6348 = vlaneseq
        %v6349 = vshrl.u32 %v6348, 7
        %v6350 = vsub.s32 %v2510, %v6349
        %v6351 = vrot.slane %v5422, %v6350
        %v6352 = vsel %vm2515, %v6351, %v6347
        %v6353 = vlaneseq
        %v6354 = vshrl.u32 %v6353, 7
        %v6355 = vsub.s32 %v2517, %v6354
        %v6356 = vrot.slane %v5427, %v6355
        %v6357 = vsel %vm2522, %v6356, %v6352
        %v6358 = vlaneseq
        %v6359 = vshrl.u32 %v6358, 7
        %v6360 = vsub.s32 %v2524, %v6359
        %v6361 = vrot.slane %v5432, %v6360
        %v6362 = vsel %vm2529, %v6361, %v6357
        %v6363 = vlaneseq
        %v6364 = vshrl.u32 %v6363, 7
        %v6365 = vsub.s32 %v2531, %v6364
        %v6366 = vrot.slane %v5437, %v6365
        %v6367 = vsel %vm2536, %v6366, %v6362
        %v6368 = vlaneseq
        %v6369 = vshrl.u32 %v6368, 7
        %v6370 = vsub.s32 %v2538, %v6369
        %v6371 = vrot.slane %v5442, %v6370
        %v6372 = vsel %vm2543, %v6371, %v6367
        %v6373 = vlaneseq
        %v6374 = vshrl.u32 %v6373, 7
        %v6375 = vsub.s32 %v2545, %v6374
        %v6376 = vrot.slane %v5447, %v6375
        %v6377 = vsel %vm2550, %v6376, %v6372
        %v6378 = vlaneseq
        %v6379 = vshrl.u32 %v6378, 7
        %v6380 = vsub.s32 %v2552, %v6379
        %v6381 = vrot.slane %v5452, %v6380
        %v6382 = vsel %vm2557, %v6381, %v6377
        %v6383 = vlaneseq
        %v6384 = vshrl.u32 %v6383, 7
        %v6385 = vsub.s32 %v2559, %v6384
        %v6386 = vrot.slane %v5457, %v6385
        %v6387 = vsel %vm2564, %v6386, %v6382
        %v6388 = vlaneseq
        %v6389 = vshrl.u32 %v6388, 7
        %v6390 = vsub.s32 %v2566, %v6389
        %v6391 = vrot.slane %v5462, %v6390
        %v6392 = vsel %vm2571, %v6391, %v6387
        %v6393 = vlaneseq
        %v6394 = vshrl.u32 %v6393, 7
        %v6395 = vsub.s32 %v2573, %v6394
        %v6396 = vrot.slane %v5467, %v6395
        %v6397 = vsel %vm2578, %v6396, %v6392
        %v6398 = vlaneseq
        %v6399 = vshrl.u32 %v6398, 7
        %v6400 = vsub.s32 %v2580, %v6399
        %v6401 = vrot.slane %v5472, %v6400
        %v6402 = vsel %vm2585, %v6401, %v6397
        %v6403 = vlaneseq
        %v6404 = vshrl.u32 %v6403, 7
        %v6405 = vsub.s32 %v2587, %v6404
        %v6406 = vrot.slane %v5477, %v6405
        %v6407 = vsel %vm2592, %v6406, %v6402
        %v6408 = vlaneseq
        %v6409 = vshrl.u32 %v6408, 7
        %v6410 = vsub.s32 %v2594, %v6409
        %v6411 = vrot.slane %v5482, %v6410
        %v6412 = vsel %vm2599, %v6411, %v6407
        %v6413 = vlaneseq
        %v6414 = vshrl.u32 %v6413, 7
        %v6415 = vsub.s32 %v2601, %v6414
        %v6416 = vrot.slane %v5487, %v6415
        %v6417 = vsel %vm2606, %v6416, %v6412
        %v6418 = vlaneseq
        %v6419 = vshrl.u32 %v6418, 7
        %v6420 = vsub.s32 %v2608, %v6419
        %v6421 = vrot.slane %v5492, %v6420
        %v6422 = vsel %vm2613, %v6421, %v6417
        %v6423 = vlaneseq
        %v6424 = vshrl.u32 %v6423, 7
        %v6425 = vsub.s32 %v2505, %v6424
        %v6426 = vrot.slane %v5497, %v6425
        %v6427 = vlaneseq
        %v6428 = vshrl.u32 %v6427, 7
        %v6429 = vsub.s32 %v2510, %v6428
        %v6430 = vrot.slane %v5502, %v6429
        %v6431 = vsel %vm2515, %v6430, %v6426
        %v6432 = vlaneseq
        %v6433 = vshrl.u32 %v6432, 7
        %v6434 = vsub.s32 %v2517, %v6433
        %v6435 = vrot.slane %v5507, %v6434
        %v6436 = vsel %vm2522, %v6435, %v6431
        %v6437 = vlaneseq
        %v6438 = vshrl.u32 %v6437, 7
        %v6439 = vsub.s32 %v2524, %v6438
        %v6440 = vrot.slane %v5512, %v6439
        %v6441 = vsel %vm2529, %v6440, %v6436
        %v6442 = vlaneseq
        %v6443 = vshrl.u32 %v6442, 7
        %v6444 = vsub.s32 %v2531, %v6443
        %v6445 = vrot.slane %v5517, %v6444
        %v6446 = vsel %vm2536, %v6445, %v6441
        %v6447 = vlaneseq
        %v6448 = vshrl.u32 %v6447, 7
        %v6449 = vsub.s32 %v2538, %v6448
        %v6450 = vrot.slane %v5522, %v6449
        %v6451 = vsel %vm2543, %v6450, %v6446
        %v6452 = vlaneseq
        %v6453 = vshrl.u32 %v6452, 7
        %v6454 = vsub.s32 %v2545, %v6453
        %v6455 = vrot.slane %v5527, %v6454
        %v6456 = vsel %vm2550, %v6455, %v6451
        %v6457 = vlaneseq
        %v6458 = vshrl.u32 %v6457, 7
        %v6459 = vsub.s32 %v2552, %v6458
        %v6460 = vrot.slane %v5532, %v6459
        %v6461 = vsel %vm2557, %v6460, %v6456
        %v6462 = vlaneseq
        %v6463 = vshrl.u32 %v6462, 7
        %v6464 = vsub.s32 %v2559, %v6463
        %v6465 = vrot.slane %v5537, %v6464
        %v6466 = vsel %vm2564, %v6465, %v6461
        %v6467 = vlaneseq
        %v6468 = vshrl.u32 %v6467, 7
        %v6469 = vsub.s32 %v2566, %v6468
        %v6470 = vrot.slane %v5542, %v6469
        %v6471 = vsel %vm2571, %v6470, %v6466
        %v6472 = vlaneseq
        %v6473 = vshrl.u32 %v6472, 7
        %v6474 = vsub.s32 %v2573, %v6473
        %v6475 = vrot.slane %v5547, %v6474
        %v6476 = vsel %vm2578, %v6475, %v6471
        %v6477 = vlaneseq
        %v6478 = vshrl.u32 %v6477, 7
        %v6479 = vsub.s32 %v2580, %v6478
        %v6480 = vrot.slane %v5552, %v6479
        %v6481 = vsel %vm2585, %v6480, %v6476
        %v6482 = vlaneseq
        %v6483 = vshrl.u32 %v6482, 7
        %v6484 = vsub.s32 %v2587, %v6483
        %v6485 = vrot.slane %v5557, %v6484
        %v6486 = vsel %vm2592, %v6485, %v6481
        %v6487 = vlaneseq
        %v6488 = vshrl.u32 %v6487, 7
        %v6489 = vsub.s32 %v2594, %v6488
        %v6490 = vrot.slane %v5562, %v6489
        %v6491 = vsel %vm2599, %v6490, %v6486
        %v6492 = vlaneseq
        %v6493 = vshrl.u32 %v6492, 7
        %v6494 = vsub.s32 %v2601, %v6493
        %v6495 = vrot.slane %v5567, %v6494
        %v6496 = vsel %vm2606, %v6495, %v6491
        %v6497 = vlaneseq
        %v6498 = vshrl.u32 %v6497, 7
        %v6499 = vsub.s32 %v2608, %v6498
        %v6500 = vrot.slane %v5572, %v6499
        %v6501 = vsel %vm2613, %v6500, %v6496
        %v6502 = vsel %vm3168, %v6027, %v5948
        %v6503 = vsel %vm3170, %v6106, %v6502
        %v6504 = vsel %vm3172, %v6185, %v6503
        %v6505 = vsel %vm3174, %v6264, %v6504
        %v6506 = vsel %vm3176, %v6343, %v6505
        %v6507 = vsel %vm3178, %v6422, %v6506
        %v6508 = vsel %vm3180, %v6501, %v6507
        %6510 = vst [vmem:[%s422] sm:$0xff] %v6508
        %v6519 = vsel %vm3168, %v5743, %v5722
        %v6520 = vsel %vm3170, %v5764, %v6519
        %v6521 = vsel %vm3172, %v5785, %v6520
        %v6522 = vsel %vm3174, %v5806, %v6521
        %v6523 = vsel %vm3176, %v5827, %v6522
        %v6524 = vsel %vm3178, %v5848, %v6523
        %v6525 = vsel %vm3180, %v5869, %v6524
        %6527 = vst [vmem:[%s429] sm:$0xff] %v6525
        %s6528 = sand.u32 %s221, 1
        %s6529 = scalar_lea.sflag [#allocation5], %s6528
        %s6530 = sand.u32 %s221, 1
        %s6531 = smul.addr %s6530, 8
        %s6532 = scalar_lea.vmem [#allocation11], %s6531
        %s6533 = sand.u32 %s247, 1
        %s6534 = scalar_lea.sflag [#allocation13], %s6533
        %s6535 = sand.u32 %s247, 1
        %s6536 = smul.addr %s6535, 8
        %s6537 = scalar_lea.vmem [#allocation12], %s6536
        // Predicated region
        $region69: #{attention_forward.1} parent=51 // pred_check
          %p6538 = pneg %p231
        $region70: #{attention_forward.1} parent=51 // pred_check_branch
          %6540 = sbr.rel (%p6538) target = $region72
        $region71: #{attention_forward.1} parent=51 // pred_region
          %s6542 = ssub.s32 128, 128
          %6543 = vsyncadd %s6529, %s6542
          %s6544 = smul.addr %s35, 128
          %s6545 = scalar_lea.hbm %s8, %s6544
          %s6547 = sshll.u32 %s6532, 4
          %s6548 = int_to_ptr.vmem [resolvable:$true] %s6547
          %6550 = dma.vmem_to_hbm [thread:$0]  %s6548, 128, %s6545, %s6529
        $region72: #{attention_forward.1} parent=51 // pred_fallthru
          _
        // Predicated region
        $region73: #{attention_forward.1} parent=51 // pred_check
          %p6551 = pneg %p257
        $region74: #{attention_forward.1} parent=51 // pred_check_branch
          %6553 = sbr.rel (%p6551) target = $region76
        $region75: #{attention_forward.1} parent=51 // pred_region
          %s6555 = ssub.s32 128, 128
          %6556 = vsyncadd %s6534, %s6555
          %s6557 = smul.addr %s35, 128
          %s6558 = scalar_lea.hbm %s9, %s6557
          %s6560 = sshll.u32 %s6537, 4
          %s6561 = int_to_ptr.vmem [resolvable:$true] %s6560
          %6563 = dma.vmem_to_hbm [thread:$0]  %s6561, 128, %s6558, %s6534
        $region76: #{attention_forward.1} parent=51 // pred_fallthru
          _
      $region52: #{attention_forward.1} parent=5 // pred_fallthru
        _
      %p6564 = scmp.le.s32.totalorder 2, %s30
      // Predicated region
      $region77: #{attention_forward.1} parent=5 // pred_check
        %p6565 = pneg %p6564
      $region78: #{attention_forward.1} parent=5 // pred_check_branch
        %6567 = sbr.rel (%p6565) target = $region80
      $region79: #{attention_forward.1} parent=5 // pred_region
        %s6568 = ssub.s32 %s30, 2
        // Predicated region
        $region81: #{attention_forward.1} parent=79 // pred_check
          %p6569 = pneg %p237
        $region82: #{attention_forward.1} parent=79 // pred_check_branch
          %6571 = sbr.rel (%p6569) target = $region84
        $region83: #{attention_forward.1} parent=79 // pred_region
          %s6572 = sand.u32 %s222, 1
          %s6573 = scalar_lea.sflag [#allocation5], %s6572
          %s6574 = sand.u32 %s222, 1
          %s6575 = smul.addr %s6574, 8
          %s6576 = scalar_lea.vmem [#allocation11], %s6575
          %6577 = dma.done %s6573, 128
        $region84: #{attention_forward.1} parent=79 // pred_fallthru
          _
        // Predicated region
        $region85: #{attention_forward.1} parent=79 // pred_check
          %p6578 = pneg %p263
        $region86: #{attention_forward.1} parent=79 // pred_check_branch
          %6580 = sbr.rel (%p6578) target = $region88
        $region87: #{attention_forward.1} parent=79 // pred_region
          %s6581 = sand.u32 %s248, 1
          %s6582 = scalar_lea.sflag [#allocation13], %s6581
          %s6583 = sand.u32 %s248, 1
          %s6584 = smul.addr %s6583, 8
          %s6585 = scalar_lea.vmem [#allocation12], %s6584
          %6586 = dma.done %s6582, 128
        $region88: #{attention_forward.1} parent=79 // pred_fallthru
          _
      $region80: #{attention_forward.1} parent=5 // pred_fallthru
        _
    $region6: #{attention_forward.1} parent=1 // loop_footer
      %s34 = sadd.s32 1, %s30
    $region7: #{attention_forward.1} parent=1 // loop_footer_branch
      %29 = sbr.rel target = $region3
    $region8: #{attention_forward.1} parent=1 // loop_exit
      _
    %6587 = vsyncpa [#allocation4], 1
    %s6588 = scalar_lea.sflag [#allocation4], 1
    %6589 = vsyncpa %s6588, 1
    %6590 = vsyncpa [#allocation7], 1
    %s6591 = scalar_lea.sflag [#allocation7], 1
    %6592 = vsyncpa %s6591, 1
    %6593 = vsyncpa [#allocation10], 1
    %6594 = vsyncpa [#allocation5], 1
    %s6595 = scalar_lea.sflag [#allocation5], 1
    %6596 = vsyncpa %s6595, 1
    %6597 = vsyncpa [#allocation13], 1
    %s6598 = scalar_lea.sflag [#allocation13], 1
    %6599 = vsyncpa %s6598, 1

</llo_original>
